<compile_context>
chip_gen: v7x
topology: tpu7x:2x2x1
jax: 0.10.0
libtpu: 0.0.40
codegen_flags: <defaults>
</compile_context>

<pallas_src>
import jax
import jax.numpy as jnp
from jax.experimental import pallas as pl
from jax.experimental.pallas import tpu as pltpu


_LANE = 128  # TPU vreg lane width


def _round_up(x, m):
    return -(-x // m) * m


def _vmem_limit_bytes():
    """Scoped-VMEM budget: ~3/4 of the chip's physical VMEM (≈48 MiB on v7x's
    64 MiB per-TC VMEM, ≈96 MiB on v5e/v6e's 128 MiB), with a conservative
    fallback if the hardware query is unavailable."""
    try:
        cap = pltpu.get_tpu_info().vmem_capacity_bytes
    except Exception:
        cap = 64 * 1024 * 1024  # conservative (v7x per-TC) default
    return max(32 << 20, min(cap * 3 // 4, 96 << 20))


def _pick_lane_block(n, bytes_per_lane, target_step_bytes=2 << 20, max_lanes=4096):
    """Batch-tile width on the lane axis (multiple of 128).

    Sized so each grid step moves ~target_step_bytes of HBM traffic (>= ~0.5-1
    MiB keeps the pipeline near the HBM roofline and amortizes the ~0.35 us
    fixed per-step overhead), capped at max_lanes so double-buffered blocks
    stay far inside even v7x's 64 MiB VMEM, and never wider than the padded
    batch itself."""
    nb = _round_up(max(1, target_step_bytes // bytes_per_lane), _LANE)
    nb = min(nb, max_lanes)
    nb = min(nb, _round_up(n, _LANE))
    return max(nb, _LANE)


# ---------------------------------------------------------------------------
# Fused batched polar-factor kernel (batch on lanes, VPU path)
# ---------------------------------------------------------------------------
def _retraction_matmul_kernel(u_ref, vh_ref, o_ref):
    # u_ref : (K, R, Nb)   U  with the batch on the lane (minor) axis
    # vh_ref: (K, C, Nb)   Vh with the batch on the lane (minor) axis
    # o_ref : (C, R, Nb)   o[c, r, b] = sum_k U[b, r, k] * Vh[b, c, k]
    #
    # C and K are tiny (== cols of the Grassmann point, e.g. 8), so the
    # contraction is a short static unroll of fully lane-dense VPU FMAs.
    k_dim = u_ref.shape[0]
    c_dim = vh_ref.shape[1]
    for c in range(c_dim):                              # static unroll (C small)
        # (R, Nb) * (1, Nb) broadcast -> (R, Nb); every op uses 128/128 lanes.
        acc = u_ref[0] * vh_ref[0, c:c + 1, :]
        for k in range(1, k_dim):
            acc = acc + u_ref[k] * vh_ref[k, c:c + 1, :]
        # Single dense (R, Nb) store per output row — no masked vst, no relayout.
        o_ref[c] = acc.astype(o_ref.dtype)


def retraction_matmul(u, vh):
    """Batched new_point[b] = U[b] @ Vh[b]^T as one Pallas TPU kernel.

    The batch is placed on the lane axis (wrapper-side transposes are layout
    plumbing only); the kernel is a streaming, HBM-bandwidth-bound VPU kernel.
    """
    n, r, c = u.shape
    if r < c:
        # The reference torch.mm(U, Y) only type-checks for tall points.
        raise ValueError("Retraction expects tall points (rows >= cols).")
    k = c  # full_matrices=False and r >= c  =>  U:(n,r,c), Vh:(n,c,c)
    assert vh.shape == (n, k, c)

    itemsize = jnp.dtype(u.dtype).itemsize
    bytes_per_lane = (k * r + k * c + c * r) * itemsize
    nb = _pick_lane_block(n, bytes_per_lane)
    n_pad = _round_up(n, nb)
    n_blocks = n_pad // nb

    # Batch-minor layout (batch on lanes). Plain XLA transposes / pads.
    u_t = jnp.transpose(u, (2, 1, 0))    # (K, R, N): u_t[k, r, b]  = U[b, r, k]
    vh_t = jnp.transpose(vh, (2, 1, 0))  # (K, C, N): vh_t[k, c, b] = Vh[b, c, k]
    if n_pad != n:
        pad = ((0, 0), (0, 0), (0, n_pad - n))
        u_t = jnp.pad(u_t, pad)
        vh_t = jnp.pad(vh_t, pad)

    out_t = pl.pallas_call(
        _retraction_matmul_kernel,
        out_shape=jax.ShapeDtypeStruct((c, r, n_pad), u.dtype),
        grid_spec=pltpu.PrefetchScalarGridSpec(
            num_scalar_prefetch=0,
            grid=(n_blocks,),
            # NOTE: if DMA is still exposed on v5e, add
            # pipeline_mode=pl.Buffered(3) to the two input specs.
            in_specs=[
                pl.BlockSpec((k, r, nb), lambda i: (0, 0, i)),
                pl.BlockSpec((k, c, nb), lambda i: (0, 0, i)),
            ],
            out_specs=pl.BlockSpec((c, r, nb), lambda i: (0, 0, i)),
        ),
        compiler_params=pltpu.CompilerParams(
            dimension_semantics=("parallel",),
            vmem_limit_bytes=_vmem_limit_bytes(),
        ),
    )(u_t, vh_t)

    # (C, R, N_pad) -> (N, R, C); transpose + slice are wrapper-side plumbing.
    return jnp.transpose(out_t, (2, 1, 0))[:n]


# ---------------------------------------------------------------------------
# Module wrapper (mirrors the PyTorch Retraction module, forward only)
# ---------------------------------------------------------------------------
class Retraction:
    def __init__(self, lr):
        # self.beta / eiglayers / msqrt / mexp are unused in the reference forward.
        self.beta = lr

    def __call__(self, inputs, grad):
        # PV = inputs + (-grad): plain XLA elementwise op, fused into the SVD's
        # input — no standalone Pallas launch / extra HBM round trip.
        pv = inputs - grad
        # TODO(synk): batched SVD has no Pallas/TPU-kernel equivalent; use jnp.linalg.svd.
        u, _s, vh = jnp.linalg.svd(pv, full_matrices=False)
        # new_point[b] = U[b] @ Y[b]; Y.permute(0, 1) is identity, so Y = V = Vh^T.
        # The transpose is absorbed into the Pallas kernel's contraction.
        return retraction_matmul(u, vh)


if __name__ == "__main__":
    key = jax.random.PRNGKey(0)
    k1, k2 = jax.random.split(key)

    N, R, C = 4, 16, 8  # small batch of tall Grassmann points (16 x 8)
    inputs = jax.random.normal(k1, (N, R, C), dtype=jnp.float32)
    grad = jax.random.normal(k2, (N, R, C), dtype=jnp.float32) * 0.1

    retraction = Retraction(lr=0.01)
    fwd = jax.jit(retraction.__call__)
    out = jax.block_until_ready(fwd(inputs, grad))

    # Pure-JAX reference. U @ Vh^T is the polar factor of PV, which is unique
    # for full-rank PV, so any SVD sign ambiguity between runs cancels out.
    pv_ref = inputs - grad
    u_ref, _, vh_ref = jnp.linalg.svd(pv_ref, full_matrices=False)
    ref = jnp.matmul(u_ref, jnp.swapaxes(vh_ref, -1, -2))

    assert out.shape == inputs.shape
    assert jnp.allclose(out, ref, atol=2e-5, rtol=2e-5)
    print("KERNEL_OK")
</pallas_src>

<mosaic_0001>
module attributes {stable_mosaic.version = 11 : i64} {
  func.func @_retraction_matmul_kernel(%arg0: i32, %arg1: memref<8x16x128xf32, #tpu.memory_space<vmem>>, %arg2: memref<8x8x128xf32, #tpu.memory_space<vmem>>, %arg3: memref<8x16x128xf32, #tpu.memory_space<vmem>>) attributes {dimension_semantics = [#tpu.dimension_semantics<parallel>], iteration_bounds = array<i64: 1>, scalar_prefetch = 0 : i64, scratch_operands = 0 : i64, tpu.core_type = #tpu.core_type<tc>, window_params = [{transform_indices = @transform_0, window_bounds = array<i64: 8, 16, 128>}, {transform_indices = @transform_1, window_bounds = array<i64: 8, 8, 128>}, {transform_indices = @transform_2, window_bounds = array<i64: 8, 16, 128>}]} {
    %c0 = arith.constant 0 : index
    %c0_0 = arith.constant 0 : index
    %c0_1 = arith.constant 0 : index
    %0 = vector.load %arg1[%c0, %c0_0, %c0_1] : memref<8x16x128xf32, #tpu.memory_space<vmem>>, vector<1x16x128xf32>
    %1 = vector.shape_cast %0 : vector<1x16x128xf32> to vector<16x128xf32>
    %c0_2 = arith.constant 0 : index
    %c0_3 = arith.constant 0 : index
    %c0_4 = arith.constant 0 : index
    %2 = vector.load %arg2[%c0_2, %c0_3, %c0_4] : memref<8x8x128xf32, #tpu.memory_space<vmem>>, vector<1x1x128xf32>
    %3 = vector.shape_cast %2 : vector<1x1x128xf32> to vector<1x128xf32>
    %4 = vector.broadcast %3 : vector<1x128xf32> to vector<16x128xf32>
    %5 = arith.mulf %1, %4 : vector<16x128xf32>
    %c1 = arith.constant 1 : index
    %c0_5 = arith.constant 0 : index
    %c0_6 = arith.constant 0 : index
    %6 = vector.load %arg1[%c1, %c0_5, %c0_6] : memref<8x16x128xf32, #tpu.memory_space<vmem>>, vector<1x16x128xf32>
    %7 = vector.shape_cast %6 : vector<1x16x128xf32> to vector<16x128xf32>
    %c1_7 = arith.constant 1 : index
    %c0_8 = arith.constant 0 : index
    %c0_9 = arith.constant 0 : index
    %8 = vector.load %arg2[%c1_7, %c0_8, %c0_9] : memref<8x8x128xf32, #tpu.memory_space<vmem>>, vector<1x1x128xf32>
    %9 = vector.shape_cast %8 : vector<1x1x128xf32> to vector<1x128xf32>
    %10 = vector.broadcast %9 : vector<1x128xf32> to vector<16x128xf32>
    %11 = arith.mulf %7, %10 : vector<16x128xf32>
    %12 = arith.addf %5, %11 : vector<16x128xf32>
    %c2 = arith.constant 2 : index
    %c0_10 = arith.constant 0 : index
    %c0_11 = arith.constant 0 : index
    %13 = vector.load %arg1[%c2, %c0_10, %c0_11] : memref<8x16x128xf32, #tpu.memory_space<vmem>>, vector<1x16x128xf32>
    %14 = vector.shape_cast %13 : vector<1x16x128xf32> to vector<16x128xf32>
    %c2_12 = arith.constant 2 : index
    %c0_13 = arith.constant 0 : index
    %c0_14 = arith.constant 0 : index
    %15 = vector.load %arg2[%c2_12, %c0_13, %c0_14] : memref<8x8x128xf32, #tpu.memory_space<vmem>>, vector<1x1x128xf32>
    %16 = vector.shape_cast %15 : vector<1x1x128xf32> to vector<1x128xf32>
    %17 = vector.broadcast %16 : vector<1x128xf32> to vector<16x128xf32>
    %18 = arith.mulf %14, %17 : vector<16x128xf32>
    %19 = arith.addf %12, %18 : vector<16x128xf32>
    %c3 = arith.constant 3 : index
    %c0_15 = arith.constant 0 : index
    %c0_16 = arith.constant 0 : index
    %20 = vector.load %arg1[%c3, %c0_15, %c0_16] : memref<8x16x128xf32, #tpu.memory_space<vmem>>, vector<1x16x128xf32>
    %21 = vector.shape_cast %20 : vector<1x16x128xf32> to vector<16x128xf32>
    %c3_17 = arith.constant 3 : index
    %c0_18 = arith.constant 0 : index
    %c0_19 = arith.constant 0 : index
    %22 = vector.load %arg2[%c3_17, %c0_18, %c0_19] : memref<8x8x128xf32, #tpu.memory_space<vmem>>, vector<1x1x128xf32>
    %23 = vector.shape_cast %22 : vector<1x1x128xf32> to vector<1x128xf32>
    %24 = vector.broadcast %23 : vector<1x128xf32> to vector<16x128xf32>
    %25 = arith.mulf %21, %24 : vector<16x128xf32>
    %26 = arith.addf %19, %25 : vector<16x128xf32>
    %c4 = arith.constant 4 : index
    %c0_20 = arith.constant 0 : index
    %c0_21 = arith.constant 0 : index
    %27 = vector.load %arg1[%c4, %c0_20, %c0_21] : memref<8x16x128xf32, #tpu.memory_space<vmem>>, vector<1x16x128xf32>
    %28 = vector.shape_cast %27 : vector<1x16x128xf32> to vector<16x128xf32>
    %c4_22 = arith.constant 4 : index
    %c0_23 = arith.constant 0 : index
    %c0_24 = arith.constant 0 : index
    %29 = vector.load %arg2[%c4_22, %c0_23, %c0_24] : memref<8x8x128xf32, #tpu.memory_space<vmem>>, vector<1x1x128xf32>
    %30 = vector.shape_cast %29 : vector<1x1x128xf32> to vector<1x128xf32>
    %31 = vector.broadcast %30 : vector<1x128xf32> to vector<16x128xf32>
    %32 = arith.mulf %28, %31 : vector<16x128xf32>
    %33 = arith.addf %26, %32 : vector<16x128xf32>
    %c5 = arith.constant 5 : index
    %c0_25 = arith.constant 0 : index
    %c0_26 = arith.constant 0 : index
    %34 = vector.load %arg1[%c5, %c0_25, %c0_26] : memref<8x16x128xf32, #tpu.memory_space<vmem>>, vector<1x16x128xf32>
    %35 = vector.shape_cast %34 : vector<1x16x128xf32> to vector<16x128xf32>
    %c5_27 = arith.constant 5 : index
    %c0_28 = arith.constant 0 : index
    %c0_29 = arith.constant 0 : index
    %36 = vector.load %arg2[%c5_27, %c0_28, %c0_29] : memref<8x8x128xf32, #tpu.memory_space<vmem>>, vector<1x1x128xf32>
    %37 = vector.shape_cast %36 : vector<1x1x128xf32> to vector<1x128xf32>
    %38 = vector.broadcast %37 : vector<1x128xf32> to vector<16x128xf32>
    %39 = arith.mulf %35, %38 : vector<16x128xf32>
    %40 = arith.addf %33, %39 : vector<16x128xf32>
    %c6 = arith.constant 6 : index
    %c0_30 = arith.constant 0 : index
    %c0_31 = arith.constant 0 : index
    %41 = vector.load %arg1[%c6, %c0_30, %c0_31] : memref<8x16x128xf32, #tpu.memory_space<vmem>>, vector<1x16x128xf32>
    %42 = vector.shape_cast %41 : vector<1x16x128xf32> to vector<16x128xf32>
    %c6_32 = arith.constant 6 : index
    %c0_33 = arith.constant 0 : index
    %c0_34 = arith.constant 0 : index
    %43 = vector.load %arg2[%c6_32, %c0_33, %c0_34] : memref<8x8x128xf32, #tpu.memory_space<vmem>>, vector<1x1x128xf32>
    %44 = vector.shape_cast %43 : vector<1x1x128xf32> to vector<1x128xf32>
    %45 = vector.broadcast %44 : vector<1x128xf32> to vector<16x128xf32>
    %46 = arith.mulf %42, %45 : vector<16x128xf32>
    %47 = arith.addf %40, %46 : vector<16x128xf32>
    %c7 = arith.constant 7 : index
    %c0_35 = arith.constant 0 : index
    %c0_36 = arith.constant 0 : index
    %48 = vector.load %arg1[%c7, %c0_35, %c0_36] : memref<8x16x128xf32, #tpu.memory_space<vmem>>, vector<1x16x128xf32>
    %49 = vector.shape_cast %48 : vector<1x16x128xf32> to vector<16x128xf32>
    %c7_37 = arith.constant 7 : index
    %c0_38 = arith.constant 0 : index
    %c0_39 = arith.constant 0 : index
    %50 = vector.load %arg2[%c7_37, %c0_38, %c0_39] : memref<8x8x128xf32, #tpu.memory_space<vmem>>, vector<1x1x128xf32>
    %51 = vector.shape_cast %50 : vector<1x1x128xf32> to vector<1x128xf32>
    %52 = vector.broadcast %51 : vector<1x128xf32> to vector<16x128xf32>
    %53 = arith.mulf %49, %52 : vector<16x128xf32>
    %54 = arith.addf %47, %53 : vector<16x128xf32>
    %c0_40 = arith.constant 0 : index
    %c0_41 = arith.constant 0 : index
    %c0_42 = arith.constant 0 : index
    %55 = vector.load %arg3[%c0_40, %c0_41, %c0_42] : memref<8x16x128xf32, #tpu.memory_space<vmem>>, vector<1x16x128xf32>
    %56 = vector.shape_cast %55 : vector<1x16x128xf32> to vector<16x128xf32>
    %57 = vector.shape_cast %54 : vector<16x128xf32> to vector<1x16x128xf32>
    tpu.vector_store %arg3[%c0_40, %c0_41, %c0_42], %57 {strides = array<i32>} : memref<8x16x128xf32, #tpu.memory_space<vmem>>, vector<1x16x128xf32>,
    %c0_43 = arith.constant 0 : index
    %c0_44 = arith.constant 0 : index
    %c0_45 = arith.constant 0 : index
    %58 = vector.load %arg1[%c0_43, %c0_44, %c0_45] : memref<8x16x128xf32, #tpu.memory_space<vmem>>, vector<1x16x128xf32>
    %59 = vector.shape_cast %58 : vector<1x16x128xf32> to vector<16x128xf32>
    %c0_46 = arith.constant 0 : index
    %c1_47 = arith.constant 1 : index
    %c0_48 = arith.constant 0 : index
    %60 = vector.load %arg2[%c0_46, %c1_47, %c0_48] : memref<8x8x128xf32, #tpu.memory_space<vmem>>, vector<1x1x128xf32>
    %61 = vector.shape_cast %60 : vector<1x1x128xf32> to vector<1x128xf32>
    %62 = vector.broadcast %61 : vector<1x128xf32> to vector<16x128xf32>
    %63 = arith.mulf %59, %62 : vector<16x128xf32>
    %c1_49 = arith.constant 1 : index
    %c0_50 = arith.constant 0 : index
    %c0_51 = arith.constant 0 : index
    %64 = vector.load %arg1[%c1_49, %c0_50, %c0_51] : memref<8x16x128xf32, #tpu.memory_space<vmem>>, vector<1x16x128xf32>
    %65 = vector.shape_cast %64 : vector<1x16x128xf32> to vector<16x128xf32>
    %c1_52 = arith.constant 1 : index
    %c1_53 = arith.constant 1 : index
    %c0_54 = arith.constant 0 : index
    %66 = vector.load %arg2[%c1_52, %c1_53, %c0_54] : memref<8x8x128xf32, #tpu.memory_space<vmem>>, vector<1x1x128xf32>
    %67 = vector.shape_cast %66 : vector<1x1x128xf32> to vector<1x128xf32>
    %68 = vector.broadcast %67 : vector<1x128xf32> to vector<16x128xf32>
    %69 = arith.mulf %65, %68 : vector<16x128xf32>
    %70 = arith.addf %63, %69 : vector<16x128xf32>
    %c2_55 = arith.constant 2 : index
    %c0_56 = arith.constant 0 : index
    %c0_57 = arith.constant 0 : index
    %71 = vector.load %arg1[%c2_55, %c0_56, %c0_57] : memref<8x16x128xf32, #tpu.memory_space<vmem>>, vector<1x16x128xf32>
    %72 = vector.shape_cast %71 : vector<1x16x128xf32> to vector<16x128xf32>
    %c2_58 = arith.constant 2 : index
    %c1_59 = arith.constant 1 : index
    %c0_60 = arith.constant 0 : index
    %73 = vector.load %arg2[%c2_58, %c1_59, %c0_60] : memref<8x8x128xf32, #tpu.memory_space<vmem>>, vector<1x1x128xf32>
    %74 = vector.shape_cast %73 : vector<1x1x128xf32> to vector<1x128xf32>
    %75 = vector.broadcast %74 : vector<1x128xf32> to vector<16x128xf32>
    %76 = arith.mulf %72, %75 : vector<16x128xf32>
    %77 = arith.addf %70, %76 : vector<16x128xf32>
    %c3_61 = arith.constant 3 : index
    %c0_62 = arith.constant 0 : index
    %c0_63 = arith.constant 0 : index
    %78 = vector.load %arg1[%c3_61, %c0_62, %c0_63] : memref<8x16x128xf32, #tpu.memory_space<vmem>>, vector<1x16x128xf32>
    %79 = vector.shape_cast %78 : vector<1x16x128xf32> to vector<16x128xf32>
    %c3_64 = arith.constant 3 : index
    %c1_65 = arith.constant 1 : index
    %c0_66 = arith.constant 0 : index
    %80 = vector.load %arg2[%c3_64, %c1_65, %c0_66] : memref<8x8x128xf32, #tpu.memory_space<vmem>>, vector<1x1x128xf32>
    %81 = vector.shape_cast %80 : vector<1x1x128xf32> to vector<1x128xf32>
    %82 = vector.broadcast %81 : vector<1x128xf32> to vector<16x128xf32>
    %83 = arith.mulf %79, %82 : vector<16x128xf32>
    %84 = arith.addf %77, %83 : vector<16x128xf32>
    %c4_67 = arith.constant 4 : index
    %c0_68 = arith.constant 0 : index
    %c0_69 = arith.constant 0 : index
    %85 = vector.load %arg1[%c4_67, %c0_68, %c0_69] : memref<8x16x128xf32, #tpu.memory_space<vmem>>, vector<1x16x128xf32>
    %86 = vector.shape_cast %85 : vector<1x16x128xf32> to vector<16x128xf32>
    %c4_70 = arith.constant 4 : index
    %c1_71 = arith.constant 1 : index
    %c0_72 = arith.constant 0 : index
    %87 = vector.load %arg2[%c4_70, %c1_71, %c0_72] : memref<8x8x128xf32, #tpu.memory_space<vmem>>, vector<1x1x128xf32>
    %88 = vector.shape_cast %87 : vector<1x1x128xf32> to vector<1x128xf32>
    %89 = vector.broadcast %88 : vector<1x128xf32> to vector<16x128xf32>
    %90 = arith.mulf %86, %89 : vector<16x128xf32>
    %91 = arith.addf %84, %90 : vector<16x128xf32>
    %c5_73 = arith.constant 5 : index
    %c0_74 = arith.constant 0 : index
    %c0_75 = arith.constant 0 : index
    %92 = vector.load %arg1[%c5_73, %c0_74, %c0_75] : memref<8x16x128xf32, #tpu.memory_space<vmem>>, vector<1x16x128xf32>
    %93 = vector.shape_cast %92 : vector<1x16x128xf32> to vector<16x128xf32>
    %c5_76 = arith.constant 5 : index
    %c1_77 = arith.constant 1 : index
    %c0_78 = arith.constant 0 : index
    %94 = vector.load %arg2[%c5_76, %c1_77, %c0_78] : memref<8x8x128xf32, #tpu.memory_space<vmem>>, vector<1x1x128xf32>
    %95 = vector.shape_cast %94 : vector<1x1x128xf32> to vector<1x128xf32>
    %96 = vector.broadcast %95 : vector<1x128xf32> to vector<16x128xf32>
    %97 = arith.mulf %93, %96 : vector<16x128xf32>
    %98 = arith.addf %91, %97 : vector<16x128xf32>
    %c6_79 = arith.constant 6 : index
    %c0_80 = arith.constant 0 : index
    %c0_81 = arith.constant 0 : index
    %99 = vector.load %arg1[%c6_79, %c0_80, %c0_81] : memref<8x16x128xf32, #tpu.memory_space<vmem>>, vector<1x16x128xf32>
    %100 = vector.shape_cast %99 : vector<1x16x128xf32> to vector<16x128xf32>
    %c6_82 = arith.constant 6 : index
    %c1_83 = arith.constant 1 : index
    %c0_84 = arith.constant 0 : index
    %101 = vector.load %arg2[%c6_82, %c1_83, %c0_84] : memref<8x8x128xf32, #tpu.memory_space<vmem>>, vector<1x1x128xf32>
    %102 = vector.shape_cast %101 : vector<1x1x128xf32> to vector<1x128xf32>
    %103 = vector.broadcast %102 : vector<1x128xf32> to vector<16x128xf32>
    %104 = arith.mulf %100, %103 : vector<16x128xf32>
    %105 = arith.addf %98, %104 : vector<16x128xf32>
    %c7_85 = arith.constant 7 : index
    %c0_86 = arith.constant 0 : index
    %c0_87 = arith.constant 0 : index
    %106 = vector.load %arg1[%c7_85, %c0_86, %c0_87] : memref<8x16x128xf32, #tpu.memory_space<vmem>>, vector<1x16x128xf32>
    %107 = vector.shape_cast %106 : vector<1x16x128xf32> to vector<16x128xf32>
    %c7_88 = arith.constant 7 : index
    %c1_89 = arith.constant 1 : index
    %c0_90 = arith.constant 0 : index
    %108 = vector.load %arg2[%c7_88, %c1_89, %c0_90] : memref<8x8x128xf32, #tpu.memory_space<vmem>>, vector<1x1x128xf32>
    %109 = vector.shape_cast %108 : vector<1x1x128xf32> to vector<1x128xf32>
    %110 = vector.broadcast %109 : vector<1x128xf32> to vector<16x128xf32>
    %111 = arith.mulf %107, %110 : vector<16x128xf32>
    %112 = arith.addf %105, %111 : vector<16x128xf32>
    %c1_91 = arith.constant 1 : index
    %c0_92 = arith.constant 0 : index
    %c0_93 = arith.constant 0 : index
    %113 = vector.load %arg3[%c1_91, %c0_92, %c0_93] : memref<8x16x128xf32, #tpu.memory_space<vmem>>, vector<1x16x128xf32>
    %114 = vector.shape_cast %113 : vector<1x16x128xf32> to vector<16x128xf32>
    %115 = vector.shape_cast %112 : vector<16x128xf32> to vector<1x16x128xf32>
    tpu.vector_store %arg3[%c1_91, %c0_92, %c0_93], %115 {strides = array<i32>} : memref<8x16x128xf32, #tpu.memory_space<vmem>>, vector<1x16x128xf32>,
    %c0_94 = arith.constant 0 : index
    %c0_95 = arith.constant 0 : index
    %c0_96 = arith.constant 0 : index
    %116 = vector.load %arg1[%c0_94, %c0_95, %c0_96] : memref<8x16x128xf32, #tpu.memory_space<vmem>>, vector<1x16x128xf32>
    %117 = vector.shape_cast %116 : vector<1x16x128xf32> to vector<16x128xf32>
    %c0_97 = arith.constant 0 : index
    %c2_98 = arith.constant 2 : index
    %c0_99 = arith.constant 0 : index
    %118 = vector.load %arg2[%c0_97, %c2_98, %c0_99] : memref<8x8x128xf32, #tpu.memory_space<vmem>>, vector<1x1x128xf32>
    %119 = vector.shape_cast %118 : vector<1x1x128xf32> to vector<1x128xf32>
    %120 = vector.broadcast %119 : vector<1x128xf32> to vector<16x128xf32>
    %121 = arith.mulf %117, %120 : vector<16x128xf32>
    %c1_100 = arith.constant 1 : index
    %c0_101 = arith.constant 0 : index
    %c0_102 = arith.constant 0 : index
    %122 = vector.load %arg1[%c1_100, %c0_101, %c0_102] : memref<8x16x128xf32, #tpu.memory_space<vmem>>, vector<1x16x128xf32>
    %123 = vector.shape_cast %122 : vector<1x16x128xf32> to vector<16x128xf32>
    %c1_103 = arith.constant 1 : index
    %c2_104 = arith.constant 2 : index
    %c0_105 = arith.constant 0 : index
    %124 = vector.load %arg2[%c1_103, %c2_104, %c0_105] : memref<8x8x128xf32, #tpu.memory_space<vmem>>, vector<1x1x128xf32>
    %125 = vector.shape_cast %124 : vector<1x1x128xf32> to vector<1x128xf32>
    %126 = vector.broadcast %125 : vector<1x128xf32> to vector<16x128xf32>
    %127 = arith.mulf %123, %126 : vector<16x128xf32>
    %128 = arith.addf %121, %127 : vector<16x128xf32>
    %c2_106 = arith.constant 2 : index
    %c0_107 = arith.constant 0 : index
    %c0_108 = arith.constant 0 : index
    %129 = vector.load %arg1[%c2_106, %c0_107, %c0_108] : memref<8x16x128xf32, #tpu.memory_space<vmem>>, vector<1x16x128xf32>
    %130 = vector.shape_cast %129 : vector<1x16x128xf32> to vector<16x128xf32>
    %c2_109 = arith.constant 2 : index
    %c2_110 = arith.constant 2 : index
    %c0_111 = arith.constant 0 : index
    %131 = vector.load %arg2[%c2_109, %c2_110, %c0_111] : memref<8x8x128xf32, #tpu.memory_space<vmem>>, vector<1x1x128xf32>
    %132 = vector.shape_cast %131 : vector<1x1x128xf32> to vector<1x128xf32>
    %133 = vector.broadcast %132 : vector<1x128xf32> to vector<16x128xf32>
    %134 = arith.mulf %130, %133 : vector<16x128xf32>
    %135 = arith.addf %128, %134 : vector<16x128xf32>
    %c3_112 = arith.constant 3 : index
    %c0_113 = arith.constant 0 : index
    %c0_114 = arith.constant 0 : index
    %136 = vector.load %arg1[%c3_112, %c0_113, %c0_114] : memref<8x16x128xf32, #tpu.memory_space<vmem>>, vector<1x16x128xf32>
    %137 = vector.shape_cast %136 : vector<1x16x128xf32> to vector<16x128xf32>
    %c3_115 = arith.constant 3 : index
    %c2_116 = arith.constant 2 : index
    %c0_117 = arith.constant 0 : index
    %138 = vector.load %arg2[%c3_115, %c2_116, %c0_117] : memref<8x8x128xf32, #tpu.memory_space<vmem>>, vector<1x1x128xf32>
    %139 = vector.shape_cast %138 : vector<1x1x128xf32> to vector<1x128xf32>
    %140 = vector.broadcast %139 : vector<1x128xf32> to vector<16x128xf32>
    %141 = arith.mulf %137, %140 : vector<16x128xf32>
    %142 = arith.addf %135, %141 : vector<16x128xf32>
    %c4_118 = arith.constant 4 : index
    %c0_119 = arith.constant 0 : index
    %c0_120 = arith.constant 0 : index
    %143 = vector.load %arg1[%c4_118, %c0_119, %c0_120] : memref<8x16x128xf32, #tpu.memory_space<vmem>>, vector<1x16x128xf32>
    %144 = vector.shape_cast %143 : vector<1x16x128xf32> to vector<16x128xf32>
    %c4_121 = arith.constant 4 : index
    %c2_122 = arith.constant 2 : index
    %c0_123 = arith.constant 0 : index
    %145 = vector.load %arg2[%c4_121, %c2_122, %c0_123] : memref<8x8x128xf32, #tpu.memory_space<vmem>>, vector<1x1x128xf32>
    %146 = vector.shape_cast %145 : vector<1x1x128xf32> to vector<1x128xf32>
    %147 = vector.broadcast %146 : vector<1x128xf32> to vector<16x128xf32>
    %148 = arith.mulf %144, %147 : vector<16x128xf32>
    %149 = arith.addf %142, %148 : vector<16x128xf32>
    %c5_124 = arith.constant 5 : index
    %c0_125 = arith.constant 0 : index
    %c0_126 = arith.constant 0 : index
    %150 = vector.load %arg1[%c5_124, %c0_125, %c0_126] : memref<8x16x128xf32, #tpu.memory_space<vmem>>, vector<1x16x128xf32>
    %151 = vector.shape_cast %150 : vector<1x16x128xf32> to vector<16x128xf32>
    %c5_127 = arith.constant 5 : index
    %c2_128 = arith.constant 2 : index
    %c0_129 = arith.constant 0 : index
    %152 = vector.load %arg2[%c5_127, %c2_128, %c0_129] : memref<8x8x128xf32, #tpu.memory_space<vmem>>, vector<1x1x128xf32>
    %153 = vector.shape_cast %152 : vector<1x1x128xf32> to vector<1x128xf32>
    %154 = vector.broadcast %153 : vector<1x128xf32> to vector<16x128xf32>
    %155 = arith.mulf %151, %154 : vector<16x128xf32>
    %156 = arith.addf %149, %155 : vector<16x128xf32>
    %c6_130 = arith.constant 6 : index
    %c0_131 = arith.constant 0 : index
    %c0_132 = arith.constant 0 : index
    %157 = vector.load %arg1[%c6_130, %c0_131, %c0_132] : memref<8x16x128xf32, #tpu.memory_space<vmem>>, vector<1x16x128xf32>
    %158 = vector.shape_cast %157 : vector<1x16x128xf32> to vector<16x128xf32>
    %c6_133 = arith.constant 6 : index
    %c2_134 = arith.constant 2 : index
    %c0_135 = arith.constant 0 : index
    %159 = vector.load %arg2[%c6_133, %c2_134, %c0_135] : memref<8x8x128xf32, #tpu.memory_space<vmem>>, vector<1x1x128xf32>
    %160 = vector.shape_cast %159 : vector<1x1x128xf32> to vector<1x128xf32>
    %161 = vector.broadcast %160 : vector<1x128xf32> to vector<16x128xf32>
    %162 = arith.mulf %158, %161 : vector<16x128xf32>
    %163 = arith.addf %156, %162 : vector<16x128xf32>
    %c7_136 = arith.constant 7 : index
    %c0_137 = arith.constant 0 : index
    %c0_138 = arith.constant 0 : index
    %164 = vector.load %arg1[%c7_136, %c0_137, %c0_138] : memref<8x16x128xf32, #tpu.memory_space<vmem>>, vector<1x16x128xf32>
    %165 = vector.shape_cast %164 : vector<1x16x128xf32> to vector<16x128xf32>
    %c7_139 = arith.constant 7 : index
    %c2_140 = arith.constant 2 : index
    %c0_141 = arith.constant 0 : index
    %166 = vector.load %arg2[%c7_139, %c2_140, %c0_141] : memref<8x8x128xf32, #tpu.memory_space<vmem>>, vector<1x1x128xf32>
    %167 = vector.shape_cast %166 : vector<1x1x128xf32> to vector<1x128xf32>
    %168 = vector.broadcast %167 : vector<1x128xf32> to vector<16x128xf32>
    %169 = arith.mulf %165, %168 : vector<16x128xf32>
    %170 = arith.addf %163, %169 : vector<16x128xf32>
    %c2_142 = arith.constant 2 : index
    %c0_143 = arith.constant 0 : index
    %c0_144 = arith.constant 0 : index
    %171 = vector.load %arg3[%c2_142, %c0_143, %c0_144] : memref<8x16x128xf32, #tpu.memory_space<vmem>>, vector<1x16x128xf32>
    %172 = vector.shape_cast %171 : vector<1x16x128xf32> to vector<16x128xf32>
    %173 = vector.shape_cast %170 : vector<16x128xf32> to vector<1x16x128xf32>
    tpu.vector_store %arg3[%c2_142, %c0_143, %c0_144], %173 {strides = array<i32>} : memref<8x16x128xf32, #tpu.memory_space<vmem>>, vector<1x16x128xf32>,
    %c0_145 = arith.constant 0 : index
    %c0_146 = arith.constant 0 : index
    %c0_147 = arith.constant 0 : index
    %174 = vector.load %arg1[%c0_145, %c0_146, %c0_147] : memref<8x16x128xf32, #tpu.memory_space<vmem>>, vector<1x16x128xf32>
    %175 = vector.shape_cast %174 : vector<1x16x128xf32> to vector<16x128xf32>
    %c0_148 = arith.constant 0 : index
    %c3_149 = arith.constant 3 : index
    %c0_150 = arith.constant 0 : index
    %176 = vector.load %arg2[%c0_148, %c3_149, %c0_150] : memref<8x8x128xf32, #tpu.memory_space<vmem>>, vector<1x1x128xf32>
    %177 = vector.shape_cast %176 : vector<1x1x128xf32> to vector<1x128xf32>
    %178 = vector.broadcast %177 : vector<1x128xf32> to vector<16x128xf32>
    %179 = arith.mulf %175, %178 : vector<16x128xf32>
    %c1_151 = arith.constant 1 : index
    %c0_152 = arith.constant 0 : index
    %c0_153 = arith.constant 0 : index
    %180 = vector.load %arg1[%c1_151, %c0_152, %c0_153] : memref<8x16x128xf32, #tpu.memory_space<vmem>>, vector<1x16x128xf32>
    %181 = vector.shape_cast %180 : vector<1x16x128xf32> to vector<16x128xf32>
    %c1_154 = arith.constant 1 : index
    %c3_155 = arith.constant 3 : index
    %c0_156 = arith.constant 0 : index
    %182 = vector.load %arg2[%c1_154, %c3_155, %c0_156] : memref<8x8x128xf32, #tpu.memory_space<vmem>>, vector<1x1x128xf32>
    %183 = vector.shape_cast %182 : vector<1x1x128xf32> to vector<1x128xf32>
    %184 = vector.broadcast %183 : vector<1x128xf32> to vector<16x128xf32>
    %185 = arith.mulf %181, %184 : vector<16x128xf32>
    %186 = arith.addf %179, %185 : vector<16x128xf32>
    %c2_157 = arith.constant 2 : index
    %c0_158 = arith.constant 0 : index
    %c0_159 = arith.constant 0 : index
    %187 = vector.load %arg1[%c2_157, %c0_158, %c0_159] : memref<8x16x128xf32, #tpu.memory_space<vmem>>, vector<1x16x128xf32>
    %188 = vector.shape_cast %187 : vector<1x16x128xf32> to vector<16x128xf32>
    %c2_160 = arith.constant 2 : index
    %c3_161 = arith.constant 3 : index
    %c0_162 = arith.constant 0 : index
    %189 = vector.load %arg2[%c2_160, %c3_161, %c0_162] : memref<8x8x128xf32, #tpu.memory_space<vmem>>, vector<1x1x128xf32>
    %190 = vector.shape_cast %189 : vector<1x1x128xf32> to vector<1x128xf32>
    %191 = vector.broadcast %190 : vector<1x128xf32> to vector<16x128xf32>
    %192 = arith.mulf %188, %191 : vector<16x128xf32>
    %193 = arith.addf %186, %192 : vector<16x128xf32>
    %c3_163 = arith.constant 3 : index
    %c0_164 = arith.constant 0 : index
    %c0_165 = arith.constant 0 : index
    %194 = vector.load %arg1[%c3_163, %c0_164, %c0_165] : memref<8x16x128xf32, #tpu.memory_space<vmem>>, vector<1x16x128xf32>
    %195 = vector.shape_cast %194 : vector<1x16x128xf32> to vector<16x128xf32>
    %c3_166 = arith.constant 3 : index
    %c3_167 = arith.constant 3 : index
    %c0_168 = arith.constant 0 : index
    %196 = vector.load %arg2[%c3_166, %c3_167, %c0_168] : memref<8x8x128xf32, #tpu.memory_space<vmem>>, vector<1x1x128xf32>
    %197 = vector.shape_cast %196 : vector<1x1x128xf32> to vector<1x128xf32>
    %198 = vector.broadcast %197 : vector<1x128xf32> to vector<16x128xf32>
    %199 = arith.mulf %195, %198 : vector<16x128xf32>
    %200 = arith.addf %193, %199 : vector<16x128xf32>
    %c4_169 = arith.constant 4 : index
    %c0_170 = arith.constant 0 : index
    %c0_171 = arith.constant 0 : index
    %201 = vector.load %arg1[%c4_169, %c0_170, %c0_171] : memref<8x16x128xf32, #tpu.memory_space<vmem>>, vector<1x16x128xf32>
    %202 = vector.shape_cast %201 : vector<1x16x128xf32> to vector<16x128xf32>
    %c4_172 = arith.constant 4 : index
    %c3_173 = arith.constant 3 : index
    %c0_174 = arith.constant 0 : index
    %203 = vector.load %arg2[%c4_172, %c3_173, %c0_174] : memref<8x8x128xf32, #tpu.memory_space<vmem>>, vector<1x1x128xf32>
    %204 = vector.shape_cast %203 : vector<1x1x128xf32> to vector<1x128xf32>
    %205 = vector.broadcast %204 : vector<1x128xf32> to vector<16x128xf32>
    %206 = arith.mulf %202, %205 : vector<16x128xf32>
    %207 = arith.addf %200, %206 : vector<16x128xf32>
    %c5_175 = arith.constant 5 : index
    %c0_176 = arith.constant 0 : index
    %c0_177 = arith.constant 0 : index
    %208 = vector.load %arg1[%c5_175, %c0_176, %c0_177] : memref<8x16x128xf32, #tpu.memory_space<vmem>>, vector<1x16x128xf32>
    %209 = vector.shape_cast %208 : vector<1x16x128xf32> to vector<16x128xf32>
    %c5_178 = arith.constant 5 : index
    %c3_179 = arith.constant 3 : index
    %c0_180 = arith.constant 0 : index
    %210 = vector.load %arg2[%c5_178, %c3_179, %c0_180] : memref<8x8x128xf32, #tpu.memory_space<vmem>>, vector<1x1x128xf32>
    %211 = vector.shape_cast %210 : vector<1x1x128xf32> to vector<1x128xf32>
    %212 = vector.broadcast %211 : vector<1x128xf32> to vector<16x128xf32>
    %213 = arith.mulf %209, %212 : vector<16x128xf32>
    %214 = arith.addf %207, %213 : vector<16x128xf32>
    %c6_181 = arith.constant 6 : index
    %c0_182 = arith.constant 0 : index
    %c0_183 = arith.constant 0 : index
    %215 = vector.load %arg1[%c6_181, %c0_182, %c0_183] : memref<8x16x128xf32, #tpu.memory_space<vmem>>, vector<1x16x128xf32>
    %216 = vector.shape_cast %215 : vector<1x16x128xf32> to vector<16x128xf32>
    %c6_184 = arith.constant 6 : index
    %c3_185 = arith.constant 3 : index
    %c0_186 = arith.constant 0 : index
    %217 = vector.load %arg2[%c6_184, %c3_185, %c0_186] : memref<8x8x128xf32, #tpu.memory_space<vmem>>, vector<1x1x128xf32>
    %218 = vector.shape_cast %217 : vector<1x1x128xf32> to vector<1x128xf32>
    %219 = vector.broadcast %218 : vector<1x128xf32> to vector<16x128xf32>
    %220 = arith.mulf %216, %219 : vector<16x128xf32>
    %221 = arith.addf %214, %220 : vector<16x128xf32>
    %c7_187 = arith.constant 7 : index
    %c0_188 = arith.constant 0 : index
    %c0_189 = arith.constant 0 : index
    %222 = vector.load %arg1[%c7_187, %c0_188, %c0_189] : memref<8x16x128xf32, #tpu.memory_space<vmem>>, vector<1x16x128xf32>
    %223 = vector.shape_cast %222 : vector<1x16x128xf32> to vector<16x128xf32>
    %c7_190 = arith.constant 7 : index
    %c3_191 = arith.constant 3 : index
    %c0_192 = arith.constant 0 : index
    %224 = vector.load %arg2[%c7_190, %c3_191, %c0_192] : memref<8x8x128xf32, #tpu.memory_space<vmem>>, vector<1x1x128xf32>
    %225 = vector.shape_cast %224 : vector<1x1x128xf32> to vector<1x128xf32>
    %226 = vector.broadcast %225 : vector<1x128xf32> to vector<16x128xf32>
    %227 = arith.mulf %223, %226 : vector<16x128xf32>
    %228 = arith.addf %221, %227 : vector<16x128xf32>
    %c3_193 = arith.constant 3 : index
    %c0_194 = arith.constant 0 : index
    %c0_195 = arith.constant 0 : index
    %229 = vector.load %arg3[%c3_193, %c0_194, %c0_195] : memref<8x16x128xf32, #tpu.memory_space<vmem>>, vector<1x16x128xf32>
    %230 = vector.shape_cast %229 : vector<1x16x128xf32> to vector<16x128xf32>
    %231 = vector.shape_cast %228 : vector<16x128xf32> to vector<1x16x128xf32>
    tpu.vector_store %arg3[%c3_193, %c0_194, %c0_195], %231 {strides = array<i32>} : memref<8x16x128xf32, #tpu.memory_space<vmem>>, vector<1x16x128xf32>,
    %c0_196 = arith.constant 0 : index
    %c0_197 = arith.constant 0 : index
    %c0_198 = arith.constant 0 : index
    %232 = vector.load %arg1[%c0_196, %c0_197, %c0_198] : memref<8x16x128xf32, #tpu.memory_space<vmem>>, vector<1x16x128xf32>
    %233 = vector.shape_cast %232 : vector<1x16x128xf32> to vector<16x128xf32>
    %c0_199 = arith.constant 0 : index
    %c4_200 = arith.constant 4 : index
    %c0_201 = arith.constant 0 : index
    %234 = vector.load %arg2[%c0_199, %c4_200, %c0_201] : memref<8x8x128xf32, #tpu.memory_space<vmem>>, vector<1x1x128xf32>
    %235 = vector.shape_cast %234 : vector<1x1x128xf32> to vector<1x128xf32>
    %236 = vector.broadcast %235 : vector<1x128xf32> to vector<16x128xf32>
    %237 = arith.mulf %233, %236 : vector<16x128xf32>
    %c1_202 = arith.constant 1 : index
    %c0_203 = arith.constant 0 : index
    %c0_204 = arith.constant 0 : index
    %238 = vector.load %arg1[%c1_202, %c0_203, %c0_204] : memref<8x16x128xf32, #tpu.memory_space<vmem>>, vector<1x16x128xf32>
    %239 = vector.shape_cast %238 : vector<1x16x128xf32> to vector<16x128xf32>
    %c1_205 = arith.constant 1 : index
    %c4_206 = arith.constant 4 : index
    %c0_207 = arith.constant 0 : index
    %240 = vector.load %arg2[%c1_205, %c4_206, %c0_207] : memref<8x8x128xf32, #tpu.memory_space<vmem>>, vector<1x1x128xf32>
    %241 = vector.shape_cast %240 : vector<1x1x128xf32> to vector<1x128xf32>
    %242 = vector.broadcast %241 : vector<1x128xf32> to vector<16x128xf32>
    %243 = arith.mulf %239, %242 : vector<16x128xf32>
    %244 = arith.addf %237, %243 : vector<16x128xf32>
    %c2_208 = arith.constant 2 : index
    %c0_209 = arith.constant 0 : index
    %c0_210 = arith.constant 0 : index
    %245 = vector.load %arg1[%c2_208, %c0_209, %c0_210] : memref<8x16x128xf32, #tpu.memory_space<vmem>>, vector<1x16x128xf32>
    %246 = vector.shape_cast %245 : vector<1x16x128xf32> to vector<16x128xf32>
    %c2_211 = arith.constant 2 : index
    %c4_212 = arith.constant 4 : index
    %c0_213 = arith.constant 0 : index
    %247 = vector.load %arg2[%c2_211, %c4_212, %c0_213] : memref<8x8x128xf32, #tpu.memory_space<vmem>>, vector<1x1x128xf32>
    %248 = vector.shape_cast %247 : vector<1x1x128xf32> to vector<1x128xf32>
    %249 = vector.broadcast %248 : vector<1x128xf32> to vector<16x128xf32>
    %250 = arith.mulf %246, %249 : vector<16x128xf32>
    %251 = arith.addf %244, %250 : vector<16x128xf32>
    %c3_214 = arith.constant 3 : index
    %c0_215 = arith.constant 0 : index
    %c0_216 = arith.constant 0 : index
    %252 = vector.load %arg1[%c3_214, %c0_215, %c0_216] : memref<8x16x128xf32, #tpu.memory_space<vmem>>, vector<1x16x128xf32>
    %253 = vector.shape_cast %252 : vector<1x16x128xf32> to vector<16x128xf32>
    %c3_217 = arith.constant 3 : index
    %c4_218 = arith.constant 4 : index
    %c0_219 = arith.constant 0 : index
    %254 = vector.load %arg2[%c3_217, %c4_218, %c0_219] : memref<8x8x128xf32, #tpu.memory_space<vmem>>, vector<1x1x128xf32>
    %255 = vector.shape_cast %254 : vector<1x1x128xf32> to vector<1x128xf32>
    %256 = vector.broadcast %255 : vector<1x128xf32> to vector<16x128xf32>
    %257 = arith.mulf %253, %256 : vector<16x128xf32>
    %258 = arith.addf %251, %257 : vector<16x128xf32>
    %c4_220 = arith.constant 4 : index
    %c0_221 = arith.constant 0 : index
    %c0_222 = arith.constant 0 : index
    %259 = vector.load %arg1[%c4_220, %c0_221, %c0_222] : memref<8x16x128xf32, #tpu.memory_space<vmem>>, vector<1x16x128xf32>
    %260 = vector.shape_cast %259 : vector<1x16x128xf32> to vector<16x128xf32>
    %c4_223 = arith.constant 4 : index
    %c4_224 = arith.constant 4 : index
    %c0_225 = arith.constant 0 : index
    %261 = vector.load %arg2[%c4_223, %c4_224, %c0_225] : memref<8x8x128xf32, #tpu.memory_space<vmem>>, vector<1x1x128xf32>
    %262 = vector.shape_cast %261 : vector<1x1x128xf32> to vector<1x128xf32>
    %263 = vector.broadcast %262 : vector<1x128xf32> to vector<16x128xf32>
    %264 = arith.mulf %260, %263 : vector<16x128xf32>
    %265 = arith.addf %258, %264 : vector<16x128xf32>
    %c5_226 = arith.constant 5 : index
    %c0_227 = arith.constant 0 : index
    %c0_228 = arith.constant 0 : index
    %266 = vector.load %arg1[%c5_226, %c0_227, %c0_228] : memref<8x16x128xf32, #tpu.memory_space<vmem>>, vector<1x16x128xf32>
    %267 = vector.shape_cast %266 : vector<1x16x128xf32> to vector<16x128xf32>
    %c5_229 = arith.constant 5 : index
    %c4_230 = arith.constant 4 : index
    %c0_231 = arith.constant 0 : index
    %268 = vector.load %arg2[%c5_229, %c4_230, %c0_231] : memref<8x8x128xf32, #tpu.memory_space<vmem>>, vector<1x1x128xf32>
    %269 = vector.shape_cast %268 : vector<1x1x128xf32> to vector<1x128xf32>
    %270 = vector.broadcast %269 : vector<1x128xf32> to vector<16x128xf32>
    %271 = arith.mulf %267, %270 : vector<16x128xf32>
    %272 = arith.addf %265, %271 : vector<16x128xf32>
    %c6_232 = arith.constant 6 : index
    %c0_233 = arith.constant 0 : index
    %c0_234 = arith.constant 0 : index
    %273 = vector.load %arg1[%c6_232, %c0_233, %c0_234] : memref<8x16x128xf32, #tpu.memory_space<vmem>>, vector<1x16x128xf32>
    %274 = vector.shape_cast %273 : vector<1x16x128xf32> to vector<16x128xf32>
    %c6_235 = arith.constant 6 : index
    %c4_236 = arith.constant 4 : index
    %c0_237 = arith.constant 0 : index
    %275 = vector.load %arg2[%c6_235, %c4_236, %c0_237] : memref<8x8x128xf32, #tpu.memory_space<vmem>>, vector<1x1x128xf32>
    %276 = vector.shape_cast %275 : vector<1x1x128xf32> to vector<1x128xf32>
    %277 = vector.broadcast %276 : vector<1x128xf32> to vector<16x128xf32>
    %278 = arith.mulf %274, %277 : vector<16x128xf32>
    %279 = arith.addf %272, %278 : vector<16x128xf32>
    %c7_238 = arith.constant 7 : index
    %c0_239 = arith.constant 0 : index
    %c0_240 = arith.constant 0 : index
    %280 = vector.load %arg1[%c7_238, %c0_239, %c0_240] : memref<8x16x128xf32, #tpu.memory_space<vmem>>, vector<1x16x128xf32>
    %281 = vector.shape_cast %280 : vector<1x16x128xf32> to vector<16x128xf32>
    %c7_241 = arith.constant 7 : index
    %c4_242 = arith.constant 4 : index
    %c0_243 = arith.constant 0 : index
    %282 = vector.load %arg2[%c7_241, %c4_242, %c0_243] : memref<8x8x128xf32, #tpu.memory_space<vmem>>, vector<1x1x128xf32>
    %283 = vector.shape_cast %282 : vector<1x1x128xf32> to vector<1x128xf32>
    %284 = vector.broadcast %283 : vector<1x128xf32> to vector<16x128xf32>
    %285 = arith.mulf %281, %284 : vector<16x128xf32>
    %286 = arith.addf %279, %285 : vector<16x128xf32>
    %c4_244 = arith.constant 4 : index
    %c0_245 = arith.constant 0 : index
    %c0_246 = arith.constant 0 : index
    %287 = vector.load %arg3[%c4_244, %c0_245, %c0_246] : memref<8x16x128xf32, #tpu.memory_space<vmem>>, vector<1x16x128xf32>
    %288 = vector.shape_cast %287 : vector<1x16x128xf32> to vector<16x128xf32>
    %289 = vector.shape_cast %286 : vector<16x128xf32> to vector<1x16x128xf32>
    tpu.vector_store %arg3[%c4_244, %c0_245, %c0_246], %289 {strides = array<i32>} : memref<8x16x128xf32, #tpu.memory_space<vmem>>, vector<1x16x128xf32>,
    %c0_247 = arith.constant 0 : index
    %c0_248 = arith.constant 0 : index
    %c0_249 = arith.constant 0 : index
    %290 = vector.load %arg1[%c0_247, %c0_248, %c0_249] : memref<8x16x128xf32, #tpu.memory_space<vmem>>, vector<1x16x128xf32>
    %291 = vector.shape_cast %290 : vector<1x16x128xf32> to vector<16x128xf32>
    %c0_250 = arith.constant 0 : index
    %c5_251 = arith.constant 5 : index
    %c0_252 = arith.constant 0 : index
    %292 = vector.load %arg2[%c0_250, %c5_251, %c0_252] : memref<8x8x128xf32, #tpu.memory_space<vmem>>, vector<1x1x128xf32>
    %293 = vector.shape_cast %292 : vector<1x1x128xf32> to vector<1x128xf32>
    %294 = vector.broadcast %293 : vector<1x128xf32> to vector<16x128xf32>
    %295 = arith.mulf %291, %294 : vector<16x128xf32>
    %c1_253 = arith.constant 1 : index
    %c0_254 = arith.constant 0 : index
    %c0_255 = arith.constant 0 : index
    %296 = vector.load %arg1[%c1_253, %c0_254, %c0_255] : memref<8x16x128xf32, #tpu.memory_space<vmem>>, vector<1x16x128xf32>
    %297 = vector.shape_cast %296 : vector<1x16x128xf32> to vector<16x128xf32>
    %c1_256 = arith.constant 1 : index
    %c5_257 = arith.constant 5 : index
    %c0_258 = arith.constant 0 : index
    %298 = vector.load %arg2[%c1_256, %c5_257, %c0_258] : memref<8x8x128xf32, #tpu.memory_space<vmem>>, vector<1x1x128xf32>
    %299 = vector.shape_cast %298 : vector<1x1x128xf32> to vector<1x128xf32>
    %300 = vector.broadcast %299 : vector<1x128xf32> to vector<16x128xf32>
    %301 = arith.mulf %297, %300 : vector<16x128xf32>
    %302 = arith.addf %295, %301 : vector<16x128xf32>
    %c2_259 = arith.constant 2 : index
    %c0_260 = arith.constant 0 : index
    %c0_261 = arith.constant 0 : index
    %303 = vector.load %arg1[%c2_259, %c0_260, %c0_261] : memref<8x16x128xf32, #tpu.memory_space<vmem>>, vector<1x16x128xf32>
    %304 = vector.shape_cast %303 : vector<1x16x128xf32> to vector<16x128xf32>
    %c2_262 = arith.constant 2 : index
    %c5_263 = arith.constant 5 : index
    %c0_264 = arith.constant 0 : index
    %305 = vector.load %arg2[%c2_262, %c5_263, %c0_264] : memref<8x8x128xf32, #tpu.memory_space<vmem>>, vector<1x1x128xf32>
    %306 = vector.shape_cast %305 : vector<1x1x128xf32> to vector<1x128xf32>
    %307 = vector.broadcast %306 : vector<1x128xf32> to vector<16x128xf32>
    %308 = arith.mulf %304, %307 : vector<16x128xf32>
    %309 = arith.addf %302, %308 : vector<16x128xf32>
    %c3_265 = arith.constant 3 : index
    %c0_266 = arith.constant 0 : index
    %c0_267 = arith.constant 0 : index
    %310 = vector.load %arg1[%c3_265, %c0_266, %c0_267] : memref<8x16x128xf32, #tpu.memory_space<vmem>>, vector<1x16x128xf32>
    %311 = vector.shape_cast %310 : vector<1x16x128xf32> to vector<16x128xf32>
    %c3_268 = arith.constant 3 : index
    %c5_269 = arith.constant 5 : index
    %c0_270 = arith.constant 0 : index
    %312 = vector.load %arg2[%c3_268, %c5_269, %c0_270] : memref<8x8x128xf32, #tpu.memory_space<vmem>>, vector<1x1x128xf32>
    %313 = vector.shape_cast %312 : vector<1x1x128xf32> to vector<1x128xf32>
    %314 = vector.broadcast %313 : vector<1x128xf32> to vector<16x128xf32>
    %315 = arith.mulf %311, %314 : vector<16x128xf32>
    %316 = arith.addf %309, %315 : vector<16x128xf32>
    %c4_271 = arith.constant 4 : index
    %c0_272 = arith.constant 0 : index
    %c0_273 = arith.constant 0 : index
    %317 = vector.load %arg1[%c4_271, %c0_272, %c0_273] : memref<8x16x128xf32, #tpu.memory_space<vmem>>, vector<1x16x128xf32>
    %318 = vector.shape_cast %317 : vector<1x16x128xf32> to vector<16x128xf32>
    %c4_274 = arith.constant 4 : index
    %c5_275 = arith.constant 5 : index
    %c0_276 = arith.constant 0 : index
    %319 = vector.load %arg2[%c4_274, %c5_275, %c0_276] : memref<8x8x128xf32, #tpu.memory_space<vmem>>, vector<1x1x128xf32>
    %320 = vector.shape_cast %319 : vector<1x1x128xf32> to vector<1x128xf32>
    %321 = vector.broadcast %320 : vector<1x128xf32> to vector<16x128xf32>
    %322 = arith.mulf %318, %321 : vector<16x128xf32>
    %323 = arith.addf %316, %322 : vector<16x128xf32>
    %c5_277 = arith.constant 5 : index
    %c0_278 = arith.constant 0 : index
    %c0_279 = arith.constant 0 : index
    %324 = vector.load %arg1[%c5_277, %c0_278, %c0_279] : memref<8x16x128xf32, #tpu.memory_space<vmem>>, vector<1x16x128xf32>
    %325 = vector.shape_cast %324 : vector<1x16x128xf32> to vector<16x128xf32>
    %c5_280 = arith.constant 5 : index
    %c5_281 = arith.constant 5 : index
    %c0_282 = arith.constant 0 : index
    %326 = vector.load %arg2[%c5_280, %c5_281, %c0_282] : memref<8x8x128xf32, #tpu.memory_space<vmem>>, vector<1x1x128xf32>
    %327 = vector.shape_cast %326 : vector<1x1x128xf32> to vector<1x128xf32>
    %328 = vector.broadcast %327 : vector<1x128xf32> to vector<16x128xf32>
    %329 = arith.mulf %325, %328 : vector<16x128xf32>
    %330 = arith.addf %323, %329 : vector<16x128xf32>
    %c6_283 = arith.constant 6 : index
    %c0_284 = arith.constant 0 : index
    %c0_285 = arith.constant 0 : index
    %331 = vector.load %arg1[%c6_283, %c0_284, %c0_285] : memref<8x16x128xf32, #tpu.memory_space<vmem>>, vector<1x16x128xf32>
    %332 = vector.shape_cast %331 : vector<1x16x128xf32> to vector<16x128xf32>
    %c6_286 = arith.constant 6 : index
    %c5_287 = arith.constant 5 : index
    %c0_288 = arith.constant 0 : index
    %333 = vector.load %arg2[%c6_286, %c5_287, %c0_288] : memref<8x8x128xf32, #tpu.memory_space<vmem>>, vector<1x1x128xf32>
    %334 = vector.shape_cast %333 : vector<1x1x128xf32> to vector<1x128xf32>
    %335 = vector.broadcast %334 : vector<1x128xf32> to vector<16x128xf32>
    %336 = arith.mulf %332, %335 : vector<16x128xf32>
    %337 = arith.addf %330, %336 : vector<16x128xf32>
    %c7_289 = arith.constant 7 : index
    %c0_290 = arith.constant 0 : index
    %c0_291 = arith.constant 0 : index
    %338 = vector.load %arg1[%c7_289, %c0_290, %c0_291] : memref<8x16x128xf32, #tpu.memory_space<vmem>>, vector<1x16x128xf32>
    %339 = vector.shape_cast %338 : vector<1x16x128xf32> to vector<16x128xf32>
    %c7_292 = arith.constant 7 : index
    %c5_293 = arith.constant 5 : index
    %c0_294 = arith.constant 0 : index
    %340 = vector.load %arg2[%c7_292, %c5_293, %c0_294] : memref<8x8x128xf32, #tpu.memory_space<vmem>>, vector<1x1x128xf32>
    %341 = vector.shape_cast %340 : vector<1x1x128xf32> to vector<1x128xf32>
    %342 = vector.broadcast %341 : vector<1x128xf32> to vector<16x128xf32>
    %343 = arith.mulf %339, %342 : vector<16x128xf32>
    %344 = arith.addf %337, %343 : vector<16x128xf32>
    %c5_295 = arith.constant 5 : index
    %c0_296 = arith.constant 0 : index
    %c0_297 = arith.constant 0 : index
    %345 = vector.load %arg3[%c5_295, %c0_296, %c0_297] : memref<8x16x128xf32, #tpu.memory_space<vmem>>, vector<1x16x128xf32>
    %346 = vector.shape_cast %345 : vector<1x16x128xf32> to vector<16x128xf32>
    %347 = vector.shape_cast %344 : vector<16x128xf32> to vector<1x16x128xf32>
    tpu.vector_store %arg3[%c5_295, %c0_296, %c0_297], %347 {strides = array<i32>} : memref<8x16x128xf32, #tpu.memory_space<vmem>>, vector<1x16x128xf32>,
    %c0_298 = arith.constant 0 : index
    %c0_299 = arith.constant 0 : index
    %c0_300 = arith.constant 0 : index
    %348 = vector.load %arg1[%c0_298, %c0_299, %c0_300] : memref<8x16x128xf32, #tpu.memory_space<vmem>>, vector<1x16x128xf32>
    %349 = vector.shape_cast %348 : vector<1x16x128xf32> to vector<16x128xf32>
    %c0_301 = arith.constant 0 : index
    %c6_302 = arith.constant 6 : index
    %c0_303 = arith.constant 0 : index
    %350 = vector.load %arg2[%c0_301, %c6_302, %c0_303] : memref<8x8x128xf32, #tpu.memory_space<vmem>>, vector<1x1x128xf32>
    %351 = vector.shape_cast %350 : vector<1x1x128xf32> to vector<1x128xf32>
    %352 = vector.broadcast %351 : vector<1x128xf32> to vector<16x128xf32>
    %353 = arith.mulf %349, %352 : vector<16x128xf32>
    %c1_304 = arith.constant 1 : index
    %c0_305 = arith.constant 0 : index
    %c0_306 = arith.constant 0 : index
    %354 = vector.load %arg1[%c1_304, %c0_305, %c0_306] : memref<8x16x128xf32, #tpu.memory_space<vmem>>, vector<1x16x128xf32>
    %355 = vector.shape_cast %354 : vector<1x16x128xf32> to vector<16x128xf32>
    %c1_307 = arith.constant 1 : index
    %c6_308 = arith.constant 6 : index
    %c0_309 = arith.constant 0 : index
    %356 = vector.load %arg2[%c1_307, %c6_308, %c0_309] : memref<8x8x128xf32, #tpu.memory_space<vmem>>, vector<1x1x128xf32>
    %357 = vector.shape_cast %356 : vector<1x1x128xf32> to vector<1x128xf32>
    %358 = vector.broadcast %357 : vector<1x128xf32> to vector<16x128xf32>
    %359 = arith.mulf %355, %358 : vector<16x128xf32>
    %360 = arith.addf %353, %359 : vector<16x128xf32>
    %c2_310 = arith.constant 2 : index
    %c0_311 = arith.constant 0 : index
    %c0_312 = arith.constant 0 : index
    %361 = vector.load %arg1[%c2_310, %c0_311, %c0_312] : memref<8x16x128xf32, #tpu.memory_space<vmem>>, vector<1x16x128xf32>
    %362 = vector.shape_cast %361 : vector<1x16x128xf32> to vector<16x128xf32>
    %c2_313 = arith.constant 2 : index
    %c6_314 = arith.constant 6 : index
    %c0_315 = arith.constant 0 : index
    %363 = vector.load %arg2[%c2_313, %c6_314, %c0_315] : memref<8x8x128xf32, #tpu.memory_space<vmem>>, vector<1x1x128xf32>
    %364 = vector.shape_cast %363 : vector<1x1x128xf32> to vector<1x128xf32>
    %365 = vector.broadcast %364 : vector<1x128xf32> to vector<16x128xf32>
    %366 = arith.mulf %362, %365 : vector<16x128xf32>
    %367 = arith.addf %360, %366 : vector<16x128xf32>
    %c3_316 = arith.constant 3 : index
    %c0_317 = arith.constant 0 : index
    %c0_318 = arith.constant 0 : index
    %368 = vector.load %arg1[%c3_316, %c0_317, %c0_318] : memref<8x16x128xf32, #tpu.memory_space<vmem>>, vector<1x16x128xf32>
    %369 = vector.shape_cast %368 : vector<1x16x128xf32> to vector<16x128xf32>
    %c3_319 = arith.constant 3 : index
    %c6_320 = arith.constant 6 : index
    %c0_321 = arith.constant 0 : index
    %370 = vector.load %arg2[%c3_319, %c6_320, %c0_321] : memref<8x8x128xf32, #tpu.memory_space<vmem>>, vector<1x1x128xf32>
    %371 = vector.shape_cast %370 : vector<1x1x128xf32> to vector<1x128xf32>
    %372 = vector.broadcast %371 : vector<1x128xf32> to vector<16x128xf32>
    %373 = arith.mulf %369, %372 : vector<16x128xf32>
    %374 = arith.addf %367, %373 : vector<16x128xf32>
    %c4_322 = arith.constant 4 : index
    %c0_323 = arith.constant 0 : index
    %c0_324 = arith.constant 0 : index
    %375 = vector.load %arg1[%c4_322, %c0_323, %c0_324] : memref<8x16x128xf32, #tpu.memory_space<vmem>>, vector<1x16x128xf32>
    %376 = vector.shape_cast %375 : vector<1x16x128xf32> to vector<16x128xf32>
    %c4_325 = arith.constant 4 : index
    %c6_326 = arith.constant 6 : index
    %c0_327 = arith.constant 0 : index
    %377 = vector.load %arg2[%c4_325, %c6_326, %c0_327] : memref<8x8x128xf32, #tpu.memory_space<vmem>>, vector<1x1x128xf32>
    %378 = vector.shape_cast %377 : vector<1x1x128xf32> to vector<1x128xf32>
    %379 = vector.broadcast %378 : vector<1x128xf32> to vector<16x128xf32>
    %380 = arith.mulf %376, %379 : vector<16x128xf32>
    %381 = arith.addf %374, %380 : vector<16x128xf32>
    %c5_328 = arith.constant 5 : index
    %c0_329 = arith.constant 0 : index
    %c0_330 = arith.constant 0 : index
    %382 = vector.load %arg1[%c5_328, %c0_329, %c0_330] : memref<8x16x128xf32, #tpu.memory_space<vmem>>, vector<1x16x128xf32>
    %383 = vector.shape_cast %382 : vector<1x16x128xf32> to vector<16x128xf32>
    %c5_331 = arith.constant 5 : index
    %c6_332 = arith.constant 6 : index
    %c0_333 = arith.constant 0 : index
    %384 = vector.load %arg2[%c5_331, %c6_332, %c0_333] : memref<8x8x128xf32, #tpu.memory_space<vmem>>, vector<1x1x128xf32>
    %385 = vector.shape_cast %384 : vector<1x1x128xf32> to vector<1x128xf32>
    %386 = vector.broadcast %385 : vector<1x128xf32> to vector<16x128xf32>
    %387 = arith.mulf %383, %386 : vector<16x128xf32>
    %388 = arith.addf %381, %387 : vector<16x128xf32>
    %c6_334 = arith.constant 6 : index
    %c0_335 = arith.constant 0 : index
    %c0_336 = arith.constant 0 : index
    %389 = vector.load %arg1[%c6_334, %c0_335, %c0_336] : memref<8x16x128xf32, #tpu.memory_space<vmem>>, vector<1x16x128xf32>
    %390 = vector.shape_cast %389 : vector<1x16x128xf32> to vector<16x128xf32>
    %c6_337 = arith.constant 6 : index
    %c6_338 = arith.constant 6 : index
    %c0_339 = arith.constant 0 : index
    %391 = vector.load %arg2[%c6_337, %c6_338, %c0_339] : memref<8x8x128xf32, #tpu.memory_space<vmem>>, vector<1x1x128xf32>
    %392 = vector.shape_cast %391 : vector<1x1x128xf32> to vector<1x128xf32>
    %393 = vector.broadcast %392 : vector<1x128xf32> to vector<16x128xf32>
    %394 = arith.mulf %390, %393 : vector<16x128xf32>
    %395 = arith.addf %388, %394 : vector<16x128xf32>
    %c7_340 = arith.constant 7 : index
    %c0_341 = arith.constant 0 : index
    %c0_342 = arith.constant 0 : index
    %396 = vector.load %arg1[%c7_340, %c0_341, %c0_342] : memref<8x16x128xf32, #tpu.memory_space<vmem>>, vector<1x16x128xf32>
    %397 = vector.shape_cast %396 : vector<1x16x128xf32> to vector<16x128xf32>
    %c7_343 = arith.constant 7 : index
    %c6_344 = arith.constant 6 : index
    %c0_345 = arith.constant 0 : index
    %398 = vector.load %arg2[%c7_343, %c6_344, %c0_345] : memref<8x8x128xf32, #tpu.memory_space<vmem>>, vector<1x1x128xf32>
    %399 = vector.shape_cast %398 : vector<1x1x128xf32> to vector<1x128xf32>
    %400 = vector.broadcast %399 : vector<1x128xf32> to vector<16x128xf32>
    %401 = arith.mulf %397, %400 : vector<16x128xf32>
    %402 = arith.addf %395, %401 : vector<16x128xf32>
    %c6_346 = arith.constant 6 : index
    %c0_347 = arith.constant 0 : index
    %c0_348 = arith.constant 0 : index
    %403 = vector.load %arg3[%c6_346, %c0_347, %c0_348] : memref<8x16x128xf32, #tpu.memory_space<vmem>>, vector<1x16x128xf32>
    %404 = vector.shape_cast %403 : vector<1x16x128xf32> to vector<16x128xf32>
    %405 = vector.shape_cast %402 : vector<16x128xf32> to vector<1x16x128xf32>
    tpu.vector_store %arg3[%c6_346, %c0_347, %c0_348], %405 {strides = array<i32>} : memref<8x16x128xf32, #tpu.memory_space<vmem>>, vector<1x16x128xf32>,
    %c0_349 = arith.constant 0 : index
    %c0_350 = arith.constant 0 : index
    %c0_351 = arith.constant 0 : index
    %406 = vector.load %arg1[%c0_349, %c0_350, %c0_351] : memref<8x16x128xf32, #tpu.memory_space<vmem>>, vector<1x16x128xf32>
    %407 = vector.shape_cast %406 : vector<1x16x128xf32> to vector<16x128xf32>
    %c0_352 = arith.constant 0 : index
    %c7_353 = arith.constant 7 : index
    %c0_354 = arith.constant 0 : index
    %408 = vector.load %arg2[%c0_352, %c7_353, %c0_354] : memref<8x8x128xf32, #tpu.memory_space<vmem>>, vector<1x1x128xf32>
    %409 = vector.shape_cast %408 : vector<1x1x128xf32> to vector<1x128xf32>
    %410 = vector.broadcast %409 : vector<1x128xf32> to vector<16x128xf32>
    %411 = arith.mulf %407, %410 : vector<16x128xf32>
    %c1_355 = arith.constant 1 : index
    %c0_356 = arith.constant 0 : index
    %c0_357 = arith.constant 0 : index
    %412 = vector.load %arg1[%c1_355, %c0_356, %c0_357] : memref<8x16x128xf32, #tpu.memory_space<vmem>>, vector<1x16x128xf32>
    %413 = vector.shape_cast %412 : vector<1x16x128xf32> to vector<16x128xf32>
    %c1_358 = arith.constant 1 : index
    %c7_359 = arith.constant 7 : index
    %c0_360 = arith.constant 0 : index
    %414 = vector.load %arg2[%c1_358, %c7_359, %c0_360] : memref<8x8x128xf32, #tpu.memory_space<vmem>>, vector<1x1x128xf32>
    %415 = vector.shape_cast %414 : vector<1x1x128xf32> to vector<1x128xf32>
    %416 = vector.broadcast %415 : vector<1x128xf32> to vector<16x128xf32>
    %417 = arith.mulf %413, %416 : vector<16x128xf32>
    %418 = arith.addf %411, %417 : vector<16x128xf32>
    %c2_361 = arith.constant 2 : index
    %c0_362 = arith.constant 0 : index
    %c0_363 = arith.constant 0 : index
    %419 = vector.load %arg1[%c2_361, %c0_362, %c0_363] : memref<8x16x128xf32, #tpu.memory_space<vmem>>, vector<1x16x128xf32>
    %420 = vector.shape_cast %419 : vector<1x16x128xf32> to vector<16x128xf32>
    %c2_364 = arith.constant 2 : index
    %c7_365 = arith.constant 7 : index
    %c0_366 = arith.constant 0 : index
    %421 = vector.load %arg2[%c2_364, %c7_365, %c0_366] : memref<8x8x128xf32, #tpu.memory_space<vmem>>, vector<1x1x128xf32>
    %422 = vector.shape_cast %421 : vector<1x1x128xf32> to vector<1x128xf32>
    %423 = vector.broadcast %422 : vector<1x128xf32> to vector<16x128xf32>
    %424 = arith.mulf %420, %423 : vector<16x128xf32>
    %425 = arith.addf %418, %424 : vector<16x128xf32>
    %c3_367 = arith.constant 3 : index
    %c0_368 = arith.constant 0 : index
    %c0_369 = arith.constant 0 : index
    %426 = vector.load %arg1[%c3_367, %c0_368, %c0_369] : memref<8x16x128xf32, #tpu.memory_space<vmem>>, vector<1x16x128xf32>
    %427 = vector.shape_cast %426 : vector<1x16x128xf32> to vector<16x128xf32>
    %c3_370 = arith.constant 3 : index
    %c7_371 = arith.constant 7 : index
    %c0_372 = arith.constant 0 : index
    %428 = vector.load %arg2[%c3_370, %c7_371, %c0_372] : memref<8x8x128xf32, #tpu.memory_space<vmem>>, vector<1x1x128xf32>
    %429 = vector.shape_cast %428 : vector<1x1x128xf32> to vector<1x128xf32>
    %430 = vector.broadcast %429 : vector<1x128xf32> to vector<16x128xf32>
    %431 = arith.mulf %427, %430 : vector<16x128xf32>
    %432 = arith.addf %425, %431 : vector<16x128xf32>
    %c4_373 = arith.constant 4 : index
    %c0_374 = arith.constant 0 : index
    %c0_375 = arith.constant 0 : index
    %433 = vector.load %arg1[%c4_373, %c0_374, %c0_375] : memref<8x16x128xf32, #tpu.memory_space<vmem>>, vector<1x16x128xf32>
    %434 = vector.shape_cast %433 : vector<1x16x128xf32> to vector<16x128xf32>
    %c4_376 = arith.constant 4 : index
    %c7_377 = arith.constant 7 : index
    %c0_378 = arith.constant 0 : index
    %435 = vector.load %arg2[%c4_376, %c7_377, %c0_378] : memref<8x8x128xf32, #tpu.memory_space<vmem>>, vector<1x1x128xf32>
    %436 = vector.shape_cast %435 : vector<1x1x128xf32> to vector<1x128xf32>
    %437 = vector.broadcast %436 : vector<1x128xf32> to vector<16x128xf32>
    %438 = arith.mulf %434, %437 : vector<16x128xf32>
    %439 = arith.addf %432, %438 : vector<16x128xf32>
    %c5_379 = arith.constant 5 : index
    %c0_380 = arith.constant 0 : index
    %c0_381 = arith.constant 0 : index
    %440 = vector.load %arg1[%c5_379, %c0_380, %c0_381] : memref<8x16x128xf32, #tpu.memory_space<vmem>>, vector<1x16x128xf32>
    %441 = vector.shape_cast %440 : vector<1x16x128xf32> to vector<16x128xf32>
    %c5_382 = arith.constant 5 : index
    %c7_383 = arith.constant 7 : index
    %c0_384 = arith.constant 0 : index
    %442 = vector.load %arg2[%c5_382, %c7_383, %c0_384] : memref<8x8x128xf32, #tpu.memory_space<vmem>>, vector<1x1x128xf32>
    %443 = vector.shape_cast %442 : vector<1x1x128xf32> to vector<1x128xf32>
    %444 = vector.broadcast %443 : vector<1x128xf32> to vector<16x128xf32>
    %445 = arith.mulf %441, %444 : vector<16x128xf32>
    %446 = arith.addf %439, %445 : vector<16x128xf32>
    %c6_385 = arith.constant 6 : index
    %c0_386 = arith.constant 0 : index
    %c0_387 = arith.constant 0 : index
    %447 = vector.load %arg1[%c6_385, %c0_386, %c0_387] : memref<8x16x128xf32, #tpu.memory_space<vmem>>, vector<1x16x128xf32>
    %448 = vector.shape_cast %447 : vector<1x16x128xf32> to vector<16x128xf32>
    %c6_388 = arith.constant 6 : index
    %c7_389 = arith.constant 7 : index
    %c0_390 = arith.constant 0 : index
    %449 = vector.load %arg2[%c6_388, %c7_389, %c0_390] : memref<8x8x128xf32, #tpu.memory_space<vmem>>, vector<1x1x128xf32>
    %450 = vector.shape_cast %449 : vector<1x1x128xf32> to vector<1x128xf32>
    %451 = vector.broadcast %450 : vector<1x128xf32> to vector<16x128xf32>
    %452 = arith.mulf %448, %451 : vector<16x128xf32>
    %453 = arith.addf %446, %452 : vector<16x128xf32>
    %c7_391 = arith.constant 7 : index
    %c0_392 = arith.constant 0 : index
    %c0_393 = arith.constant 0 : index
    %454 = vector.load %arg1[%c7_391, %c0_392, %c0_393] : memref<8x16x128xf32, #tpu.memory_space<vmem>>, vector<1x16x128xf32>
    %455 = vector.shape_cast %454 : vector<1x16x128xf32> to vector<16x128xf32>
    %c7_394 = arith.constant 7 : index
    %c7_395 = arith.constant 7 : index
    %c0_396 = arith.constant 0 : index
    %456 = vector.load %arg2[%c7_394, %c7_395, %c0_396] : memref<8x8x128xf32, #tpu.memory_space<vmem>>, vector<1x1x128xf32>
    %457 = vector.shape_cast %456 : vector<1x1x128xf32> to vector<1x128xf32>
    %458 = vector.broadcast %457 : vector<1x128xf32> to vector<16x128xf32>
    %459 = arith.mulf %455, %458 : vector<16x128xf32>
    %460 = arith.addf %453, %459 : vector<16x128xf32>
    %c7_397 = arith.constant 7 : index
    %c0_398 = arith.constant 0 : index
    %c0_399 = arith.constant 0 : index
    %461 = vector.load %arg3[%c7_397, %c0_398, %c0_399] : memref<8x16x128xf32, #tpu.memory_space<vmem>>, vector<1x16x128xf32>
    %462 = vector.shape_cast %461 : vector<1x16x128xf32> to vector<16x128xf32>
    %463 = vector.shape_cast %460 : vector<16x128xf32> to vector<1x16x128xf32>
    tpu.vector_store %arg3[%c7_397, %c0_398, %c0_399], %463 {strides = array<i32>} : memref<8x16x128xf32, #tpu.memory_space<vmem>>, vector<1x16x128xf32>,
    return
  }
  func.func @transform_0(%arg0: i32) -> (i32, i32, i32) {
    %c0_i32 = arith.constant 0 : i32
    %c0_i32_0 = arith.constant 0 : i32
    %c0_i32_1 = arith.constant 0 : i32
    return %c0_i32, %c0_i32_0, %arg0 : i32, i32, i32
  }
  func.func @transform_1(%arg0: i32) -> (i32, i32, i32) {
    %c0_i32 = arith.constant 0 : i32
    %c0_i32_0 = arith.constant 0 : i32
    %c0_i32_1 = arith.constant 0 : i32
    return %c0_i32, %c0_i32_0, %arg0 : i32, i32, i32
  }
  func.func @transform_2(%arg0: i32) -> (i32, i32, i32) {
    %c0_i32 = arith.constant 0 : i32
    %c0_i32_0 = arith.constant 0 : i32
    %c0_i32_1 = arith.constant 0 : i32
    return %c0_i32, %c0_i32_0, %arg0 : i32, i32, i32
  }
}

</mosaic_0001>

<llo_original>
// kernel: sub.7
$region0: #{sub.7}
  #allocation4 [shape = 's32[1]{0}', space=sflag, size = 0x4, scoped, tag = 'scoped memory for sub.7']
  %s0 = inlined_call_operand.hbm [shape: f32[4,16,8], index: 0, kind: input, shape index: {}]
  %s1 = inlined_call_operand.hbm [shape: f32[4,16,8], index: 1, kind: input, shape index: {}]
  %s2 = inlined_call_operand.vmem [shape: f32[4,16,8], index: 2, kind: output, shape index: {}]
  $region1: #{sub.7} parent=0
    #allocation0 [shape = 'u8[16384]{0}', space=vmem, size = 0x4000, scoped, tag = 'operand span for operand 0']
    #allocation1 [shape = 's32[1]{0}', space=sflag, size = 0x4, scoped, tag = 'scoped memory for sub.7']
    #allocation2 [shape = 'u8[16384]{0}', space=vmem, size = 0x4000, scoped, tag = 'operand span for operand 1']
    #allocation3 [shape = 's32[1]{0}', space=sflag, size = 0x4, scoped, tag = 'scoped memory for sub.7']
    %3 = vsyncpa [#allocation1], 0
    %4 = vsyncpa [#allocation3], 0
    %s6 = ssub.s32 512, 512
    %7 = vsyncadd [#allocation1], %s6
    %s8 = sshll.u32 [#allocation0], 4
    %s9 = int_to_ptr.vmem [resolvable:$true] %s8
    %14 = dma.hbm_to_vmem [thread:$0]  %s0, 512, %s9, [#allocation1], 128, 128, 8
    %s16 = ssub.s32 512, 512
    %17 = vsyncadd [#allocation3], %s16
    %s18 = sshll.u32 [#allocation2], 4
    %s19 = int_to_ptr.vmem [resolvable:$true] %s18
    %24 = dma.hbm_to_vmem [thread:$0]  %s1, 512, %s19, [#allocation3], 128, 128, 8
    %25 = dma.done [#allocation1], 512
    %26 = dma.done [#allocation3], 512
    %v27 = vld [vmem:[#allocation0] sm:$0xff]
    %v28 = vld [vmem:[#allocation2] sm:$0xff]
    %29 = xla_tuple %v27, %v28
    %30 = xla_tuple %29
    %v31 = vsub.f32 %v27, %v28
    %32 = xla_tuple %v31
    %33 = vst [vmem:[%s2] sm:$0xff] %v31
    %s34 = scalar_lea.vmem [#allocation0], 8
    %v35 = vld [vmem:[%s34] sm:$0xff]
    %s36 = scalar_lea.vmem [#allocation2], 8
    %v37 = vld [vmem:[%s36] sm:$0xff]
    %38 = xla_tuple %v35, %v37
    %39 = xla_tuple %38
    %v40 = vsub.f32 %v35, %v37
    %41 = xla_tuple %v40
    %s42 = scalar_lea.vmem %s2, 8
    %43 = vst [vmem:[%s42] sm:$0xff] %v40
    %s44 = scalar_lea.vmem [#allocation0], 16
    %v45 = vld [vmem:[%s44] sm:$0xff]
    %s46 = scalar_lea.vmem [#allocation2], 16
    %v47 = vld [vmem:[%s46] sm:$0xff]
    %48 = xla_tuple %v45, %v47
    %49 = xla_tuple %48
    %v50 = vsub.f32 %v45, %v47
    %51 = xla_tuple %v50
    %s52 = scalar_lea.vmem %s2, 16
    %53 = vst [vmem:[%s52] sm:$0xff] %v50
    %s54 = scalar_lea.vmem [#allocation0], 24
    %v55 = vld [vmem:[%s54] sm:$0xff]
    %s56 = scalar_lea.vmem [#allocation2], 24
    %v57 = vld [vmem:[%s56] sm:$0xff]
    %58 = xla_tuple %v55, %v57
    %59 = xla_tuple %58
    %v60 = vsub.f32 %v55, %v57
    %61 = xla_tuple %v60
    %s62 = scalar_lea.vmem %s2, 24
    %63 = vst [vmem:[%s62] sm:$0xff] %v60
    %64 = vsyncpa [#allocation1], 1
    %65 = vsyncpa [#allocation3], 1

// kernel: custom-call.36
$region0: #{custom-call.36}
  %s0 = inlined_call_operand.vmem [shape: f32[4,16,8], index: 0, kind: input, shape index: {}]
  %s1 = inlined_call_operand.vmem [shape: f32[4,16,8], index: 1, kind: output, shape index: {0}]
  %s2 = inlined_call_operand.vmem [shape: f32[4,8], index: 2, kind: output, shape index: {1}]
  %3 = xla_tuple %s1, %s2
  $region1: #{custom-call.36} parent=0
    #allocation0 [shape = 'u8[16384]{0}', space=vmem, size = 0x4000, scoped, tag = 'operand span for operand 0']
    #allocation1 [shape = 'u8[16384]{0}', space=vmem, size = 0x4000, scoped, tag = 'operand span for operand 1']
    #allocation2 [shape = 'u8[4096]{0}', space=vmem, size = 0x1000, scoped, tag = 'operand span for operand 2']
    #allocation3 [shape = 'u8[4096]{0}', space=vmem, size = 0x1000, scoped, tag = 'packed  for operand 2']
    loop: start=0, step=1, limit=6
    $region2: #{custom-call.36} parent=1 // loop_pre_header
      _
    $region3: #{custom-call.36} parent=1 // loop_header
      %s5 = sphi 0, %s9
      %p6 = scmp.ge.s32.totalorder %s5, 6
      %s12 = sphi 0, %s31
      %s13 = sphi 0, %s27
      %s14 = sphi 0, %s23
      %s15 = sphi 0, %s12
      %s16 = sphi 0, %s13
      %s17 = sphi 0, %s14
      %s18 = sphi 0, %s15
      %s19 = sphi 0, %s16
      %s20 = sphi 0, %s17
      %s46 = sphi 0, %s48
      %s49 = sphi 0, %s46
      %s50 = sphi 0, %s49
      %s66 = sphi 0, %s50
    $region4: #{custom-call.36} parent=1 // loop_header_branch
      %8 = sbr.rel (%p6) target = $region8
    $region5: #{custom-call.36} parent=1 // loop_body
      %s10 = ssub.s32 %s5, 1
      %s11 = ssub.s32 %s5, 2
      %s21 = sadd.s32 1, %s14
      %p22 = scmp.ge.s32.totalorder %s21, 1
      %s23 = scalar_select %p22, 0, %s21
      %s24 = sadd.s32 1, %s13
      %s25 = scalar_select %p22, %s24, %s13
      %p26 = scmp.ge.s32.totalorder %s25, 1
      %s27 = scalar_select %p26, 0, %s25
      %s28 = sadd.s32 1, %s12
      %s29 = scalar_select %p26, %s28, %s12
      %p30 = scmp.ge.s32.totalorder %s29, 4
      %s31 = scalar_select %p30, 0, %s29
      %p32 = scmp.lt.s32.totalorder %s12, 0
      %s33 = ssub.s32 0, %s12
      %s34 = scalar_select %p32, %s33, %s12
      %s35 = sshrl.u32 %s34, 3
      %s36 = ssub.s32 0, %s35
      %s37 = scalar_select %p32, %s36, %s35
      %p38 = scmp.lt.s32.totalorder %s31, 0
      %s39 = ssub.s32 0, %s31
      %s40 = scalar_select %p38, %s39, %s31
      %s41 = sshrl.u32 %s40, 3
      %s42 = ssub.s32 0, %s41
      %s43 = scalar_select %p38, %s42, %s41
      %s44 = ssub.s32 %s37, %s43
      %p45 = scmp.eq.s32.totalorder %s44, 0
      %s47 = sadd.s32 %s46, 1
      %s48 = scalar_select %p45, %s46, %s47
      %p51 = pneg %p45
      %p52 = scmp.eq.s32.totalorder %s5, 3
      %p53 = por %p51, %p52
      %p54 = scmp.ne.s32.totalorder %s46, %s49
      %p55 = scmp.eq.s32.totalorder %s5, 0
      %p56 = por %p54, %p55
      %p57 = scmp.ne.s32.totalorder %s46, %s49
      %p58 = scmp.eq.s32.totalorder %s10, 3
      %p59 = por %p57, %p58
      %p60 = scmp.ne.s32.totalorder %s49, %s50
      %p61 = scmp.eq.s32.totalorder %s10, 0
      %p62 = por %p60, %p61
      %p63 = scmp.ne.s32.totalorder %s49, %s50
      %p64 = scmp.eq.s32.totalorder %s11, 3
      %p65 = por %p63, %p64
      %p67 = scmp.ne.s32.totalorder %s50, %s66
      %p68 = scmp.eq.s32.totalorder %s11, 0
      %p69 = por %p67, %p68
      %p70 = scmp.le.s32.totalorder 1, %s5
      %p71 = scmp.lt.s32.totalorder %s5, 5
      %p72 = pnand %p70, %p71
      %p73 = pneg %p72
      // Predicated region
      $region9: #{custom-call.36} parent=5 // pred_check
        _
      $region10: #{custom-call.36} parent=5 // pred_check_branch
        %75 = sbr.rel (%p72) target = $region12
      $region11: #{custom-call.36} parent=5 // pred_region
        %s76 = ssub.s32 %s5, 1
      $region12: #{custom-call.36} parent=5 // pred_fallthru
        _
      %p77 = scmp.lt.s32.totalorder %s5, 4
      // Predicated region
      $region13: #{custom-call.36} parent=5 // pred_check
        %p78 = pneg %p77
      $region14: #{custom-call.36} parent=5 // pred_check_branch
        %80 = sbr.rel (%p78) target = $region16
      $region15: #{custom-call.36} parent=5 // pred_region
        %s81 = sand.u32 %s5, 1
        %s82 = sand.u32 %s5, 1
        %s83 = smul.addr %s82, 16
        %s84 = scalar_lea.vmem [#allocation0], %s83
        %s85 = smul.u32 2, %s13
        %s86 = sadd.s32 %s14, %s85
        %s87 = smul.addr %s12, 2
        %s88 = sadd.s32 %s86, %s87
        %s89 = smul.addr %s88, 8
        %s90 = scalar_lea.vmem %s0, %s89
        // Predicated region
        $region17: #{custom-call.36} parent=15 // pred_check
          _
        $region18: #{custom-call.36} parent=15 // pred_check_branch
          %92 = sbr.rel (0) target = $region20
        $region19: #{custom-call.36} parent=15 // pred_region
          // Predicated region
          $region21: #{custom-call.36} parent=19 // pred_check
            _
          $region22: #{custom-call.36} parent=19 // pred_check_branch
            %94 = sbr.rel (0) target = $region24
          $region23: #{custom-call.36} parent=19 // pred_region
            // Predicated region
            $region36: #{custom-call.36} parent=23 // pred_check
              _
            $region37: #{custom-call.36} parent=23 // pred_check_branch
              %111 = sbr.rel (0) target = $region39
            $region38: #{custom-call.36} parent=23 // pred_region
              loop: start=0, step=1, limit=1
              $region40: #{custom-call.36} parent=38 // loop_pre_header
                _
              $region41: #{custom-call.36} parent=38 // loop_header
                %s113 = sphi 0, %s117
                %p114 = scmp.ge.s32.totalorder %s113, 1
                %s118 = sphi %s90, %s90
                %s119 = sphi %s84, %s84
              $region42: #{custom-call.36} parent=38 // loop_header_branch
                %116 = sbr.rel (%p114) target = $region46
              $region43: #{custom-call.36} parent=38 // loop_body
                %v120 = vld [vmem:[%s118] sm:$0xff]
                %121 = vst [vmem:[%s119] sm:$0xff] %v120
                %v122 = vld [vmem:[%s118 + $0x8] sm:$0xff]
                %123 = vst [vmem:[%s119 + $0x8] sm:$0xff] %v122
              $region44: #{custom-call.36} parent=38 // loop_footer
                %s117 = sadd.s32 1, %s113
              $region45: #{custom-call.36} parent=38 // loop_footer_branch
                %112 = sbr.rel target = $region41
              $region46: #{custom-call.36} parent=38 // loop_exit
                _
            $region39: #{custom-call.36} parent=23 // pred_fallthru
              _
            // Predicated region
            $region47: #{custom-call.36} parent=23 // pred_check
              _
            $region48: #{custom-call.36} parent=23 // pred_check_branch
              %125 = sbr.rel target = $region50
            $region49: #{custom-call.36} parent=23 // pred_region
              _
            $region50: #{custom-call.36} parent=23 // pred_fallthru
              _
          $region24: #{custom-call.36} parent=19 // pred_fallthru
            _
          // Predicated region
          $region25: #{custom-call.36} parent=19 // pred_check
            _
          $region26: #{custom-call.36} parent=19 // pred_check_branch
            %96 = sbr.rel target = $region28
          $region27: #{custom-call.36} parent=19 // pred_region
            loop: start=0, step=1, limit=1
            $region29: #{custom-call.36} parent=27 // loop_pre_header
              _
            $region30: #{custom-call.36} parent=27 // loop_header
              %s99 = sphi 0, %s103
              %p100 = scmp.ge.s32.totalorder %s99, 1
              %s104 = sphi %s90, %s90
              %s105 = sphi %s84, %s84
            $region31: #{custom-call.36} parent=27 // loop_header_branch
              %102 = sbr.rel (%p100) target = $region35
            $region32: #{custom-call.36} parent=27 // loop_body
              %v106 = vld [vmem:[%s104] sm:$0xff]
              %107 = vst [vmem:[%s105] sm:$0xff] %v106
              %v108 = vld [vmem:[%s104 + $0x8] sm:$0xff]
              %109 = vst [vmem:[%s105 + $0x8] sm:$0xff] %v108
            $region33: #{custom-call.36} parent=27 // loop_footer
              %s103 = sadd.s32 1, %s99
            $region34: #{custom-call.36} parent=27 // loop_footer_branch
              %98 = sbr.rel target = $region30
            $region35: #{custom-call.36} parent=27 // loop_exit
              _
          $region28: #{custom-call.36} parent=19 // pred_fallthru
            _
        $region20: #{custom-call.36} parent=15 // pred_fallthru
          _
        %126 = vnop
      $region16: #{custom-call.36} parent=5 // pred_fallthru
        _
      %p127 = scmp.le.s32.totalorder 1, %s5
      %p128 = scmp.lt.s32.totalorder %s5, 5
      %p129 = pnand %p127, %p128
      %p130 = pneg %p129
      // Predicated region
      $region51: #{custom-call.36} parent=5 // pred_check
        _
      $region52: #{custom-call.36} parent=5 // pred_check_branch
        %132 = sbr.rel (%p129) target = $region54
      $region53: #{custom-call.36} parent=5 // pred_region
        #allocation4 [shape = 'f32[16,128]{1,0}', space=vmem, size = 0x2000, scoped, tag = 'scratch for Householder reflectors']
        %s133 = ssub.s32 %s5, 1
        %s134 = sand.u32 %s10, 1
        %s135 = sand.u32 %s10, 1
        %s136 = smul.addr %s135, 16
        %s137 = scalar_lea.vmem [#allocation0], %s136
        %s138 = sand.u32 %s10, 1
        %s139 = sand.u32 %s10, 1
        %s140 = smul.addr %s139, 16
        %s141 = scalar_lea.vmem [#allocation0], %s140
        %s142 = sand.u32 %s10, 1
        %s143 = sand.u32 %s10, 1
        %s144 = smul.addr %s143, 16
        %s145 = scalar_lea.vmem [#allocation1], %s144
        %p146 = pneg %p62
        %p147 = pneg %p59
        %s148 = sand.u32 %s49, 1
        %s149 = sand.u32 %s49, 1
        %s150 = smul.addr %s149, 4
        %s151 = scalar_lea.vmem [#allocation3], %s150
        %s152 = smul.u32 2, %s16
        %s153 = smul.u32 2, %s16
        %p154 = scmp.lt.s32.totalorder %s15, 0
        %s155 = ssub.s32 0, %s15
        %s156 = scalar_select %p154, %s155, %s15
        %s157 = sshrl.u32 %s156, 3
        %s158 = ssub.s32 0, %s157
        %s159 = scalar_select %p154, %s158, %s157
        %s160 = sand.u32 %s15, 7
        %s161 = scalar_lea.vmem [#allocation2], %s160
        %v162 = vld [vmem:[%s137] sm:$0xff]
        %163 = vst [vmem:[%s145] sm:$0xff] %v162
        %s164 = scalar_lea.vmem %s145, 8 [#allocation1]
        %s165 = scalar_lea.vmem %s137, 8 [#allocation0]
        %v166 = vld [vmem:[%s165] sm:$0xff]
        %167 = vst [vmem:[%s164] sm:$0xff] %v166
        %168 = vst [vmem:[%s161] sm:$0x1] 0.0
        loop: start=0, step=1, limit=8
        $region55: #{custom-call.36} parent=53 // loop_pre_header
          _
        $region56: #{custom-call.36} parent=53 // loop_header
          %s170 = sphi 0, %s174
          %p171 = scmp.ge.s32.totalorder %s170, 8
        $region57: #{custom-call.36} parent=53 // loop_header_branch
          %173 = sbr.rel (%p171) target = $region61
        $region58: #{custom-call.36} parent=53 // loop_body
          %v175 = vld [vmem:[%s145] sm:$0xff]
          %v176 = vlaneseq
          %v177 = vshrl.u32 %v176, 7
          %v179 = vstv %s170
          %vm180 = vcmp.gt.s32.totalorder %v177, %v179
          %v181 = vsel %vm180, %v175, 0.0
          %v182 = vmul.f32 %v181, %v181
          %s183 = scalar_lea.vmem %s145, 8 [#allocation1]
          %v184 = vld [vmem:[%s183] sm:$0xff]
          %v185 = vlaneseq
          %v186 = vshrl.u32 %v185, 7
          %v187 = vadd.s32 %v186, 8
          %v188 = vstv %s170
          %vm189 = vcmp.gt.s32.totalorder %v187, %v188
          %vm190 = vcmp.lt.s32.totalorder %v187, 16
          %vm191 = vmand %vm189, %vm190
          %v192 = vsel %vm191, %v184, 0.0
          %v193 = vmul.f32 %v192, %v192
          %v194 = vadd.f32 %v182, %v193
          %v195 = vrot.slane %v194, 4
          %v196 = vadd.f32 %v194, %v195
          %v197 = vrot.slane %v196, 2
          %v198 = vadd.f32 %v196, %v197
          %v199 = vrot.slane %v198, 1
          %v200 = vadd.f32 %v198, %v199
          %v201 = vrsqrt.pop %v200
          %v202 = vmul.f32 %v200, %v201
          %vm203 = vcmp.eq.f32.partialorder %v200, inf
          %v204 = vsel %vm203, %v200, %v202
          %vm205 = vcmp.eq.f32.partialorder %v200, 0.0
          %v206 = vand.u32 %v200, 2147483648
          %v207 = vsel %vm205, %v206, %v204
          %vm208 = vcmp.eq.f32.partialorder %v200, 0.0
          %s209 = sshrl.u32 %s170, 3
          %s210 = sand.u32 %s170, 7
          %s211 = smul.addr %s209, 8
          %s212 = sadd.s32 %s210, %s211
          %s213 = scalar_lea.vmem %s145, %s212 [#allocation1]
          %v214 = vld [vmem:[%s213] ss:$0 sm:$0xff]
          %v215 = vand.u32 2147483647, %v214
          %v216 = vmax.f32 %v215, 0.0
          %v217 = vand.u32 2147483647, %v207
          %v218 = vmax.f32 %v216, %v217
          %v219 = vrcp.pop %v218
          %v220 = vmul.f32 %v215, %v219
          %v221 = vmul.f32 %v220, %v220
          %v222 = vrcp.pop %v218
          %v223 = vmul.f32 0.0, %v222
          %v224 = vmul.f32 %v223, %v223
          %v225 = vadd.f32 %v221, %v224
          %v226 = vrcp.pop %v218
          %v227 = vmul.f32 %v217, %v226
          %v228 = vmul.f32 %v227, %v227
          %v229 = vadd.f32 %v225, %v228
          %vm230 = vcmp.eq.f32.partialorder %v218, 0.0
          %v231 = vrsqrt.pop %v229
          %v232 = vmul.f32 %v229, %v231
          %vm233 = vcmp.eq.f32.partialorder %v229, inf
          %v234 = vsel %vm233, %v229, %v232
          %vm235 = vcmp.eq.f32.partialorder %v229, 0.0
          %v236 = vand.u32 %v229, 2147483648
          %v237 = vsel %vm235, %v236, %v234
          %v238 = vmul.f32 %v218, %v237
          %v239 = vsel %vm230, 0.0, %v238
          %vm240 = vcmp.lt.f32.partialorder %v214, 0.0
          %v241 = vxor.u32 %v239, 2147483648
          %v242 = vsel %vm240, %v239, %v241
          %v243 = vsub.f32 %v242, %v214
          %v244 = vrcp.pop %v242
          %v245 = vmul.f32 %v243, %v244
          %v246 = vsel %vm208, %v214, %v242
          %v247 = vsel %vm208, 0.0, %v245
          %v248 = vsub.f32 %v214, %v246
          %s249 = smov %s145
          %v250 = vlaneseq
          %v251 = vshrl.u32 %v250, 7
          %v252 = vmov %v251
          %v253 = vld [vmem:[%s249] sm:$0xff]
          %v255 = vstv %s170
          %vm256 = vcmp.gt.s32.totalorder %v252, %v255
          %v257 = vsel %vm256, %v253, 0.0
          %v258 = vrcp.pop %v248
          %v259 = vmul.f32 %v257, %v258
          %v260 = vsel %vm208, 0.0, %v259
          %v261 = vstv %s170
          %v262 = vlaneseq
          %v263 = vand.u32 %v262, 127
          %vm264 = vcmp.eq.s32.totalorder %v263, %v261
          %v265 = vsel %vm264, %v260, 0.0
          %266 = vadd.xlane.f32.xlu0 %v265
          %v267 = vpop.xlane.xlu0 %266
          %268 = vst [vmem:[#allocation4] sm:$0xff] %v267
          %s269 = scalar_lea.vmem %s249, 8
          %v270 = vld [vmem:[%s269] sm:$0xff]
          %v271 = vadd.s32 %v252, 8
          %v272 = vstv %s170
          %vm273 = vcmp.gt.s32.totalorder %v271, %v272
          %vm274 = vcmp.lt.s32.totalorder %v271, 16
          %vm275 = vmand %vm273, %vm274
          %v276 = vsel %vm275, %v270, 0.0
          %v277 = vrcp.pop %v248
          %v278 = vmul.f32 %v276, %v277
          %v279 = vsel %vm208, 0.0, %v278
          %v280 = vstv %s170
          %v281 = vlaneseq
          %v282 = vand.u32 %v281, 127
          %vm283 = vcmp.eq.s32.totalorder %v282, %v280
          %v284 = vsel %vm283, %v279, 0.0
          %285 = vadd.xlane.f32.xlu0 %v284
          %v286 = vpop.xlane.xlu0 %285
          %s287 = scalar_lea.vmem [#allocation4], 8
          %288 = vst [vmem:[%s287] sm:$0xff] %v286
          %s289 = scalar_lea.vmem [#allocation4], %s170
          %290 = vst [vmem:[%s289] sm:$0x1] 1.0
          %v291 = vstv %s170
          %v292 = vlaneseq
          %v293 = vand.u32 %v292, 127
          %vm294 = vcmp.eq.s32.totalorder %v293, %v291
          %v295 = vsel %vm294, %v247, 0.0
          %296 = vadd.xlane.f32.xlu0 %v295
          %v297 = vpop.xlane.xlu0 %296
          %v298 = vstv %s170
          %v299 = vlaneseq
          %v300 = vand.u32 %v299, 127
          %vm301 = vcmp.eq.s32.totalorder %v300, %v298
          %v302 = vld [vmem:[%s161] ss:$0 sm:$0xff]
          %v303 = vsel %vm301, %v297, %v302
          %304 = vst [vmem:[%s161] sm:$0x1] %v303
          %s305 = smov %s145
          %s306 = smov [#allocation4]
          %v307 = vlaneseq
          %v308 = vshrl.u32 %v307, 7
          %v309 = vmov %v308
          %v311 = vld [vmem:[%s306] sm:$0xff]
          %v312 = vld [vmem:[%s305] sm:$0xff]
          %v313 = vmul.f32 %v311, %v312
          %v314 = vadd.s32 %v309, 8
          %s315 = scalar_lea.vmem %s306, 8
          %v316 = vld [vmem:[%s315] sm:$0xff]
          %s317 = scalar_lea.vmem %s305, 8
          %v318 = vld [vmem:[%s317] sm:$0xff]
          %v319 = vmul.f32 %v316, %v318
          %vm320 = vcmp.lt.s32.totalorder %v314, 16
          %v321 = vsel %vm320, %v319, 0.0
          %v322 = vadd.f32 %v313, %v321
          %v323 = vrot.slane %v322, 4
          %v324 = vadd.f32 %v322, %v323
          %v325 = vrot.slane %v324, 2
          %v326 = vadd.f32 %v324, %v325
          %v327 = vrot.slane %v326, 1
          %v328 = vadd.f32 %v326, %v327
          %s329 = smov %s305
          %s330 = smov %s306
          %v331 = vlaneseq
          %v332 = vshrl.u32 %v331, 7
          %v333 = vmov %v332
          %v334 = vmul.f32 %v328, %v297
          %v336 = vlaneseq
          %v337 = vand.u32 %v336, 127
          %v338 = vld [vmem:[%s330] sm:$0xff]
          %v339 = vmul.f32 %v338, %v334
          %v340 = vld [vmem:[%s329] sm:$0xff]
          %v341 = vstv %s170
          %vm342 = vcmp.gt.s32.totalorder %v337, %v341
          %v343 = vsub.f32 %v340, %v339
          %v344 = vsel %vm342, %v343, %v340
          %v345 = vstv %s170
          %v346 = vlaneseq
          %v347 = vand.u32 %v346, 127
          %vm348 = vcmp.eq.s32.totalorder %v347, %v345
          %v349 = vstv %s170
          %vm350 = vcmp.ge.s32.totalorder %v333, %v349
          %vm351 = vmand %vm348, %vm350
          %v352 = vsel %vm351, %v338, %v344
          %353 = vst [vmem:[%s329] sm:$0xff] %v352
          %v354 = vadd.s32 %v333, 8
          %v355 = vlaneseq
          %v356 = vand.u32 %v355, 127
          %s357 = scalar_lea.vmem %s330, 8
          %v358 = vld [vmem:[%s357] sm:$0xff]
          %v359 = vmul.f32 %v358, %v334
          %s360 = scalar_lea.vmem %s329, 8
          %v361 = vld [vmem:[%s360] sm:$0xff]
          %v362 = vstv %s170
          %vm363 = vcmp.gt.s32.totalorder %v356, %v362
          %v364 = vsub.f32 %v361, %v359
          %v365 = vsel %vm363, %v364, %v361
          %v366 = vstv %s170
          %v367 = vlaneseq
          %v368 = vand.u32 %v367, 127
          %vm369 = vcmp.eq.s32.totalorder %v368, %v366
          %v370 = vstv %s170
          %vm371 = vcmp.ge.s32.totalorder %v354, %v370
          %vm372 = vmand %vm369, %vm371
          %v373 = vsel %vm372, %v358, %v365
          %374 = vst [vmem:[%s360] sm:$0xff] %v373
          %s375 = scalar_lea.vmem %s329, %s170
          %v376 = vld [vmem:[%s375] ss:$0 sm:$0xff]
          %v377 = vstv %s170
          %v378 = vlaneseq
          %v379 = vand.u32 %v378, 127
          %vm380 = vcmp.eq.s32.totalorder %v379, %v377
          %v381 = vsel %vm380, %v246, %v376
          %382 = vst [vmem:[%s375] sm:$0x1] %v381
        $region59: #{custom-call.36} parent=53 // loop_footer
          %s174 = sadd.s32 1, %s170
        $region60: #{custom-call.36} parent=53 // loop_footer_branch
          %169 = sbr.rel target = $region56
        $region61: #{custom-call.36} parent=53 // loop_exit
          _
        %s384 = sshllo.u32 0, 4
        %v386 = vld [vmem:[#allocation2] sm:%s384]
        %s387 = sshllo.u32 0, 4
        %388 = vst [vmem:[%s151] sm:%s387] %v386
        %s389 = sand.u32 %s10, 1
        %s390 = sand.u32 %s10, 1
        %s391 = smul.addr %s390, 16
        %s392 = scalar_lea.vmem [#allocation1], %s391
        %s393 = sand.u32 %s49, 1
        %s394 = sand.u32 %s49, 1
        %s395 = smul.addr %s394, 4
        %s396 = scalar_lea.vmem [#allocation3], %s395
        %s397 = smul.u32 2, %s16
        %s398 = sadd.s32 %s17, %s397
        %s399 = smul.addr %s15, 2
        %s400 = sadd.s32 %s398, %s399
        %s401 = smul.addr %s400, 8
        %s402 = scalar_lea.vmem %s1, %s401
        // Predicated region
        $region62: #{custom-call.36} parent=53 // pred_check
          _
        $region63: #{custom-call.36} parent=53 // pred_check_branch
          %404 = sbr.rel (0) target = $region65
        $region64: #{custom-call.36} parent=53 // pred_region
          // Predicated region
          $region66: #{custom-call.36} parent=64 // pred_check
            _
          $region67: #{custom-call.36} parent=64 // pred_check_branch
            %406 = sbr.rel (0) target = $region69
          $region68: #{custom-call.36} parent=64 // pred_region
            // Predicated region
            $region81: #{custom-call.36} parent=68 // pred_check
              _
            $region82: #{custom-call.36} parent=68 // pred_check_branch
              %423 = sbr.rel (0) target = $region84
            $region83: #{custom-call.36} parent=68 // pred_region
              loop: start=0, step=1, limit=1
              $region85: #{custom-call.36} parent=83 // loop_pre_header
                _
              $region86: #{custom-call.36} parent=83 // loop_header
                %s425 = sphi 0, %s429
                %p426 = scmp.ge.s32.totalorder %s425, 1
                %s430 = sphi %s392, %s392
                %s431 = sphi %s402, %s402
              $region87: #{custom-call.36} parent=83 // loop_header_branch
                %428 = sbr.rel (%p426) target = $region91
              $region88: #{custom-call.36} parent=83 // loop_body
                %v432 = vld [vmem:[%s430] sm:$0xff]
                %433 = vst [vmem:[%s431] sm:$0xff] %v432
                %v434 = vld [vmem:[%s430 + $0x8] sm:$0xff]
                %435 = vst [vmem:[%s431 + $0x8] sm:$0xff] %v434
              $region89: #{custom-call.36} parent=83 // loop_footer
                %s429 = sadd.s32 1, %s425
              $region90: #{custom-call.36} parent=83 // loop_footer_branch
                %424 = sbr.rel target = $region86
              $region91: #{custom-call.36} parent=83 // loop_exit
                _
            $region84: #{custom-call.36} parent=68 // pred_fallthru
              _
            // Predicated region
            $region92: #{custom-call.36} parent=68 // pred_check
              _
            $region93: #{custom-call.36} parent=68 // pred_check_branch
              %437 = sbr.rel target = $region95
            $region94: #{custom-call.36} parent=68 // pred_region
              _
            $region95: #{custom-call.36} parent=68 // pred_fallthru
              _
          $region69: #{custom-call.36} parent=64 // pred_fallthru
            _
          // Predicated region
          $region70: #{custom-call.36} parent=64 // pred_check
            _
          $region71: #{custom-call.36} parent=64 // pred_check_branch
            %408 = sbr.rel target = $region73
          $region72: #{custom-call.36} parent=64 // pred_region
            loop: start=0, step=1, limit=1
            $region74: #{custom-call.36} parent=72 // loop_pre_header
              _
            $region75: #{custom-call.36} parent=72 // loop_header
              %s411 = sphi 0, %s415
              %p412 = scmp.ge.s32.totalorder %s411, 1
              %s416 = sphi %s392, %s392
              %s417 = sphi %s402, %s402
            $region76: #{custom-call.36} parent=72 // loop_header_branch
              %414 = sbr.rel (%p412) target = $region80
            $region77: #{custom-call.36} parent=72 // loop_body
              %v418 = vld [vmem:[%s416] sm:$0xff]
              %419 = vst [vmem:[%s417] sm:$0xff] %v418
              %v420 = vld [vmem:[%s416 + $0x8] sm:$0xff]
              %421 = vst [vmem:[%s417 + $0x8] sm:$0xff] %v420
            $region78: #{custom-call.36} parent=72 // loop_footer
              %s415 = sadd.s32 1, %s411
            $region79: #{custom-call.36} parent=72 // loop_footer_branch
              %410 = sbr.rel target = $region75
            $region80: #{custom-call.36} parent=72 // loop_exit
              _
          $region73: #{custom-call.36} parent=64 // pred_fallthru
            _
        $region65: #{custom-call.36} parent=53 // pred_fallthru
          _
        %438 = vnop
        // Predicated region
        $region96: #{custom-call.36} parent=53 // pred_check
          %p439 = pneg %p59
        $region97: #{custom-call.36} parent=53 // pred_check_branch
          %441 = sbr.rel (%p439) target = $region99
        $region98: #{custom-call.36} parent=53 // pred_region
          %p442 = scmp.lt.s32.totalorder %s15, 0
          %s443 = ssub.s32 0, %s15
          %s444 = scalar_select %p442, %s443, %s15
          %s445 = sshrl.u32 %s444, 3
          %s446 = ssub.s32 0, %s445
          %s447 = scalar_select %p442, %s446, %s445
          %s448 = smul.addr %s447, 4
          %s449 = scalar_lea.vmem %s2, %s448
          // Predicated region
          $region100: #{custom-call.36} parent=98 // pred_check
            _
          $region101: #{custom-call.36} parent=98 // pred_check_branch
            %451 = sbr.rel (0) target = $region103
          $region102: #{custom-call.36} parent=98 // pred_region
            // Predicated region
            $region104: #{custom-call.36} parent=102 // pred_check
              _
            $region105: #{custom-call.36} parent=102 // pred_check_branch
              %453 = sbr.rel target = $region107
            $region106: #{custom-call.36} parent=102 // pred_region
              // Predicated region
              $region119: #{custom-call.36} parent=106 // pred_check
                _
              $region120: #{custom-call.36} parent=106 // pred_check_branch
                %468 = sbr.rel (0) target = $region122
              $region121: #{custom-call.36} parent=106 // pred_region
                loop: start=0, step=1, limit=1
                $region123: #{custom-call.36} parent=121 // loop_pre_header
                  _
                $region124: #{custom-call.36} parent=121 // loop_header
                  %s471 = sphi 0, %s475
                  %p472 = scmp.ge.s32.totalorder %s471, 1
                  %s476 = sphi %s396, %s396
                  %s477 = sphi %s449, %s449
                $region125: #{custom-call.36} parent=121 // loop_header_branch
                  %474 = sbr.rel (%p472) target = $region129
                $region126: #{custom-call.36} parent=121 // loop_body
                  %v478 = vld [vmem:[%s476] sm:$0xf]
                  %479 = vst [vmem:[%s477] sm:$0xf] %v478
                $region127: #{custom-call.36} parent=121 // loop_footer
                  %s475 = sadd.s32 1, %s471
                $region128: #{custom-call.36} parent=121 // loop_footer_branch
                  %470 = sbr.rel target = $region124
                $region129: #{custom-call.36} parent=121 // loop_exit
                  _
              $region122: #{custom-call.36} parent=106 // pred_fallthru
                _
            $region107: #{custom-call.36} parent=102 // pred_fallthru
              _
            // Predicated region
            $region108: #{custom-call.36} parent=102 // pred_check
              _
            $region109: #{custom-call.36} parent=102 // pred_check_branch
              %455 = sbr.rel (0) target = $region111
            $region110: #{custom-call.36} parent=102 // pred_region
              loop: start=0, step=1, limit=1
              $region112: #{custom-call.36} parent=110 // loop_pre_header
                _
              $region113: #{custom-call.36} parent=110 // loop_header
                %s458 = sphi 0, %s462
                %p459 = scmp.ge.s32.totalorder %s458, 1
                %s463 = sphi %s396, %s396
                %s464 = sphi %s449, %s449
              $region114: #{custom-call.36} parent=110 // loop_header_branch
                %461 = sbr.rel (%p459) target = $region118
              $region115: #{custom-call.36} parent=110 // loop_body
                %v465 = vld [vmem:[%s463] sm:$0xf]
                %466 = vst [vmem:[%s464] sm:$0xf] %v465
              $region116: #{custom-call.36} parent=110 // loop_footer
                %s462 = sadd.s32 1, %s458
              $region117: #{custom-call.36} parent=110 // loop_footer_branch
                %457 = sbr.rel target = $region113
              $region118: #{custom-call.36} parent=110 // loop_exit
                _
            $region111: #{custom-call.36} parent=102 // pred_fallthru
              _
          $region103: #{custom-call.36} parent=98 // pred_fallthru
            _
          %480 = vnop
        $region99: #{custom-call.36} parent=53 // pred_fallthru
          _
      $region54: #{custom-call.36} parent=5 // pred_fallthru
        _
      %p481 = scmp.le.s32.totalorder 2, %s5
      // Predicated region
      $region130: #{custom-call.36} parent=5 // pred_check
        %p482 = pneg %p481
      $region131: #{custom-call.36} parent=5 // pred_check_branch
        %484 = sbr.rel (%p482) target = $region133
      $region132: #{custom-call.36} parent=5 // pred_region
        %s485 = ssub.s32 %s5, 2
        %s486 = sand.u32 %s11, 1
        %s487 = sand.u32 %s11, 1
        %s488 = smul.addr %s487, 16
        %s489 = scalar_lea.vmem [#allocation1], %s488
        // Predicated region
        $region134: #{custom-call.36} parent=132 // pred_check
          %p490 = pneg %p65
        $region135: #{custom-call.36} parent=132 // pred_check_branch
          %492 = sbr.rel (%p490) target = $region137
        $region136: #{custom-call.36} parent=132 // pred_region
          %s493 = sand.u32 %s50, 1
          %s494 = sand.u32 %s50, 1
          %s495 = smul.addr %s494, 4
          %s496 = scalar_lea.vmem [#allocation3], %s495
        $region137: #{custom-call.36} parent=132 // pred_fallthru
          _
      $region133: #{custom-call.36} parent=5 // pred_fallthru
        _
    $region6: #{custom-call.36} parent=1 // loop_footer
      %s9 = sadd.s32 1, %s5
    $region7: #{custom-call.36} parent=1 // loop_footer_branch
      %4 = sbr.rel target = $region3
    $region8: #{custom-call.36} parent=1 // loop_exit
      _

// kernel: custom-call.46
$region0: #{custom-call.46}
  %s0 = inlined_call_operand.vmem [shape: f32[4,8,8], index: 0, kind: input, shape index: {}]
  %s1 = inlined_call_operand.vmem [shape: f32[4,8,8], index: 1, kind: output, shape index: {}]
  $region1: #{custom-call.46} parent=0
    #allocation0 [shape = 'u8[8192]{0}', space=vmem, size = 0x2000, scoped, tag = 'operand span for operand 0']
    #allocation1 [shape = 'u8[8192]{0}', space=vmem, size = 0x2000, scoped, tag = 'operand span for operand 1']
    loop: start=0, step=1, limit=6
    $region2: #{custom-call.46} parent=1 // loop_pre_header
      _
    $region3: #{custom-call.46} parent=1 // loop_header
      %s3 = sphi 0, %s7
      %p4 = scmp.ge.s32.totalorder %s3, 6
    $region4: #{custom-call.46} parent=1 // loop_header_branch
      %6 = sbr.rel (%p4) target = $region8
    $region5: #{custom-call.46} parent=1 // loop_body
      %s8 = ssub.s32 %s3, 1
      %s9 = ssub.s32 %s3, 2
      %s10 = sadd.s32 %s3, 1
      %p11 = scmp.le.s32.totalorder 1, %s3
      %p12 = scmp.lt.s32.totalorder %s3, 5
      %p13 = pnand %p11, %p12
      %p14 = pneg %p13
      // Predicated region
      $region9: #{custom-call.46} parent=5 // pred_check
        _
      $region10: #{custom-call.46} parent=5 // pred_check_branch
        %16 = sbr.rel (%p13) target = $region12
      $region11: #{custom-call.46} parent=5 // pred_region
        %s17 = ssub.s32 %s3, 1
      $region12: #{custom-call.46} parent=5 // pred_fallthru
        _
      %p18 = scmp.lt.s32.totalorder %s3, 4
      // Predicated region
      $region13: #{custom-call.46} parent=5 // pred_check
        %p19 = pneg %p18
      $region14: #{custom-call.46} parent=5 // pred_check_branch
        %21 = sbr.rel (%p19) target = $region16
      $region15: #{custom-call.46} parent=5 // pred_region
        %s22 = sand.u32 %s3, 1
        %s23 = sand.u32 %s3, 1
        %s24 = smul.addr %s23, 8
        %s25 = scalar_lea.vmem [#allocation0], %s24
        %s26 = smul.addr %s3, 8
        %s27 = scalar_lea.vmem %s0, %s26
        // Predicated region
        $region17: #{custom-call.46} parent=15 // pred_check
          _
        $region18: #{custom-call.46} parent=15 // pred_check_branch
          %29 = sbr.rel (0) target = $region20
        $region19: #{custom-call.46} parent=15 // pred_region
          // Predicated region
          $region21: #{custom-call.46} parent=19 // pred_check
            _
          $region22: #{custom-call.46} parent=19 // pred_check_branch
            %31 = sbr.rel (0) target = $region24
          $region23: #{custom-call.46} parent=19 // pred_region
            // Predicated region
            $region36: #{custom-call.46} parent=23 // pred_check
              _
            $region37: #{custom-call.46} parent=23 // pred_check_branch
              %46 = sbr.rel (0) target = $region39
            $region38: #{custom-call.46} parent=23 // pred_region
              loop: start=0, step=1, limit=1
              $region40: #{custom-call.46} parent=38 // loop_pre_header
                _
              $region41: #{custom-call.46} parent=38 // loop_header
                %s48 = sphi 0, %s52
                %p49 = scmp.ge.s32.totalorder %s48, 1
                %s53 = sphi %s27, %s27
                %s54 = sphi %s25, %s25
              $region42: #{custom-call.46} parent=38 // loop_header_branch
                %51 = sbr.rel (%p49) target = $region46
              $region43: #{custom-call.46} parent=38 // loop_body
                %v55 = vld [vmem:[%s53] sm:$0xff]
                %56 = vst [vmem:[%s54] sm:$0xff] %v55
              $region44: #{custom-call.46} parent=38 // loop_footer
                %s52 = sadd.s32 1, %s48
              $region45: #{custom-call.46} parent=38 // loop_footer_branch
                %47 = sbr.rel target = $region41
              $region46: #{custom-call.46} parent=38 // loop_exit
                _
            $region39: #{custom-call.46} parent=23 // pred_fallthru
              _
            // Predicated region
            $region47: #{custom-call.46} parent=23 // pred_check
              _
            $region48: #{custom-call.46} parent=23 // pred_check_branch
              %58 = sbr.rel target = $region50
            $region49: #{custom-call.46} parent=23 // pred_region
              _
            $region50: #{custom-call.46} parent=23 // pred_fallthru
              _
          $region24: #{custom-call.46} parent=19 // pred_fallthru
            _
          // Predicated region
          $region25: #{custom-call.46} parent=19 // pred_check
            _
          $region26: #{custom-call.46} parent=19 // pred_check_branch
            %33 = sbr.rel target = $region28
          $region27: #{custom-call.46} parent=19 // pred_region
            loop: start=0, step=1, limit=1
            $region29: #{custom-call.46} parent=27 // loop_pre_header
              _
            $region30: #{custom-call.46} parent=27 // loop_header
              %s36 = sphi 0, %s40
              %p37 = scmp.ge.s32.totalorder %s36, 1
              %s41 = sphi %s27, %s27
              %s42 = sphi %s25, %s25
            $region31: #{custom-call.46} parent=27 // loop_header_branch
              %39 = sbr.rel (%p37) target = $region35
            $region32: #{custom-call.46} parent=27 // loop_body
              %v43 = vld [vmem:[%s41] sm:$0xff]
              %44 = vst [vmem:[%s42] sm:$0xff] %v43
            $region33: #{custom-call.46} parent=27 // loop_footer
              %s40 = sadd.s32 1, %s36
            $region34: #{custom-call.46} parent=27 // loop_footer_branch
              %35 = sbr.rel target = $region30
            $region35: #{custom-call.46} parent=27 // loop_exit
              _
          $region28: #{custom-call.46} parent=19 // pred_fallthru
            _
        $region20: #{custom-call.46} parent=15 // pred_fallthru
          _
        %59 = vnop
      $region16: #{custom-call.46} parent=5 // pred_fallthru
        _
      %p60 = scmp.le.s32.totalorder 1, %s3
      %p61 = scmp.lt.s32.totalorder %s3, 5
      %p62 = pnand %p60, %p61
      %p63 = pneg %p62
      // Predicated region
      $region51: #{custom-call.46} parent=5 // pred_check
        _
      $region52: #{custom-call.46} parent=5 // pred_check_branch
        %65 = sbr.rel (%p62) target = $region54
      $region53: #{custom-call.46} parent=5 // pred_region
        %s66 = ssub.s32 %s3, 1
        %s67 = sand.u32 %s8, 1
        %s68 = sand.u32 %s8, 1
        %s69 = smul.addr %s68, 8
        %s70 = scalar_lea.vmem [#allocation0], %s69
        %s71 = sand.u32 %s8, 1
        %s72 = sand.u32 %s8, 1
        %s73 = smul.addr %s72, 8
        %s74 = scalar_lea.vmem [#allocation0], %s73
        %s75 = sand.u32 %s8, 1
        %s76 = sand.u32 %s8, 1
        %s77 = smul.addr %s76, 8
        %s78 = scalar_lea.vmem [#allocation1], %s77
        %v79 = vlaneseq
        %v80 = vand.u32 %v79, 127
        %v81 = vlaneseq
        %v82 = vshrl.u32 %v81, 7
        %vm84 = vcmp.eq.s32.totalorder %v80, %v82
        %v85 = vld [vmem:[%s70] sm:$0xff]
        %v86 = vlaneseq
        %v87 = vand.u32 %v86, 127
        %vm88 = vcmp.eq.s32.totalorder %v87, 0
        %v89 = vsel %vm88, %v85, 1.0
        %v90 = vsel %vm84, %v89, 0.0
        %s91 = scalar_lea.vmem %s70, 1 [#allocation0]
        %v92 = vld [vmem:[%s91] ss:$0 sm:$0xff]
        %vm93 = vcmask 64512
        %v94 = vsel %vm93, %v92, 0.0
        %v95 = vlaneseq
        %v96 = vand.u32 %v95, 127
        %vm97 = vcmp.eq.s32.totalorder %v96, 1
        %v98 = vmul.f32 %v94, %v90
        %99 = vadd.xlane.f32.xlu0 %v98
        %v100 = vpop.xlane.xlu0 %99
        %v101 = vsel %vm97, %v100, %v90
        %s102 = scalar_lea.vmem %s70, 2 [#allocation0]
        %v103 = vld [vmem:[%s102] ss:$0 sm:$0xff]
        %vm104 = vcmask 64512
        %v105 = vsel %vm104, %v103, 0.0
        %v106 = vlaneseq
        %v107 = vand.u32 %v106, 127
        %vm108 = vcmp.eq.s32.totalorder %v107, 2
        %v109 = vmul.f32 %v105, %v101
        %110 = vadd.xlane.f32.xlu0 %v109
        %v111 = vpop.xlane.xlu0 %110
        %v112 = vsel %vm108, %v111, %v101
        %s113 = scalar_lea.vmem %s70, 3 [#allocation0]
        %v114 = vld [vmem:[%s113] ss:$0 sm:$0xff]
        %vm115 = vcmask 64512
        %v116 = vsel %vm115, %v114, 0.0
        %v117 = vlaneseq
        %v118 = vand.u32 %v117, 127
        %vm119 = vcmp.eq.s32.totalorder %v118, 3
        %v120 = vmul.f32 %v116, %v112
        %121 = vadd.xlane.f32.xlu0 %v120
        %v122 = vpop.xlane.xlu0 %121
        %v123 = vsel %vm119, %v122, %v112
        %s124 = scalar_lea.vmem %s70, 4 [#allocation0]
        %v125 = vld [vmem:[%s124] ss:$0 sm:$0xff]
        %vm126 = vcmask 64512
        %v127 = vsel %vm126, %v125, 0.0
        %v128 = vlaneseq
        %v129 = vand.u32 %v128, 127
        %vm130 = vcmp.eq.s32.totalorder %v129, 4
        %v131 = vmul.f32 %v127, %v123
        %132 = vadd.xlane.f32.xlu0 %v131
        %v133 = vpop.xlane.xlu0 %132
        %v134 = vsel %vm130, %v133, %v123
        %s135 = scalar_lea.vmem %s70, 5 [#allocation0]
        %v136 = vld [vmem:[%s135] ss:$0 sm:$0xff]
        %vm137 = vcmask 64512
        %v138 = vsel %vm137, %v136, 0.0
        %v139 = vlaneseq
        %v140 = vand.u32 %v139, 127
        %vm141 = vcmp.eq.s32.totalorder %v140, 5
        %v142 = vmul.f32 %v138, %v134
        %143 = vadd.xlane.f32.xlu0 %v142
        %v144 = vpop.xlane.xlu0 %143
        %v145 = vsel %vm141, %v144, %v134
        %s146 = scalar_lea.vmem %s70, 6 [#allocation0]
        %v147 = vld [vmem:[%s146] ss:$0 sm:$0xff]
        %vm148 = vcmask 64512
        %v149 = vsel %vm148, %v147, 0.0
        %v150 = vlaneseq
        %v151 = vand.u32 %v150, 127
        %vm152 = vcmp.eq.s32.totalorder %v151, 6
        %v153 = vmul.f32 %v149, %v145
        %154 = vadd.xlane.f32.xlu0 %v153
        %v155 = vpop.xlane.xlu0 %154
        %v156 = vsel %vm152, %v155, %v145
        %s157 = scalar_lea.vmem %s70, 7 [#allocation0]
        %v158 = vld [vmem:[%s157] ss:$0 sm:$0xff]
        %vm159 = vcmask 64512
        %v160 = vsel %vm159, %v158, 0.0
        %v161 = vlaneseq
        %v162 = vand.u32 %v161, 127
        %vm163 = vcmp.eq.s32.totalorder %v162, 7
        %v164 = vmul.f32 %v160, %v156
        %165 = vadd.xlane.f32.xlu0 %v164
        %v166 = vpop.xlane.xlu0 %165
        %v167 = vsel %vm163, %v166, %v156
        %168 = vst [vmem:[%s78] sm:$0xff] %v167
        %s169 = sand.u32 %s8, 1
        %s170 = sand.u32 %s8, 1
        %s171 = smul.addr %s170, 8
        %s172 = scalar_lea.vmem [#allocation1], %s171
        %s173 = smul.addr %s8, 8
        %s174 = scalar_lea.vmem %s1, %s173
        // Predicated region
        $region55: #{custom-call.46} parent=53 // pred_check
          _
        $region56: #{custom-call.46} parent=53 // pred_check_branch
          %176 = sbr.rel (0) target = $region58
        $region57: #{custom-call.46} parent=53 // pred_region
          // Predicated region
          $region59: #{custom-call.46} parent=57 // pred_check
            _
          $region60: #{custom-call.46} parent=57 // pred_check_branch
            %178 = sbr.rel (0) target = $region62
          $region61: #{custom-call.46} parent=57 // pred_region
            // Predicated region
            $region74: #{custom-call.46} parent=61 // pred_check
              _
            $region75: #{custom-call.46} parent=61 // pred_check_branch
              %193 = sbr.rel (0) target = $region77
            $region76: #{custom-call.46} parent=61 // pred_region
              loop: start=0, step=1, limit=1
              $region78: #{custom-call.46} parent=76 // loop_pre_header
                _
              $region79: #{custom-call.46} parent=76 // loop_header
                %s195 = sphi 0, %s199
                %p196 = scmp.ge.s32.totalorder %s195, 1
                %s200 = sphi %s172, %s172
                %s201 = sphi %s174, %s174
              $region80: #{custom-call.46} parent=76 // loop_header_branch
                %198 = sbr.rel (%p196) target = $region84
              $region81: #{custom-call.46} parent=76 // loop_body
                %v202 = vld [vmem:[%s200] sm:$0xff]
                %203 = vst [vmem:[%s201] sm:$0xff] %v202
              $region82: #{custom-call.46} parent=76 // loop_footer
                %s199 = sadd.s32 1, %s195
              $region83: #{custom-call.46} parent=76 // loop_footer_branch
                %194 = sbr.rel target = $region79
              $region84: #{custom-call.46} parent=76 // loop_exit
                _
            $region77: #{custom-call.46} parent=61 // pred_fallthru
              _
            // Predicated region
            $region85: #{custom-call.46} parent=61 // pred_check
              _
            $region86: #{custom-call.46} parent=61 // pred_check_branch
              %205 = sbr.rel target = $region88
            $region87: #{custom-call.46} parent=61 // pred_region
              _
            $region88: #{custom-call.46} parent=61 // pred_fallthru
              _
          $region62: #{custom-call.46} parent=57 // pred_fallthru
            _
          // Predicated region
          $region63: #{custom-call.46} parent=57 // pred_check
            _
          $region64: #{custom-call.46} parent=57 // pred_check_branch
            %180 = sbr.rel target = $region66
          $region65: #{custom-call.46} parent=57 // pred_region
            loop: start=0, step=1, limit=1
            $region67: #{custom-call.46} parent=65 // loop_pre_header
              _
            $region68: #{custom-call.46} parent=65 // loop_header
              %s183 = sphi 0, %s187
              %p184 = scmp.ge.s32.totalorder %s183, 1
              %s188 = sphi %s172, %s172
              %s189 = sphi %s174, %s174
            $region69: #{custom-call.46} parent=65 // loop_header_branch
              %186 = sbr.rel (%p184) target = $region73
            $region70: #{custom-call.46} parent=65 // loop_body
              %v190 = vld [vmem:[%s188] sm:$0xff]
              %191 = vst [vmem:[%s189] sm:$0xff] %v190
            $region71: #{custom-call.46} parent=65 // loop_footer
              %s187 = sadd.s32 1, %s183
            $region72: #{custom-call.46} parent=65 // loop_footer_branch
              %182 = sbr.rel target = $region68
            $region73: #{custom-call.46} parent=65 // loop_exit
              _
          $region66: #{custom-call.46} parent=57 // pred_fallthru
            _
        $region58: #{custom-call.46} parent=53 // pred_fallthru
          _
        %206 = vnop
      $region54: #{custom-call.46} parent=5 // pred_fallthru
        _
      %p207 = scmp.le.s32.totalorder 2, %s3
      // Predicated region
      $region89: #{custom-call.46} parent=5 // pred_check
        %p208 = pneg %p207
      $region90: #{custom-call.46} parent=5 // pred_check_branch
        %210 = sbr.rel (%p208) target = $region92
      $region91: #{custom-call.46} parent=5 // pred_region
        %s211 = ssub.s32 %s3, 2
        %s212 = sand.u32 %s9, 1
        %s213 = sand.u32 %s9, 1
        %s214 = smul.addr %s213, 8
        %s215 = scalar_lea.vmem [#allocation1], %s214
      $region92: #{custom-call.46} parent=5 // pred_fallthru
        _
    $region6: #{custom-call.46} parent=1 // loop_footer
      %s7 = sadd.s32 1, %s3
    $region7: #{custom-call.46} parent=1 // loop_footer_branch
      %2 = sbr.rel target = $region3
    $region8: #{custom-call.46} parent=1 // loop_exit
      _

// kernel: custom-call.38
$region0: #{custom-call.38}
  %s0 = inlined_call_operand.hbm [shape: pred[4], index: 0, kind: output, shape index: {}]

// kernel: custom-call.43
$region0: #{custom-call.43}
  %s0 = inlined_call_operand.vmem [shape: f32[4,8,8], index: 0, kind: input, shape index: {}]
  %s1 = inlined_call_operand.vmem [shape: f32[4,8,8], index: 1, kind: output, shape index: {}]
  $region1: #{custom-call.43} parent=0
    #allocation0 [shape = 'u8[8192]{0}', space=vmem, size = 0x2000, scoped, tag = 'operand span for operand 0']
    #allocation1 [shape = 'u8[8192]{0}', space=vmem, size = 0x2000, scoped, tag = 'operand span for operand 1']
    loop: start=0, step=1, limit=6
    $region2: #{custom-call.43} parent=1 // loop_pre_header
      _
    $region3: #{custom-call.43} parent=1 // loop_header
      %s3 = sphi 0, %s7
      %p4 = scmp.ge.s32.totalorder %s3, 6
      %s10 = sphi 0, %s29
      %s11 = sphi 0, %s25
      %s12 = sphi 0, %s21
      %s13 = sphi 0, %s10
      %s14 = sphi 0, %s11
      %s15 = sphi 0, %s12
      %s16 = sphi 0, %s13
      %s17 = sphi 0, %s14
      %s18 = sphi 0, %s15
    $region4: #{custom-call.43} parent=1 // loop_header_branch
      %6 = sbr.rel (%p4) target = $region8
    $region5: #{custom-call.43} parent=1 // loop_body
      %s8 = ssub.s32 %s3, 1
      %s9 = ssub.s32 %s3, 2
      %s19 = sadd.s32 1, %s12
      %p20 = scmp.ge.s32.totalorder %s19, 1
      %s21 = scalar_select %p20, 0, %s19
      %s22 = sadd.s32 1, %s11
      %s23 = scalar_select %p20, %s22, %s11
      %p24 = scmp.ge.s32.totalorder %s23, 1
      %s25 = scalar_select %p24, 0, %s23
      %s26 = sadd.s32 1, %s10
      %s27 = scalar_select %p24, %s26, %s10
      %p28 = scmp.ge.s32.totalorder %s27, 4
      %s29 = scalar_select %p28, 0, %s27
      %p30 = scmp.le.s32.totalorder 1, %s3
      %p31 = scmp.lt.s32.totalorder %s3, 5
      %p32 = pnand %p30, %p31
      %p33 = pneg %p32
      // Predicated region
      $region9: #{custom-call.43} parent=5 // pred_check
        _
      $region10: #{custom-call.43} parent=5 // pred_check_branch
        %35 = sbr.rel (%p32) target = $region12
      $region11: #{custom-call.43} parent=5 // pred_region
        %s36 = ssub.s32 %s3, 1
      $region12: #{custom-call.43} parent=5 // pred_fallthru
        _
      %p37 = scmp.lt.s32.totalorder %s3, 4
      // Predicated region
      $region13: #{custom-call.43} parent=5 // pred_check
        %p38 = pneg %p37
      $region14: #{custom-call.43} parent=5 // pred_check_branch
        %40 = sbr.rel (%p38) target = $region16
      $region15: #{custom-call.43} parent=5 // pred_region
        %s41 = sand.u32 %s3, 1
        %s42 = sand.u32 %s3, 1
        %s43 = smul.addr %s42, 8
        %s44 = scalar_lea.vmem [#allocation0], %s43
        %s45 = sadd.s32 %s12, %s11
        %s46 = sadd.s32 %s45, %s10
        %s47 = smul.addr %s46, 8
        %s48 = scalar_lea.vmem %s0, %s47
        // Predicated region
        $region17: #{custom-call.43} parent=15 // pred_check
          _
        $region18: #{custom-call.43} parent=15 // pred_check_branch
          %50 = sbr.rel (0) target = $region20
        $region19: #{custom-call.43} parent=15 // pred_region
          // Predicated region
          $region21: #{custom-call.43} parent=19 // pred_check
            _
          $region22: #{custom-call.43} parent=19 // pred_check_branch
            %52 = sbr.rel (0) target = $region24
          $region23: #{custom-call.43} parent=19 // pred_region
            // Predicated region
            $region36: #{custom-call.43} parent=23 // pred_check
              _
            $region37: #{custom-call.43} parent=23 // pred_check_branch
              %67 = sbr.rel (0) target = $region39
            $region38: #{custom-call.43} parent=23 // pred_region
              loop: start=0, step=1, limit=1
              $region40: #{custom-call.43} parent=38 // loop_pre_header
                _
              $region41: #{custom-call.43} parent=38 // loop_header
                %s69 = sphi 0, %s73
                %p70 = scmp.ge.s32.totalorder %s69, 1
                %s74 = sphi %s48, %s48
                %s75 = sphi %s44, %s44
              $region42: #{custom-call.43} parent=38 // loop_header_branch
                %72 = sbr.rel (%p70) target = $region46
              $region43: #{custom-call.43} parent=38 // loop_body
                %v76 = vld [vmem:[%s74] sm:$0xff]
                %77 = vst [vmem:[%s75] sm:$0xff] %v76
              $region44: #{custom-call.43} parent=38 // loop_footer
                %s73 = sadd.s32 1, %s69
              $region45: #{custom-call.43} parent=38 // loop_footer_branch
                %68 = sbr.rel target = $region41
              $region46: #{custom-call.43} parent=38 // loop_exit
                _
            $region39: #{custom-call.43} parent=23 // pred_fallthru
              _
            // Predicated region
            $region47: #{custom-call.43} parent=23 // pred_check
              _
            $region48: #{custom-call.43} parent=23 // pred_check_branch
              %79 = sbr.rel target = $region50
            $region49: #{custom-call.43} parent=23 // pred_region
              _
            $region50: #{custom-call.43} parent=23 // pred_fallthru
              _
          $region24: #{custom-call.43} parent=19 // pred_fallthru
            _
          // Predicated region
          $region25: #{custom-call.43} parent=19 // pred_check
            _
          $region26: #{custom-call.43} parent=19 // pred_check_branch
            %54 = sbr.rel target = $region28
          $region27: #{custom-call.43} parent=19 // pred_region
            loop: start=0, step=1, limit=1
            $region29: #{custom-call.43} parent=27 // loop_pre_header
              _
            $region30: #{custom-call.43} parent=27 // loop_header
              %s57 = sphi 0, %s61
              %p58 = scmp.ge.s32.totalorder %s57, 1
              %s62 = sphi %s48, %s48
              %s63 = sphi %s44, %s44
            $region31: #{custom-call.43} parent=27 // loop_header_branch
              %60 = sbr.rel (%p58) target = $region35
            $region32: #{custom-call.43} parent=27 // loop_body
              %v64 = vld [vmem:[%s62] sm:$0xff]
              %65 = vst [vmem:[%s63] sm:$0xff] %v64
            $region33: #{custom-call.43} parent=27 // loop_footer
              %s61 = sadd.s32 1, %s57
            $region34: #{custom-call.43} parent=27 // loop_footer_branch
              %56 = sbr.rel target = $region30
            $region35: #{custom-call.43} parent=27 // loop_exit
              _
          $region28: #{custom-call.43} parent=19 // pred_fallthru
            _
        $region20: #{custom-call.43} parent=15 // pred_fallthru
          _
        %80 = vnop
      $region16: #{custom-call.43} parent=5 // pred_fallthru
        _
      %p81 = scmp.le.s32.totalorder 1, %s3
      %p82 = scmp.lt.s32.totalorder %s3, 5
      %p83 = pnand %p81, %p82
      %p84 = pneg %p83
      // Predicated region
      $region51: #{custom-call.43} parent=5 // pred_check
        _
      $region52: #{custom-call.43} parent=5 // pred_check_branch
        %86 = sbr.rel (%p83) target = $region54
      $region53: #{custom-call.43} parent=5 // pred_region
        %s87 = ssub.s32 %s3, 1
        %s88 = sand.u32 %s8, 1
        %s89 = sand.u32 %s8, 1
        %s90 = smul.addr %s89, 8
        %s91 = scalar_lea.vmem [#allocation0], %s90
        %s92 = sand.u32 %s8, 1
        %s93 = sand.u32 %s8, 1
        %s94 = smul.addr %s93, 8
        %s95 = scalar_lea.vmem [#allocation0], %s94
        %s96 = sand.u32 %s8, 1
        %s97 = sand.u32 %s8, 1
        %s98 = smul.addr %s97, 8
        %s99 = scalar_lea.vmem [#allocation1], %s98
        %100 = vst [vmem:[%s99] sm:$0xff] 0.0
        %vm101 = vcmask 7168
        %v102 = vld [vmem:[%s99] ss:$0 sm:$0xff]
        %v103 = vld [vmem:[%s91] ss:$0 sm:$0xff]
        %v104 = vmul.f32 %v102, %v102
        %105 = vadd.xlane.f32.xlu0 %v104
        %v106 = vpop.xlane.xlu0 %105
        %v107 = vsub.f32 %v103, %v106
        %v108 = vrsqrt.pop %v107
        %v109 = vld [vmem:[%s91] sm:$0xff]
        %v110 = vld [vmem:[%s99] sm:$0xff]
        %v111 = vmul.f32 %v110, %v102
        %112 = vadd.xlane.f32.xlu0 %v111
        %v113 = vpop.xlane.xlu0 %112
        %v114 = vsub.f32 %v109, %v113
        %v115 = vmul.f32 %v114, %v108
        %v116 = vsel %vm101, %v115, 0.0
        %v117 = vadd.f32 %v110, %v116
        %118 = vst [vmem:[%s99] sm:$0xff] %v117
        %vm119 = vcmask 15368
        %s120 = scalar_lea.vmem %s99, 1 [#allocation1]
        %v121 = vld [vmem:[%s120] ss:$0 sm:$0xff]
        %s122 = scalar_lea.vmem %s91, 1 [#allocation0]
        %v123 = vld [vmem:[%s122] ss:$0 sm:$0xff]
        %v124 = vmul.f32 %v121, %v121
        %125 = vadd.xlane.f32.xlu0 %v124
        %v126 = vpop.xlane.xlu0 %125
        %v127 = vsub.f32 %v123, %v126
        %v128 = vrsqrt.pop %v127
        %v129 = vld [vmem:[%s91] sm:$0xff]
        %v130 = vld [vmem:[%s99] sm:$0xff]
        %v131 = vmul.f32 %v130, %v121
        %132 = vadd.xlane.f32.xlu0 %v131
        %v133 = vpop.xlane.xlu0 %132
        %v134 = vsub.f32 %v129, %v133
        %v135 = vmul.f32 %v134, %v128
        %vm136 = vcmask 1047553
        %vm137 = vmand %vm119, %vm136
        %v138 = vsel %vm137, %v135, 0.0
        %v139 = vadd.f32 %v130, %v138
        %140 = vst [vmem:[%s99] sm:$0xff] %v139
        %vm141 = vcmask 23568
        %s142 = scalar_lea.vmem %s99, 2 [#allocation1]
        %v143 = vld [vmem:[%s142] ss:$0 sm:$0xff]
        %s144 = scalar_lea.vmem %s91, 2 [#allocation0]
        %v145 = vld [vmem:[%s144] ss:$0 sm:$0xff]
        %v146 = vmul.f32 %v143, %v143
        %147 = vadd.xlane.f32.xlu0 %v146
        %v148 = vpop.xlane.xlu0 %147
        %v149 = vsub.f32 %v145, %v148
        %v150 = vrsqrt.pop %v149
        %v151 = vld [vmem:[%s91] sm:$0xff]
        %v152 = vld [vmem:[%s99] sm:$0xff]
        %v153 = vmul.f32 %v152, %v143
        %154 = vadd.xlane.f32.xlu0 %v153
        %v155 = vpop.xlane.xlu0 %154
        %v156 = vsub.f32 %v151, %v155
        %v157 = vmul.f32 %v156, %v150
        %vm158 = vcmask 1047554
        %vm159 = vmand %vm141, %vm158
        %v160 = vsel %vm159, %v157, 0.0
        %v161 = vadd.f32 %v152, %v160
        %162 = vst [vmem:[%s99] sm:$0xff] %v161
        %vm163 = vcmask 31768
        %s164 = scalar_lea.vmem %s99, 3 [#allocation1]
        %v165 = vld [vmem:[%s164] ss:$0 sm:$0xff]
        %s166 = scalar_lea.vmem %s91, 3 [#allocation0]
        %v167 = vld [vmem:[%s166] ss:$0 sm:$0xff]
        %v168 = vmul.f32 %v165, %v165
        %169 = vadd.xlane.f32.xlu0 %v168
        %v170 = vpop.xlane.xlu0 %169
        %v171 = vsub.f32 %v167, %v170
        %v172 = vrsqrt.pop %v171
        %v173 = vld [vmem:[%s91] sm:$0xff]
        %v174 = vld [vmem:[%s99] sm:$0xff]
        %v175 = vmul.f32 %v174, %v165
        %176 = vadd.xlane.f32.xlu0 %v175
        %v177 = vpop.xlane.xlu0 %176
        %v178 = vsub.f32 %v173, %v177
        %v179 = vmul.f32 %v178, %v172
        %vm180 = vcmask 1047555
        %vm181 = vmand %vm163, %vm180
        %v182 = vsel %vm181, %v179, 0.0
        %v183 = vadd.f32 %v174, %v182
        %184 = vst [vmem:[%s99] sm:$0xff] %v183
        %vm185 = vcmask 39968
        %s186 = scalar_lea.vmem %s99, 4 [#allocation1]
        %v187 = vld [vmem:[%s186] ss:$0 sm:$0xff]
        %s188 = scalar_lea.vmem %s91, 4 [#allocation0]
        %v189 = vld [vmem:[%s188] ss:$0 sm:$0xff]
        %v190 = vmul.f32 %v187, %v187
        %191 = vadd.xlane.f32.xlu0 %v190
        %v192 = vpop.xlane.xlu0 %191
        %v193 = vsub.f32 %v189, %v192
        %v194 = vrsqrt.pop %v193
        %v195 = vld [vmem:[%s91] sm:$0xff]
        %v196 = vld [vmem:[%s99] sm:$0xff]
        %v197 = vmul.f32 %v196, %v187
        %198 = vadd.xlane.f32.xlu0 %v197
        %v199 = vpop.xlane.xlu0 %198
        %v200 = vsub.f32 %v195, %v199
        %v201 = vmul.f32 %v200, %v194
        %vm202 = vcmask 1047556
        %vm203 = vmand %vm185, %vm202
        %v204 = vsel %vm203, %v201, 0.0
        %v205 = vadd.f32 %v196, %v204
        %206 = vst [vmem:[%s99] sm:$0xff] %v205
        %vm207 = vcmask 48168
        %s208 = scalar_lea.vmem %s99, 5 [#allocation1]
        %v209 = vld [vmem:[%s208] ss:$0 sm:$0xff]
        %s210 = scalar_lea.vmem %s91, 5 [#allocation0]
        %v211 = vld [vmem:[%s210] ss:$0 sm:$0xff]
        %v212 = vmul.f32 %v209, %v209
        %213 = vadd.xlane.f32.xlu0 %v212
        %v214 = vpop.xlane.xlu0 %213
        %v215 = vsub.f32 %v211, %v214
        %v216 = vrsqrt.pop %v215
        %v217 = vld [vmem:[%s91] sm:$0xff]
        %v218 = vld [vmem:[%s99] sm:$0xff]
        %v219 = vmul.f32 %v218, %v209
        %220 = vadd.xlane.f32.xlu0 %v219
        %v221 = vpop.xlane.xlu0 %220
        %v222 = vsub.f32 %v217, %v221
        %v223 = vmul.f32 %v222, %v216
        %vm224 = vcmask 1047557
        %vm225 = vmand %vm207, %vm224
        %v226 = vsel %vm225, %v223, 0.0
        %v227 = vadd.f32 %v218, %v226
        %228 = vst [vmem:[%s99] sm:$0xff] %v227
        %vm229 = vcmask 56368
        %s230 = scalar_lea.vmem %s99, 6 [#allocation1]
        %v231 = vld [vmem:[%s230] ss:$0 sm:$0xff]
        %s232 = scalar_lea.vmem %s91, 6 [#allocation0]
        %v233 = vld [vmem:[%s232] ss:$0 sm:$0xff]
        %v234 = vmul.f32 %v231, %v231
        %235 = vadd.xlane.f32.xlu0 %v234
        %v236 = vpop.xlane.xlu0 %235
        %v237 = vsub.f32 %v233, %v236
        %v238 = vrsqrt.pop %v237
        %v239 = vld [vmem:[%s91] sm:$0xff]
        %v240 = vld [vmem:[%s99] sm:$0xff]
        %v241 = vmul.f32 %v240, %v231
        %242 = vadd.xlane.f32.xlu0 %v241
        %v243 = vpop.xlane.xlu0 %242
        %v244 = vsub.f32 %v239, %v243
        %v245 = vmul.f32 %v244, %v238
        %vm246 = vcmask 1047558
        %vm247 = vmand %vm229, %vm246
        %v248 = vsel %vm247, %v245, 0.0
        %v249 = vadd.f32 %v240, %v248
        %250 = vst [vmem:[%s99] sm:$0xff] %v249
        %vm251 = vcmask 64568
        %s252 = scalar_lea.vmem %s99, 7 [#allocation1]
        %v253 = vld [vmem:[%s252] ss:$0 sm:$0xff]
        %s254 = scalar_lea.vmem %s91, 7 [#allocation0]
        %v255 = vld [vmem:[%s254] ss:$0 sm:$0xff]
        %v256 = vmul.f32 %v253, %v253
        %257 = vadd.xlane.f32.xlu0 %v256
        %v258 = vpop.xlane.xlu0 %257
        %v259 = vsub.f32 %v255, %v258
        %v260 = vrsqrt.pop %v259
        %v261 = vld [vmem:[%s91] sm:$0xff]
        %v262 = vld [vmem:[%s99] sm:$0xff]
        %v263 = vmul.f32 %v262, %v253
        %264 = vadd.xlane.f32.xlu0 %v263
        %v265 = vpop.xlane.xlu0 %264
        %v266 = vsub.f32 %v261, %v265
        %v267 = vmul.f32 %v266, %v260
        %vm268 = vcmask 1047559
        %vm269 = vmand %vm251, %vm268
        %v270 = vsel %vm269, %v267, 0.0
        %v271 = vadd.f32 %v262, %v270
        %272 = vst [vmem:[%s99] sm:$0xff] %v271
        %s273 = sand.u32 %s8, 1
        %s274 = sand.u32 %s8, 1
        %s275 = smul.addr %s274, 8
        %s276 = scalar_lea.vmem [#allocation1], %s275
        %s277 = sadd.s32 %s15, %s14
        %s278 = sadd.s32 %s277, %s13
        %s279 = smul.addr %s278, 8
        %s280 = scalar_lea.vmem %s1, %s279
        // Predicated region
        $region55: #{custom-call.43} parent=53 // pred_check
          _
        $region56: #{custom-call.43} parent=53 // pred_check_branch
          %282 = sbr.rel (0) target = $region58
        $region57: #{custom-call.43} parent=53 // pred_region
          // Predicated region
          $region59: #{custom-call.43} parent=57 // pred_check
            _
          $region60: #{custom-call.43} parent=57 // pred_check_branch
            %284 = sbr.rel (0) target = $region62
          $region61: #{custom-call.43} parent=57 // pred_region
            // Predicated region
            $region74: #{custom-call.43} parent=61 // pred_check
              _
            $region75: #{custom-call.43} parent=61 // pred_check_branch
              %299 = sbr.rel (0) target = $region77
            $region76: #{custom-call.43} parent=61 // pred_region
              loop: start=0, step=1, limit=1
              $region78: #{custom-call.43} parent=76 // loop_pre_header
                _
              $region79: #{custom-call.43} parent=76 // loop_header
                %s301 = sphi 0, %s305
                %p302 = scmp.ge.s32.totalorder %s301, 1
                %s306 = sphi %s276, %s276
                %s307 = sphi %s280, %s280
              $region80: #{custom-call.43} parent=76 // loop_header_branch
                %304 = sbr.rel (%p302) target = $region84
              $region81: #{custom-call.43} parent=76 // loop_body
                %v308 = vld [vmem:[%s306] sm:$0xff]
                %309 = vst [vmem:[%s307] sm:$0xff] %v308
              $region82: #{custom-call.43} parent=76 // loop_footer
                %s305 = sadd.s32 1, %s301
              $region83: #{custom-call.43} parent=76 // loop_footer_branch
                %300 = sbr.rel target = $region79
              $region84: #{custom-call.43} parent=76 // loop_exit
                _
            $region77: #{custom-call.43} parent=61 // pred_fallthru
              _
            // Predicated region
            $region85: #{custom-call.43} parent=61 // pred_check
              _
            $region86: #{custom-call.43} parent=61 // pred_check_branch
              %311 = sbr.rel target = $region88
            $region87: #{custom-call.43} parent=61 // pred_region
              _
            $region88: #{custom-call.43} parent=61 // pred_fallthru
              _
          $region62: #{custom-call.43} parent=57 // pred_fallthru
            _
          // Predicated region
          $region63: #{custom-call.43} parent=57 // pred_check
            _
          $region64: #{custom-call.43} parent=57 // pred_check_branch
            %286 = sbr.rel target = $region66
          $region65: #{custom-call.43} parent=57 // pred_region
            loop: start=0, step=1, limit=1
            $region67: #{custom-call.43} parent=65 // loop_pre_header
              _
            $region68: #{custom-call.43} parent=65 // loop_header
              %s289 = sphi 0, %s293
              %p290 = scmp.ge.s32.totalorder %s289, 1
              %s294 = sphi %s276, %s276
              %s295 = sphi %s280, %s280
            $region69: #{custom-call.43} parent=65 // loop_header_branch
              %292 = sbr.rel (%p290) target = $region73
            $region70: #{custom-call.43} parent=65 // loop_body
              %v296 = vld [vmem:[%s294] sm:$0xff]
              %297 = vst [vmem:[%s295] sm:$0xff] %v296
            $region71: #{custom-call.43} parent=65 // loop_footer
              %s293 = sadd.s32 1, %s289
            $region72: #{custom-call.43} parent=65 // loop_footer_branch
              %288 = sbr.rel target = $region68
            $region73: #{custom-call.43} parent=65 // loop_exit
              _
          $region66: #{custom-call.43} parent=57 // pred_fallthru
            _
        $region58: #{custom-call.43} parent=53 // pred_fallthru
          _
        %312 = vnop
      $region54: #{custom-call.43} parent=5 // pred_fallthru
        _
      %p313 = scmp.le.s32.totalorder 2, %s3
      // Predicated region
      $region89: #{custom-call.43} parent=5 // pred_check
        %p314 = pneg %p313
      $region90: #{custom-call.43} parent=5 // pred_check_branch
        %316 = sbr.rel (%p314) target = $region92
      $region91: #{custom-call.43} parent=5 // pred_region
        %s317 = ssub.s32 %s3, 2
        %s318 = sand.u32 %s9, 1
        %s319 = sand.u32 %s9, 1
        %s320 = smul.addr %s319, 8
        %s321 = scalar_lea.vmem [#allocation1], %s320
      $region92: #{custom-call.43} parent=5 // pred_fallthru
        _
    $region6: #{custom-call.43} parent=1 // loop_footer
      %s7 = sadd.s32 1, %s3
    $region7: #{custom-call.43} parent=1 // loop_footer_branch
      %2 = sbr.rel target = $region3
    $region8: #{custom-call.43} parent=1 // loop_exit
      _

// kernel: custom-call.44
$region0: #{custom-call.44}
  %s0 = inlined_call_operand.vmem [shape: f32[4,1,8,8], index: 0, kind: input, shape index: {}]
  %s1 = inlined_call_operand.vmem [shape: f32[4,1,8,8], index: 1, kind: output, shape index: {}]
  $region1: #{custom-call.44} parent=0
    #allocation0 [shape = 'u8[8192]{0}', space=vmem, size = 0x2000, scoped, tag = 'operand span for operand 0']
    #allocation1 [shape = 'u8[8192]{0}', space=vmem, size = 0x2000, scoped, tag = 'operand span for operand 1']
    loop: start=0, step=1, limit=6
    $region2: #{custom-call.44} parent=1 // loop_pre_header
      _
    $region3: #{custom-call.44} parent=1 // loop_header
      %s3 = sphi 0, %s7
      %p4 = scmp.ge.s32.totalorder %s3, 6
      %s10 = sphi 0, %s36
      %s11 = sphi 0, %s32
      %s12 = sphi 0, %s28
      %s13 = sphi 0, %s24
      %s14 = sphi 0, %s10
      %s15 = sphi 0, %s11
      %s16 = sphi 0, %s12
      %s17 = sphi 0, %s13
      %s18 = sphi 0, %s14
      %s19 = sphi 0, %s15
      %s20 = sphi 0, %s16
      %s21 = sphi 0, %s17
    $region4: #{custom-call.44} parent=1 // loop_header_branch
      %6 = sbr.rel (%p4) target = $region8
    $region5: #{custom-call.44} parent=1 // loop_body
      %s8 = ssub.s32 %s3, 1
      %s9 = ssub.s32 %s3, 2
      %s22 = sadd.s32 1, %s13
      %p23 = scmp.ge.s32.totalorder %s22, 1
      %s24 = scalar_select %p23, 0, %s22
      %s25 = sadd.s32 1, %s12
      %s26 = scalar_select %p23, %s25, %s12
      %p27 = scmp.ge.s32.totalorder %s26, 1
      %s28 = scalar_select %p27, 0, %s26
      %s29 = sadd.s32 1, %s11
      %s30 = scalar_select %p27, %s29, %s11
      %p31 = scmp.ge.s32.totalorder %s30, 1
      %s32 = scalar_select %p31, 0, %s30
      %s33 = sadd.s32 1, %s10
      %s34 = scalar_select %p31, %s33, %s10
      %p35 = scmp.ge.s32.totalorder %s34, 4
      %s36 = scalar_select %p35, 0, %s34
      %p37 = scmp.le.s32.totalorder 1, %s3
      %p38 = scmp.lt.s32.totalorder %s3, 5
      %p39 = pnand %p37, %p38
      %p40 = pneg %p39
      // Predicated region
      $region9: #{custom-call.44} parent=5 // pred_check
        _
      $region10: #{custom-call.44} parent=5 // pred_check_branch
        %42 = sbr.rel (%p39) target = $region12
      $region11: #{custom-call.44} parent=5 // pred_region
        %s43 = ssub.s32 %s3, 1
      $region12: #{custom-call.44} parent=5 // pred_fallthru
        _
      %p44 = scmp.lt.s32.totalorder %s3, 4
      // Predicated region
      $region13: #{custom-call.44} parent=5 // pred_check
        %p45 = pneg %p44
      $region14: #{custom-call.44} parent=5 // pred_check_branch
        %47 = sbr.rel (%p45) target = $region16
      $region15: #{custom-call.44} parent=5 // pred_region
        %s48 = sand.u32 %s3, 1
        %s49 = sand.u32 %s3, 1
        %s50 = smul.addr %s49, 8
        %s51 = scalar_lea.vmem [#allocation0], %s50
        %s52 = sadd.s32 %s13, %s12
        %s53 = sadd.s32 %s52, %s11
        %s54 = sadd.s32 %s53, %s10
        %s55 = smul.addr %s54, 8
        %s56 = scalar_lea.vmem %s0, %s55
        // Predicated region
        $region17: #{custom-call.44} parent=15 // pred_check
          _
        $region18: #{custom-call.44} parent=15 // pred_check_branch
          %58 = sbr.rel (0) target = $region20
        $region19: #{custom-call.44} parent=15 // pred_region
          // Predicated region
          $region21: #{custom-call.44} parent=19 // pred_check
            _
          $region22: #{custom-call.44} parent=19 // pred_check_branch
            %60 = sbr.rel (0) target = $region24
          $region23: #{custom-call.44} parent=19 // pred_region
            // Predicated region
            $region36: #{custom-call.44} parent=23 // pred_check
              _
            $region37: #{custom-call.44} parent=23 // pred_check_branch
              %75 = sbr.rel (0) target = $region39
            $region38: #{custom-call.44} parent=23 // pred_region
              loop: start=0, step=1, limit=1
              $region40: #{custom-call.44} parent=38 // loop_pre_header
                _
              $region41: #{custom-call.44} parent=38 // loop_header
                %s77 = sphi 0, %s81
                %p78 = scmp.ge.s32.totalorder %s77, 1
                %s82 = sphi %s56, %s56
                %s83 = sphi %s51, %s51
              $region42: #{custom-call.44} parent=38 // loop_header_branch
                %80 = sbr.rel (%p78) target = $region46
              $region43: #{custom-call.44} parent=38 // loop_body
                %v84 = vld [vmem:[%s82] sm:$0xff]
                %85 = vst [vmem:[%s83] sm:$0xff] %v84
              $region44: #{custom-call.44} parent=38 // loop_footer
                %s81 = sadd.s32 1, %s77
              $region45: #{custom-call.44} parent=38 // loop_footer_branch
                %76 = sbr.rel target = $region41
              $region46: #{custom-call.44} parent=38 // loop_exit
                _
            $region39: #{custom-call.44} parent=23 // pred_fallthru
              _
            // Predicated region
            $region47: #{custom-call.44} parent=23 // pred_check
              _
            $region48: #{custom-call.44} parent=23 // pred_check_branch
              %87 = sbr.rel target = $region50
            $region49: #{custom-call.44} parent=23 // pred_region
              _
            $region50: #{custom-call.44} parent=23 // pred_fallthru
              _
          $region24: #{custom-call.44} parent=19 // pred_fallthru
            _
          // Predicated region
          $region25: #{custom-call.44} parent=19 // pred_check
            _
          $region26: #{custom-call.44} parent=19 // pred_check_branch
            %62 = sbr.rel target = $region28
          $region27: #{custom-call.44} parent=19 // pred_region
            loop: start=0, step=1, limit=1
            $region29: #{custom-call.44} parent=27 // loop_pre_header
              _
            $region30: #{custom-call.44} parent=27 // loop_header
              %s65 = sphi 0, %s69
              %p66 = scmp.ge.s32.totalorder %s65, 1
              %s70 = sphi %s56, %s56
              %s71 = sphi %s51, %s51
            $region31: #{custom-call.44} parent=27 // loop_header_branch
              %68 = sbr.rel (%p66) target = $region35
            $region32: #{custom-call.44} parent=27 // loop_body
              %v72 = vld [vmem:[%s70] sm:$0xff]
              %73 = vst [vmem:[%s71] sm:$0xff] %v72
            $region33: #{custom-call.44} parent=27 // loop_footer
              %s69 = sadd.s32 1, %s65
            $region34: #{custom-call.44} parent=27 // loop_footer_branch
              %64 = sbr.rel target = $region30
            $region35: #{custom-call.44} parent=27 // loop_exit
              _
          $region28: #{custom-call.44} parent=19 // pred_fallthru
            _
        $region20: #{custom-call.44} parent=15 // pred_fallthru
          _
        %88 = vnop
      $region16: #{custom-call.44} parent=5 // pred_fallthru
        _
      %p89 = scmp.le.s32.totalorder 1, %s3
      %p90 = scmp.lt.s32.totalorder %s3, 5
      %p91 = pnand %p89, %p90
      %p92 = pneg %p91
      // Predicated region
      $region51: #{custom-call.44} parent=5 // pred_check
        _
      $region52: #{custom-call.44} parent=5 // pred_check_branch
        %94 = sbr.rel (%p91) target = $region54
      $region53: #{custom-call.44} parent=5 // pred_region
        #allocation2 [shape = 'f32[8,8]{1,0}', space=vmem, size = 0x1000, scoped, tag = 'rescaled input a']
        %s95 = ssub.s32 %s3, 1
        %s96 = sand.u32 %s8, 1
        %s97 = sand.u32 %s8, 1
        %s98 = smul.addr %s97, 8
        %s99 = scalar_lea.vmem [#allocation0], %s98
        %s100 = sand.u32 %s8, 1
        %s101 = sand.u32 %s8, 1
        %s102 = smul.addr %s101, 8
        %s103 = scalar_lea.vmem [#allocation0], %s102
        %s104 = sand.u32 %s8, 1
        %s105 = sand.u32 %s8, 1
        %s106 = smul.addr %s105, 8
        %s107 = scalar_lea.vmem [#allocation1], %s106
        %v108 = vlaneseq
        %v109 = vand.u32 %v108, 127
        %vm110 = vcmp.lt.s32.totalorder %v109, 8
        %v111 = vlaneseq
        %v112 = vshrl.u32 %v111, 7
        %vm114 = vcmp.eq.s32.totalorder %v112, %v109
        %v115 = vld [vmem:[%s99] sm:$0xff]
        %v116 = vsel %vm114, %v115, 0.0
        %117 = vadd.xlane.f32.xlu0 %v116
        %v118 = vpop.xlane.xlu0 %117
        %vm119 = vcmp.ge.s32.totalorder %v112, %v109
        %vm120 = vmand %vm119, %vm110
        %v121 = vsel %vm120, %v115, 0.0
        %v122 = vrcp.pop %v118
        %v123 = vmul.f32 %v121, %v122
        %124 = vst [vmem:[#allocation2] sm:$0xff] %v123
        %v125 = vlaneseq
        %v126 = vand.u32 %v125, 127
        %v127 = vlaneseq
        %v128 = vshrl.u32 %v127, 7
        %vm130 = vcmp.eq.s32.totalorder %v126, %v128
        %v131 = vlaneseq
        %v132 = vand.u32 %v131, 127
        %vm133 = vcmp.eq.s32.totalorder %v132, 0
        %v134 = vsel %vm133, 1.0, -1.0
        %v135 = vsel %vm130, %v134, 0.0
        %s136 = scalar_lea.vmem [#allocation2], 1
        %v137 = vld [vmem:[%s136] ss:$0 sm:$0xff]
        %v138 = vxor.u32 %v137, 2147483648
        %v139 = vlaneseq
        %v140 = vand.u32 %v139, 127
        %vm141 = vcmp.eq.s32.totalorder %v140, 1
        %v142 = vmul.f32 %v138, %v135
        %143 = vadd.xlane.f32.xlu0 %v142
        %v144 = vpop.xlane.xlu0 %143
        %v145 = vsel %vm141, %v144, %v135
        %s146 = scalar_lea.vmem [#allocation2], 2
        %v147 = vld [vmem:[%s146] ss:$0 sm:$0xff]
        %v148 = vxor.u32 %v147, 2147483648
        %v149 = vlaneseq
        %v150 = vand.u32 %v149, 127
        %vm151 = vcmp.eq.s32.totalorder %v150, 2
        %v152 = vmul.f32 %v148, %v145
        %153 = vadd.xlane.f32.xlu0 %v152
        %v154 = vpop.xlane.xlu0 %153
        %v155 = vsel %vm151, %v154, %v145
        %s156 = scalar_lea.vmem [#allocation2], 3
        %v157 = vld [vmem:[%s156] ss:$0 sm:$0xff]
        %v158 = vxor.u32 %v157, 2147483648
        %v159 = vlaneseq
        %v160 = vand.u32 %v159, 127
        %vm161 = vcmp.eq.s32.totalorder %v160, 3
        %v162 = vmul.f32 %v158, %v155
        %163 = vadd.xlane.f32.xlu0 %v162
        %v164 = vpop.xlane.xlu0 %163
        %v165 = vsel %vm161, %v164, %v155
        %s166 = scalar_lea.vmem [#allocation2], 4
        %v167 = vld [vmem:[%s166] ss:$0 sm:$0xff]
        %v168 = vxor.u32 %v167, 2147483648
        %v169 = vlaneseq
        %v170 = vand.u32 %v169, 127
        %vm171 = vcmp.eq.s32.totalorder %v170, 4
        %v172 = vmul.f32 %v168, %v165
        %173 = vadd.xlane.f32.xlu0 %v172
        %v174 = vpop.xlane.xlu0 %173
        %v175 = vsel %vm171, %v174, %v165
        %s176 = scalar_lea.vmem [#allocation2], 5
        %v177 = vld [vmem:[%s176] ss:$0 sm:$0xff]
        %v178 = vxor.u32 %v177, 2147483648
        %v179 = vlaneseq
        %v180 = vand.u32 %v179, 127
        %vm181 = vcmp.eq.s32.totalorder %v180, 5
        %v182 = vmul.f32 %v178, %v175
        %183 = vadd.xlane.f32.xlu0 %v182
        %v184 = vpop.xlane.xlu0 %183
        %v185 = vsel %vm181, %v184, %v175
        %s186 = scalar_lea.vmem [#allocation2], 6
        %v187 = vld [vmem:[%s186] ss:$0 sm:$0xff]
        %v188 = vxor.u32 %v187, 2147483648
        %v189 = vlaneseq
        %v190 = vand.u32 %v189, 127
        %vm191 = vcmp.eq.s32.totalorder %v190, 6
        %v192 = vmul.f32 %v188, %v185
        %193 = vadd.xlane.f32.xlu0 %v192
        %v194 = vpop.xlane.xlu0 %193
        %v195 = vsel %vm191, %v194, %v185
        %s196 = scalar_lea.vmem [#allocation2], 7
        %v197 = vld [vmem:[%s196] ss:$0 sm:$0xff]
        %v198 = vxor.u32 %v197, 2147483648
        %v199 = vlaneseq
        %v200 = vand.u32 %v199, 127
        %vm201 = vcmp.eq.s32.totalorder %v200, 7
        %v202 = vmul.f32 %v198, %v195
        %203 = vadd.xlane.f32.xlu0 %v202
        %v204 = vpop.xlane.xlu0 %203
        %v205 = vsel %vm201, %v204, %v195
        %v206 = vrcp.pop %v118
        %v207 = vmul.f32 %v205, %v206
        %vm208 = vweird.f32 %v118
        %v209 = vsel %vm208, %v205, %v207
        %210 = vst [vmem:[%s107] sm:$0xff] %v209
        %s211 = sand.u32 %s8, 1
        %s212 = sand.u32 %s8, 1
        %s213 = smul.addr %s212, 8
        %s214 = scalar_lea.vmem [#allocation1], %s213
        %s215 = sadd.s32 %s17, %s16
        %s216 = sadd.s32 %s215, %s15
        %s217 = sadd.s32 %s216, %s14
        %s218 = smul.addr %s217, 8
        %s219 = scalar_lea.vmem %s1, %s218
        // Predicated region
        $region55: #{custom-call.44} parent=53 // pred_check
          _
        $region56: #{custom-call.44} parent=53 // pred_check_branch
          %221 = sbr.rel (0) target = $region58
        $region57: #{custom-call.44} parent=53 // pred_region
          // Predicated region
          $region59: #{custom-call.44} parent=57 // pred_check
            _
          $region60: #{custom-call.44} parent=57 // pred_check_branch
            %223 = sbr.rel (0) target = $region62
          $region61: #{custom-call.44} parent=57 // pred_region
            // Predicated region
            $region74: #{custom-call.44} parent=61 // pred_check
              _
            $region75: #{custom-call.44} parent=61 // pred_check_branch
              %238 = sbr.rel (0) target = $region77
            $region76: #{custom-call.44} parent=61 // pred_region
              loop: start=0, step=1, limit=1
              $region78: #{custom-call.44} parent=76 // loop_pre_header
                _
              $region79: #{custom-call.44} parent=76 // loop_header
                %s240 = sphi 0, %s244
                %p241 = scmp.ge.s32.totalorder %s240, 1
                %s245 = sphi %s214, %s214
                %s246 = sphi %s219, %s219
              $region80: #{custom-call.44} parent=76 // loop_header_branch
                %243 = sbr.rel (%p241) target = $region84
              $region81: #{custom-call.44} parent=76 // loop_body
                %v247 = vld [vmem:[%s245] sm:$0xff]
                %248 = vst [vmem:[%s246] sm:$0xff] %v247
              $region82: #{custom-call.44} parent=76 // loop_footer
                %s244 = sadd.s32 1, %s240
              $region83: #{custom-call.44} parent=76 // loop_footer_branch
                %239 = sbr.rel target = $region79
              $region84: #{custom-call.44} parent=76 // loop_exit
                _
            $region77: #{custom-call.44} parent=61 // pred_fallthru
              _
            // Predicated region
            $region85: #{custom-call.44} parent=61 // pred_check
              _
            $region86: #{custom-call.44} parent=61 // pred_check_branch
              %250 = sbr.rel target = $region88
            $region87: #{custom-call.44} parent=61 // pred_region
              _
            $region88: #{custom-call.44} parent=61 // pred_fallthru
              _
          $region62: #{custom-call.44} parent=57 // pred_fallthru
            _
          // Predicated region
          $region63: #{custom-call.44} parent=57 // pred_check
            _
          $region64: #{custom-call.44} parent=57 // pred_check_branch
            %225 = sbr.rel target = $region66
          $region65: #{custom-call.44} parent=57 // pred_region
            loop: start=0, step=1, limit=1
            $region67: #{custom-call.44} parent=65 // loop_pre_header
              _
            $region68: #{custom-call.44} parent=65 // loop_header
              %s228 = sphi 0, %s232
              %p229 = scmp.ge.s32.totalorder %s228, 1
              %s233 = sphi %s214, %s214
              %s234 = sphi %s219, %s219
            $region69: #{custom-call.44} parent=65 // loop_header_branch
              %231 = sbr.rel (%p229) target = $region73
            $region70: #{custom-call.44} parent=65 // loop_body
              %v235 = vld [vmem:[%s233] sm:$0xff]
              %236 = vst [vmem:[%s234] sm:$0xff] %v235
            $region71: #{custom-call.44} parent=65 // loop_footer
              %s232 = sadd.s32 1, %s228
            $region72: #{custom-call.44} parent=65 // loop_footer_branch
              %227 = sbr.rel target = $region68
            $region73: #{custom-call.44} parent=65 // loop_exit
              _
          $region66: #{custom-call.44} parent=57 // pred_fallthru
            _
        $region58: #{custom-call.44} parent=53 // pred_fallthru
          _
        %251 = vnop
      $region54: #{custom-call.44} parent=5 // pred_fallthru
        _
      %p252 = scmp.le.s32.totalorder 2, %s3
      // Predicated region
      $region89: #{custom-call.44} parent=5 // pred_check
        %p253 = pneg %p252
      $region90: #{custom-call.44} parent=5 // pred_check_branch
        %255 = sbr.rel (%p253) target = $region92
      $region91: #{custom-call.44} parent=5 // pred_region
        %s256 = ssub.s32 %s3, 2
        %s257 = sand.u32 %s9, 1
        %s258 = sand.u32 %s9, 1
        %s259 = smul.addr %s258, 8
        %s260 = scalar_lea.vmem [#allocation1], %s259
      $region92: #{custom-call.44} parent=5 // pred_fallthru
        _
    $region6: #{custom-call.44} parent=1 // loop_footer
      %s7 = sadd.s32 1, %s3
    $region7: #{custom-call.44} parent=1 // loop_footer_branch
      %2 = sbr.rel target = $region3
    $region8: #{custom-call.44} parent=1 // loop_exit
      _

// kernel: custom-call.16
$region0: #{custom-call.16}
  %s0 = inlined_call_operand.vmem [shape: f32[4,4,4], index: 0, kind: input, shape index: {}]
  %s1 = inlined_call_operand.vmem [shape: f32[4,4,4], index: 1, kind: input, shape index: {}]
  %s2 = inlined_call_operand.vmem [shape: f32[4,4,4], index: 2, kind: input, shape index: {}]
  %s3 = inlined_call_operand.vmem [shape: f32[4,4,4], index: 3, kind: input, shape index: {}]
  %s4 = inlined_call_operand.vmem [shape: f32[4,4], index: 4, kind: output, shape index: {0}]
  %s5 = inlined_call_operand.vmem [shape: f32[4,4], index: 5, kind: output, shape index: {1}]
  %s6 = inlined_call_operand.vmem [shape: f32[4,4,4], index: 6, kind: output, shape index: {2}]
  %s7 = inlined_call_operand.vmem [shape: f32[4,4,4], index: 7, kind: output, shape index: {3}]
  %s8 = inlined_call_operand.vmem [shape: f32[4,4,4], index: 8, kind: output, shape index: {4}]
  %s9 = inlined_call_operand.vmem [shape: f32[4,4,4], index: 9, kind: output, shape index: {5}]
  %10 = xla_tuple %s4, %s5, %s6, %s7, %s8, %s9
  $region1: #{custom-call.16} parent=0
    #allocation0 [shape = 'u8[4096]{0}', space=vmem, size = 0x1000, scoped, tag = 'operand span for operand 0']
    #allocation1 [shape = 'u8[4096]{0}', space=vmem, size = 0x1000, scoped, tag = 'packed  for operand 0']
    #allocation2 [shape = 'u8[4096]{0}', space=vmem, size = 0x1000, scoped, tag = 'operand span for operand 1']
    #allocation3 [shape = 'u8[4096]{0}', space=vmem, size = 0x1000, scoped, tag = 'packed  for operand 1']
    #allocation4 [shape = 'u8[4096]{0}', space=vmem, size = 0x1000, scoped, tag = 'operand span for operand 2']
    #allocation5 [shape = 'u8[4096]{0}', space=vmem, size = 0x1000, scoped, tag = 'packed  for operand 2']
    #allocation6 [shape = 'u8[4096]{0}', space=vmem, size = 0x1000, scoped, tag = 'operand span for operand 3']
    #allocation7 [shape = 'u8[4096]{0}', space=vmem, size = 0x1000, scoped, tag = 'packed  for operand 3']
    #allocation8 [shape = 'u8[4096]{0}', space=vmem, size = 0x1000, scoped, tag = 'operand span for operand 4']
    #allocation9 [shape = 'u8[4096]{0}', space=vmem, size = 0x1000, scoped, tag = 'packed  for operand 4']
    #allocation10 [shape = 'u8[4096]{0}', space=vmem, size = 0x1000, scoped, tag = 'operand span for operand 5']
    #allocation11 [shape = 'u8[4096]{0}', space=vmem, size = 0x1000, scoped, tag = 'packed  for operand 5']
    #allocation12 [shape = 'u8[4096]{0}', space=vmem, size = 0x1000, scoped, tag = 'operand span for operand 6']
    #allocation13 [shape = 'u8[4096]{0}', space=vmem, size = 0x1000, scoped, tag = 'packed  for operand 6']
    #allocation14 [shape = 'u8[4096]{0}', space=vmem, size = 0x1000, scoped, tag = 'operand span for operand 7']
    #allocation15 [shape = 'u8[4096]{0}', space=vmem, size = 0x1000, scoped, tag = 'packed  for operand 7']
    #allocation16 [shape = 'u8[4096]{0}', space=vmem, size = 0x1000, scoped, tag = 'operand span for operand 8']
    #allocation17 [shape = 'u8[4096]{0}', space=vmem, size = 0x1000, scoped, tag = 'packed  for operand 8']
    #allocation18 [shape = 'u8[4096]{0}', space=vmem, size = 0x1000, scoped, tag = 'operand span for operand 9']
    #allocation19 [shape = 'u8[4096]{0}', space=vmem, size = 0x1000, scoped, tag = 'packed  for operand 9']
    loop: start=0, step=1, limit=6
    $region2: #{custom-call.16} parent=1 // loop_pre_header
      _
    $region3: #{custom-call.16} parent=1 // loop_header
      %s12 = sphi 0, %s16
      %p13 = scmp.ge.s32.totalorder %s12, 6
      %s24 = sphi 0, %s26
      %s27 = sphi 0, %s24
      %s28 = sphi 0, %s27
      %s44 = sphi 0, %s28
      %s52 = sphi 0, %s54
      %s55 = sphi 0, %s52
      %s56 = sphi 0, %s55
      %s72 = sphi 0, %s56
    $region4: #{custom-call.16} parent=1 // loop_header_branch
      %15 = sbr.rel (%p13) target = $region8
    $region5: #{custom-call.16} parent=1 // loop_body
      %s17 = ssub.s32 %s12, 1
      %s18 = ssub.s32 %s12, 2
      %s19 = sadd.s32 %s12, 1
      %s20 = sshrl.u32 %s12, 3
      %s21 = sshrl.u32 %s19, 3
      %s22 = ssub.s32 %s20, %s21
      %p23 = scmp.eq.s32.totalorder %s22, 0
      %s25 = sadd.s32 %s24, 1
      %s26 = scalar_select %p23, %s24, %s25
      %p29 = pneg %p23
      %p30 = scmp.eq.s32.totalorder %s12, 3
      %p31 = por %p29, %p30
      %p32 = scmp.ne.s32.totalorder %s24, %s27
      %p33 = scmp.eq.s32.totalorder %s12, 0
      %p34 = por %p32, %p33
      %p35 = scmp.ne.s32.totalorder %s24, %s27
      %p36 = scmp.eq.s32.totalorder %s17, 3
      %p37 = por %p35, %p36
      %p38 = scmp.ne.s32.totalorder %s27, %s28
      %p39 = scmp.eq.s32.totalorder %s17, 0
      %p40 = por %p38, %p39
      %p41 = scmp.ne.s32.totalorder %s27, %s28
      %p42 = scmp.eq.s32.totalorder %s18, 3
      %p43 = por %p41, %p42
      %p45 = scmp.ne.s32.totalorder %s28, %s44
      %p46 = scmp.eq.s32.totalorder %s18, 0
      %p47 = por %p45, %p46
      %s48 = sshrl.u32 %s12, 3
      %s49 = sshrl.u32 %s19, 3
      %s50 = ssub.s32 %s48, %s49
      %p51 = scmp.eq.s32.totalorder %s50, 0
      %s53 = sadd.s32 %s52, 1
      %s54 = scalar_select %p51, %s52, %s53
      %p57 = pneg %p51
      %p58 = scmp.eq.s32.totalorder %s12, 3
      %p59 = por %p57, %p58
      %p60 = scmp.ne.s32.totalorder %s52, %s55
      %p61 = scmp.eq.s32.totalorder %s12, 0
      %p62 = por %p60, %p61
      %p63 = scmp.ne.s32.totalorder %s52, %s55
      %p64 = scmp.eq.s32.totalorder %s17, 3
      %p65 = por %p63, %p64
      %p66 = scmp.ne.s32.totalorder %s55, %s56
      %p67 = scmp.eq.s32.totalorder %s17, 0
      %p68 = por %p66, %p67
      %p69 = scmp.ne.s32.totalorder %s55, %s56
      %p70 = scmp.eq.s32.totalorder %s18, 3
      %p71 = por %p69, %p70
      %p73 = scmp.ne.s32.totalorder %s56, %s72
      %p74 = scmp.eq.s32.totalorder %s18, 0
      %p75 = por %p73, %p74
      %p76 = scmp.le.s32.totalorder 1, %s12
      %p77 = scmp.lt.s32.totalorder %s12, 5
      %p78 = pnand %p76, %p77
      %p79 = pneg %p78
      // Predicated region
      $region9: #{custom-call.16} parent=5 // pred_check
        _
      $region10: #{custom-call.16} parent=5 // pred_check_branch
        %81 = sbr.rel (%p78) target = $region12
      $region11: #{custom-call.16} parent=5 // pred_region
        %s82 = ssub.s32 %s12, 1
      $region12: #{custom-call.16} parent=5 // pred_fallthru
        _
      %p83 = scmp.lt.s32.totalorder %s12, 4
      // Predicated region
      $region13: #{custom-call.16} parent=5 // pred_check
        %p84 = pneg %p83
      $region14: #{custom-call.16} parent=5 // pred_check_branch
        %86 = sbr.rel (%p84) target = $region16
      $region15: #{custom-call.16} parent=5 // pred_region
        %s87 = sand.u32 %s12, 1
        %s88 = sand.u32 %s12, 1
        %s89 = smul.addr %s88, 4
        %s90 = scalar_lea.vmem [#allocation1], %s89
        %s91 = smul.addr %s12, 4
        %s92 = scalar_lea.vmem %s0, %s91
        // Predicated region
        $region17: #{custom-call.16} parent=15 // pred_check
          _
        $region18: #{custom-call.16} parent=15 // pred_check_branch
          %94 = sbr.rel (0) target = $region20
        $region19: #{custom-call.16} parent=15 // pred_region
          // Predicated region
          $region21: #{custom-call.16} parent=19 // pred_check
            _
          $region22: #{custom-call.16} parent=19 // pred_check_branch
            %96 = sbr.rel target = $region24
          $region23: #{custom-call.16} parent=19 // pred_region
            // Predicated region
            $region36: #{custom-call.16} parent=23 // pred_check
              _
            $region37: #{custom-call.16} parent=23 // pred_check_branch
              %111 = sbr.rel (0) target = $region39
            $region38: #{custom-call.16} parent=23 // pred_region
              loop: start=0, step=1, limit=1
              $region40: #{custom-call.16} parent=38 // loop_pre_header
                _
              $region41: #{custom-call.16} parent=38 // loop_header
                %s114 = sphi 0, %s118
                %p115 = scmp.ge.s32.totalorder %s114, 1
                %s119 = sphi %s92, %s92
                %s120 = sphi %s90, %s90
              $region42: #{custom-call.16} parent=38 // loop_header_branch
                %117 = sbr.rel (%p115) target = $region46
              $region43: #{custom-call.16} parent=38 // loop_body
                %v121 = vld [vmem:[%s119] sm:$0xf]
                %122 = vst [vmem:[%s120] sm:$0xf] %v121
              $region44: #{custom-call.16} parent=38 // loop_footer
                %s118 = sadd.s32 1, %s114
              $region45: #{custom-call.16} parent=38 // loop_footer_branch
                %113 = sbr.rel target = $region41
              $region46: #{custom-call.16} parent=38 // loop_exit
                _
            $region39: #{custom-call.16} parent=23 // pred_fallthru
              _
          $region24: #{custom-call.16} parent=19 // pred_fallthru
            _
          // Predicated region
          $region25: #{custom-call.16} parent=19 // pred_check
            _
          $region26: #{custom-call.16} parent=19 // pred_check_branch
            %98 = sbr.rel (0) target = $region28
          $region27: #{custom-call.16} parent=19 // pred_region
            loop: start=0, step=1, limit=1
            $region29: #{custom-call.16} parent=27 // loop_pre_header
              _
            $region30: #{custom-call.16} parent=27 // loop_header
              %s101 = sphi 0, %s105
              %p102 = scmp.ge.s32.totalorder %s101, 1
              %s106 = sphi %s92, %s92
              %s107 = sphi %s90, %s90
            $region31: #{custom-call.16} parent=27 // loop_header_branch
              %104 = sbr.rel (%p102) target = $region35
            $region32: #{custom-call.16} parent=27 // loop_body
              %v108 = vld [vmem:[%s106] sm:$0xf]
              %109 = vst [vmem:[%s107] sm:$0xf] %v108
            $region33: #{custom-call.16} parent=27 // loop_footer
              %s105 = sadd.s32 1, %s101
            $region34: #{custom-call.16} parent=27 // loop_footer_branch
              %100 = sbr.rel target = $region30
            $region35: #{custom-call.16} parent=27 // loop_exit
              _
          $region28: #{custom-call.16} parent=19 // pred_fallthru
            _
        $region20: #{custom-call.16} parent=15 // pred_fallthru
          _
        %123 = vnop
        %s124 = sand.u32 %s12, 1
        %s125 = sand.u32 %s12, 1
        %s126 = smul.addr %s125, 4
        %s127 = scalar_lea.vmem [#allocation3], %s126
        %s128 = smul.addr %s12, 4
        %s129 = scalar_lea.vmem %s1, %s128
        // Predicated region
        $region47: #{custom-call.16} parent=15 // pred_check
          _
        $region48: #{custom-call.16} parent=15 // pred_check_branch
          %131 = sbr.rel (0) target = $region50
        $region49: #{custom-call.16} parent=15 // pred_region
          // Predicated region
          $region51: #{custom-call.16} parent=49 // pred_check
            _
          $region52: #{custom-call.16} parent=49 // pred_check_branch
            %133 = sbr.rel target = $region54
          $region53: #{custom-call.16} parent=49 // pred_region
            // Predicated region
            $region66: #{custom-call.16} parent=53 // pred_check
              _
            $region67: #{custom-call.16} parent=53 // pred_check_branch
              %148 = sbr.rel (0) target = $region69
            $region68: #{custom-call.16} parent=53 // pred_region
              loop: start=0, step=1, limit=1
              $region70: #{custom-call.16} parent=68 // loop_pre_header
                _
              $region71: #{custom-call.16} parent=68 // loop_header
                %s151 = sphi 0, %s155
                %p152 = scmp.ge.s32.totalorder %s151, 1
                %s156 = sphi %s129, %s129
                %s157 = sphi %s127, %s127
              $region72: #{custom-call.16} parent=68 // loop_header_branch
                %154 = sbr.rel (%p152) target = $region76
              $region73: #{custom-call.16} parent=68 // loop_body
                %v158 = vld [vmem:[%s156] sm:$0xf]
                %159 = vst [vmem:[%s157] sm:$0xf] %v158
              $region74: #{custom-call.16} parent=68 // loop_footer
                %s155 = sadd.s32 1, %s151
              $region75: #{custom-call.16} parent=68 // loop_footer_branch
                %150 = sbr.rel target = $region71
              $region76: #{custom-call.16} parent=68 // loop_exit
                _
            $region69: #{custom-call.16} parent=53 // pred_fallthru
              _
          $region54: #{custom-call.16} parent=49 // pred_fallthru
            _
          // Predicated region
          $region55: #{custom-call.16} parent=49 // pred_check
            _
          $region56: #{custom-call.16} parent=49 // pred_check_branch
            %135 = sbr.rel (0) target = $region58
          $region57: #{custom-call.16} parent=49 // pred_region
            loop: start=0, step=1, limit=1
            $region59: #{custom-call.16} parent=57 // loop_pre_header
              _
            $region60: #{custom-call.16} parent=57 // loop_header
              %s138 = sphi 0, %s142
              %p139 = scmp.ge.s32.totalorder %s138, 1
              %s143 = sphi %s129, %s129
              %s144 = sphi %s127, %s127
            $region61: #{custom-call.16} parent=57 // loop_header_branch
              %141 = sbr.rel (%p139) target = $region65
            $region62: #{custom-call.16} parent=57 // loop_body
              %v145 = vld [vmem:[%s143] sm:$0xf]
              %146 = vst [vmem:[%s144] sm:$0xf] %v145
            $region63: #{custom-call.16} parent=57 // loop_footer
              %s142 = sadd.s32 1, %s138
            $region64: #{custom-call.16} parent=57 // loop_footer_branch
              %137 = sbr.rel target = $region60
            $region65: #{custom-call.16} parent=57 // loop_exit
              _
          $region58: #{custom-call.16} parent=49 // pred_fallthru
            _
        $region50: #{custom-call.16} parent=15 // pred_fallthru
          _
        %160 = vnop
        %s161 = sand.u32 %s12, 1
        %s162 = sand.u32 %s12, 1
        %s163 = smul.addr %s162, 4
        %s164 = scalar_lea.vmem [#allocation5], %s163
        %s165 = smul.addr %s12, 4
        %s166 = scalar_lea.vmem %s2, %s165
        // Predicated region
        $region77: #{custom-call.16} parent=15 // pred_check
          _
        $region78: #{custom-call.16} parent=15 // pred_check_branch
          %168 = sbr.rel (0) target = $region80
        $region79: #{custom-call.16} parent=15 // pred_region
          // Predicated region
          $region81: #{custom-call.16} parent=79 // pred_check
            _
          $region82: #{custom-call.16} parent=79 // pred_check_branch
            %170 = sbr.rel target = $region84
          $region83: #{custom-call.16} parent=79 // pred_region
            // Predicated region
            $region96: #{custom-call.16} parent=83 // pred_check
              _
            $region97: #{custom-call.16} parent=83 // pred_check_branch
              %185 = sbr.rel (0) target = $region99
            $region98: #{custom-call.16} parent=83 // pred_region
              loop: start=0, step=1, limit=1
              $region100: #{custom-call.16} parent=98 // loop_pre_header
                _
              $region101: #{custom-call.16} parent=98 // loop_header
                %s188 = sphi 0, %s192
                %p189 = scmp.ge.s32.totalorder %s188, 1
                %s193 = sphi %s166, %s166
                %s194 = sphi %s164, %s164
              $region102: #{custom-call.16} parent=98 // loop_header_branch
                %191 = sbr.rel (%p189) target = $region106
              $region103: #{custom-call.16} parent=98 // loop_body
                %v195 = vld [vmem:[%s193] sm:$0xf]
                %196 = vst [vmem:[%s194] sm:$0xf] %v195
              $region104: #{custom-call.16} parent=98 // loop_footer
                %s192 = sadd.s32 1, %s188
              $region105: #{custom-call.16} parent=98 // loop_footer_branch
                %187 = sbr.rel target = $region101
              $region106: #{custom-call.16} parent=98 // loop_exit
                _
            $region99: #{custom-call.16} parent=83 // pred_fallthru
              _
          $region84: #{custom-call.16} parent=79 // pred_fallthru
            _
          // Predicated region
          $region85: #{custom-call.16} parent=79 // pred_check
            _
          $region86: #{custom-call.16} parent=79 // pred_check_branch
            %172 = sbr.rel (0) target = $region88
          $region87: #{custom-call.16} parent=79 // pred_region
            loop: start=0, step=1, limit=1
            $region89: #{custom-call.16} parent=87 // loop_pre_header
              _
            $region90: #{custom-call.16} parent=87 // loop_header
              %s175 = sphi 0, %s179
              %p176 = scmp.ge.s32.totalorder %s175, 1
              %s180 = sphi %s166, %s166
              %s181 = sphi %s164, %s164
            $region91: #{custom-call.16} parent=87 // loop_header_branch
              %178 = sbr.rel (%p176) target = $region95
            $region92: #{custom-call.16} parent=87 // loop_body
              %v182 = vld [vmem:[%s180] sm:$0xf]
              %183 = vst [vmem:[%s181] sm:$0xf] %v182
            $region93: #{custom-call.16} parent=87 // loop_footer
              %s179 = sadd.s32 1, %s175
            $region94: #{custom-call.16} parent=87 // loop_footer_branch
              %174 = sbr.rel target = $region90
            $region95: #{custom-call.16} parent=87 // loop_exit
              _
          $region88: #{custom-call.16} parent=79 // pred_fallthru
            _
        $region80: #{custom-call.16} parent=15 // pred_fallthru
          _
        %197 = vnop
        %s198 = sand.u32 %s12, 1
        %s199 = sand.u32 %s12, 1
        %s200 = smul.addr %s199, 4
        %s201 = scalar_lea.vmem [#allocation7], %s200
        %s202 = smul.addr %s12, 4
        %s203 = scalar_lea.vmem %s3, %s202
        // Predicated region
        $region107: #{custom-call.16} parent=15 // pred_check
          _
        $region108: #{custom-call.16} parent=15 // pred_check_branch
          %205 = sbr.rel (0) target = $region110
        $region109: #{custom-call.16} parent=15 // pred_region
          // Predicated region
          $region111: #{custom-call.16} parent=109 // pred_check
            _
          $region112: #{custom-call.16} parent=109 // pred_check_branch
            %207 = sbr.rel target = $region114
          $region113: #{custom-call.16} parent=109 // pred_region
            // Predicated region
            $region126: #{custom-call.16} parent=113 // pred_check
              _
            $region127: #{custom-call.16} parent=113 // pred_check_branch
              %222 = sbr.rel (0) target = $region129
            $region128: #{custom-call.16} parent=113 // pred_region
              loop: start=0, step=1, limit=1
              $region130: #{custom-call.16} parent=128 // loop_pre_header
                _
              $region131: #{custom-call.16} parent=128 // loop_header
                %s225 = sphi 0, %s229
                %p226 = scmp.ge.s32.totalorder %s225, 1
                %s230 = sphi %s203, %s203
                %s231 = sphi %s201, %s201
              $region132: #{custom-call.16} parent=128 // loop_header_branch
                %228 = sbr.rel (%p226) target = $region136
              $region133: #{custom-call.16} parent=128 // loop_body
                %v232 = vld [vmem:[%s230] sm:$0xf]
                %233 = vst [vmem:[%s231] sm:$0xf] %v232
              $region134: #{custom-call.16} parent=128 // loop_footer
                %s229 = sadd.s32 1, %s225
              $region135: #{custom-call.16} parent=128 // loop_footer_branch
                %224 = sbr.rel target = $region131
              $region136: #{custom-call.16} parent=128 // loop_exit
                _
            $region129: #{custom-call.16} parent=113 // pred_fallthru
              _
          $region114: #{custom-call.16} parent=109 // pred_fallthru
            _
          // Predicated region
          $region115: #{custom-call.16} parent=109 // pred_check
            _
          $region116: #{custom-call.16} parent=109 // pred_check_branch
            %209 = sbr.rel (0) target = $region118
          $region117: #{custom-call.16} parent=109 // pred_region
            loop: start=0, step=1, limit=1
            $region119: #{custom-call.16} parent=117 // loop_pre_header
              _
            $region120: #{custom-call.16} parent=117 // loop_header
              %s212 = sphi 0, %s216
              %p213 = scmp.ge.s32.totalorder %s212, 1
              %s217 = sphi %s203, %s203
              %s218 = sphi %s201, %s201
            $region121: #{custom-call.16} parent=117 // loop_header_branch
              %215 = sbr.rel (%p213) target = $region125
            $region122: #{custom-call.16} parent=117 // loop_body
              %v219 = vld [vmem:[%s217] sm:$0xf]
              %220 = vst [vmem:[%s218] sm:$0xf] %v219
            $region123: #{custom-call.16} parent=117 // loop_footer
              %s216 = sadd.s32 1, %s212
            $region124: #{custom-call.16} parent=117 // loop_footer_branch
              %211 = sbr.rel target = $region120
            $region125: #{custom-call.16} parent=117 // loop_exit
              _
          $region118: #{custom-call.16} parent=109 // pred_fallthru
            _
        $region110: #{custom-call.16} parent=15 // pred_fallthru
          _
        %234 = vnop
      $region16: #{custom-call.16} parent=5 // pred_fallthru
        _
      %p235 = scmp.le.s32.totalorder 1, %s12
      %p236 = scmp.lt.s32.totalorder %s12, 5
      %p237 = pnand %p235, %p236
      %p238 = pneg %p237
      // Predicated region
      $region137: #{custom-call.16} parent=5 // pred_check
        _
      $region138: #{custom-call.16} parent=5 // pred_check_branch
        %240 = sbr.rel (%p237) target = $region140
      $region139: #{custom-call.16} parent=5 // pred_region
        #allocation20 [shape = 'f32[4,4]{1,0}', space=vmem, size = 0x1000, scoped, tag = 'a top-left matrix']
        #allocation21 [shape = 'f32[4,4]{1,0}', space=vmem, size = 0x1000, scoped, tag = 'a top-right matrix']
        #allocation22 [shape = 'f32[4,4]{1,0}', space=vmem, size = 0x1000, scoped, tag = 'a bottom-left matrix']
        #allocation23 [shape = 'f32[4,4]{1,0}', space=vmem, size = 0x1000, scoped, tag = 'a bottom-right matrix']
        %s241 = ssub.s32 %s12, 1
        %s242 = sand.u32 %s17, 1
        %s243 = sand.u32 %s17, 1
        %s244 = smul.addr %s243, 4
        %s245 = scalar_lea.vmem [#allocation1], %s244
        %s246 = sand.u32 %s17, 1
        %s247 = sand.u32 %s17, 1
        %s248 = smul.addr %s247, 4
        %s249 = scalar_lea.vmem [#allocation3], %s248
        %s250 = sand.u32 %s17, 1
        %s251 = sand.u32 %s17, 1
        %s252 = smul.addr %s251, 4
        %s253 = scalar_lea.vmem [#allocation5], %s252
        %s254 = sand.u32 %s17, 1
        %s255 = sand.u32 %s17, 1
        %s256 = smul.addr %s255, 4
        %s257 = scalar_lea.vmem [#allocation7], %s256
        %s258 = sand.u32 %s17, 1
        %s259 = sand.u32 %s17, 1
        %s260 = smul.addr %s259, 4
        %s261 = scalar_lea.vmem [#allocation1], %s260
        %s262 = sand.u32 %s17, 1
        %s263 = sand.u32 %s17, 1
        %s264 = smul.addr %s263, 4
        %s265 = scalar_lea.vmem [#allocation3], %s264
        %s266 = sand.u32 %s17, 1
        %s267 = sand.u32 %s17, 1
        %s268 = smul.addr %s267, 4
        %s269 = scalar_lea.vmem [#allocation5], %s268
        %s270 = sand.u32 %s17, 1
        %s271 = sand.u32 %s17, 1
        %s272 = smul.addr %s271, 4
        %s273 = scalar_lea.vmem [#allocation7], %s272
        %p274 = pneg %p40
        %p275 = pneg %p37
        %s276 = sand.u32 %s27, 1
        %s277 = sand.u32 %s27, 1
        %s278 = smul.addr %s277, 4
        %s279 = scalar_lea.vmem [#allocation9], %s278
        %p280 = pneg %p68
        %p281 = pneg %p65
        %s282 = sand.u32 %s55, 1
        %s283 = sand.u32 %s55, 1
        %s284 = smul.addr %s283, 4
        %s285 = scalar_lea.vmem [#allocation11], %s284
        %s286 = sand.u32 %s17, 1
        %s287 = sand.u32 %s17, 1
        %s288 = smul.addr %s287, 4
        %s289 = scalar_lea.vmem [#allocation13], %s288
        %s290 = sand.u32 %s17, 1
        %s291 = sand.u32 %s17, 1
        %s292 = smul.addr %s291, 4
        %s293 = scalar_lea.vmem [#allocation15], %s292
        %s294 = sand.u32 %s17, 1
        %s295 = sand.u32 %s17, 1
        %s296 = smul.addr %s295, 4
        %s297 = scalar_lea.vmem [#allocation17], %s296
        %s298 = sand.u32 %s17, 1
        %s299 = sand.u32 %s17, 1
        %s300 = smul.addr %s299, 4
        %s301 = scalar_lea.vmem [#allocation19], %s300
        %s303 = sshllo.u32 0, 4
        %v304 = vld [vmem:[%s261] sm:%s303]
        %305 = vst [vmem:[#allocation0] sm:%s303] %v304
        %s307 = sshllo.u32 0, 4
        %v308 = vld [vmem:[%s265] sm:%s307]
        %309 = vst [vmem:[#allocation2] sm:%s307] %v308
        %s311 = sshllo.u32 0, 4
        %v312 = vld [vmem:[%s269] sm:%s311]
        %313 = vst [vmem:[#allocation4] sm:%s311] %v312
        %s315 = sshllo.u32 0, 4
        %v316 = vld [vmem:[%s273] sm:%s315]
        %317 = vst [vmem:[#allocation6] sm:%s315] %v316
        %s318 = sshrl.u32 %s17, 3
        %s319 = sshrl.u32 %s17, 3
        %s320 = smov [#allocation20]
        %v321 = vld [vmem:[#allocation0] sm:$0xff]
        %322 = vst [vmem:[%s320] sm:$0xff] %v321
        %s323 = smov [#allocation21]
        %v324 = vld [vmem:[#allocation2] sm:$0xff]
        %325 = vst [vmem:[%s323] sm:$0xff] %v324
        %s326 = smov [#allocation22]
        %v327 = vld [vmem:[#allocation4] sm:$0xff]
        %328 = vst [vmem:[%s326] sm:$0xff] %v327
        %s329 = smov [#allocation23]
        %v330 = vld [vmem:[#allocation6] sm:$0xff]
        %331 = vst [vmem:[%s329] sm:$0xff] %v330
        %332 = vst [vmem:[#allocation12] sm:$0xff] 0.0
        %333 = vst [vmem:[#allocation14] sm:$0xff] 0.0
        %334 = vst [vmem:[#allocation16] sm:$0xff] 0.0
        %335 = vst [vmem:[#allocation18] sm:$0xff] 0.0
        %s336 = smov [#allocation12]
        %v337 = vlaneseq
        %v338 = vand.u32 %v337, 127
        %v339 = vmov %v338
        %v340 = vlaneseq
        %v341 = vshrl.u32 %v340, 7
        %v342 = vmov %v341
        %v343 = vld [vmem:[%s336] sm:$0xf]
        %vm346 = vcmp.eq.s32.totalorder %v342, %v339
        %v347 = vsel %vm346, 1.0, %v343
        %348 = vst [vmem:[%s336] sm:$0xf] %v347
        %s349 = smov [#allocation18]
        %v350 = vlaneseq
        %v351 = vand.u32 %v350, 127
        %v352 = vmov %v351
        %v353 = vlaneseq
        %v354 = vshrl.u32 %v353, 7
        %v355 = vmov %v354
        %v356 = vld [vmem:[%s349] sm:$0xf]
        %vm359 = vcmp.eq.s32.totalorder %v355, %v352
        %v360 = vsel %vm359, 1.0, %v356
        %361 = vst [vmem:[%s349] sm:$0xf] %v360
        // While loop
        $region141: #{custom-call.16} parent=139 // loop_pre_header
          _
        $region142: #{custom-call.16} parent=139 // loop_header
          %s363 = sphi 0, %s905
          %v364 = vlaneseq
          %v365 = vand.u32 %v364, 127
          %v366 = vmov %v365
          %v367 = vlaneseq
          %v368 = vshrl.u32 %v367, 7
          %v369 = vmov %v368
          %s370 = smov [#allocation20]
          %v371 = vlaneseq
          %v372 = vand.u32 %v371, 127
          %vm373 = vcmp.ge.s32.totalorder %v372, 0
          %vm374 = vcmp.lt.s32.totalorder %v372, 4
          %vm375 = vmand %vm373, %vm374
          %v376 = vld [vmem:[%s370] sm:$0xf]
          %v377 = vsel %vm375, %v376, 0.0
          %v378 = vmul.f32 %v377, %v377
          %vm381 = vcmp.eq.s32.totalorder %v369, %v366
          %v382 = vsel %vm381, 0.0, %v378
          %v383 = vlaneseq
          %v384 = vand.u32 %v383, 127
          %v385 = vmov %v384
          %v386 = vlaneseq
          %v387 = vshrl.u32 %v386, 7
          %v388 = vmov %v387
          %s389 = smov [#allocation21]
          %v390 = vlaneseq
          %v391 = vand.u32 %v390, 127
          %vm392 = vcmp.ge.s32.totalorder %v391, 0
          %vm393 = vcmp.lt.s32.totalorder %v391, 4
          %vm394 = vmand %vm392, %vm393
          %v395 = vld [vmem:[%s389] sm:$0xf]
          %v396 = vsel %vm394, %v395, 0.0
          %v397 = vmul.f32 %v396, %v396
          %v398 = vadd.f32 %v382, %v397
          %v399 = vadd.f32 %v378, %v397
          %v400 = vlaneseq
          %v401 = vand.u32 %v400, 127
          %v402 = vmov %v401
          %v403 = vlaneseq
          %v404 = vshrl.u32 %v403, 7
          %v405 = vmov %v404
          %s406 = smov [#allocation22]
          %v407 = vlaneseq
          %v408 = vand.u32 %v407, 127
          %vm409 = vcmp.ge.s32.totalorder %v408, 0
          %vm410 = vcmp.lt.s32.totalorder %v408, 4
          %vm411 = vmand %vm409, %vm410
          %v412 = vld [vmem:[%s406] sm:$0xf]
          %v413 = vsel %vm411, %v412, 0.0
          %v414 = vmul.f32 %v413, %v413
          %v415 = vadd.f32 %v398, %v414
          %v416 = vadd.f32 %v399, %v414
          %v417 = vlaneseq
          %v418 = vand.u32 %v417, 127
          %v419 = vmov %v418
          %v420 = vlaneseq
          %v421 = vshrl.u32 %v420, 7
          %v422 = vmov %v421
          %s423 = smov [#allocation23]
          %v424 = vlaneseq
          %v425 = vand.u32 %v424, 127
          %vm426 = vcmp.ge.s32.totalorder %v425, 0
          %vm427 = vcmp.lt.s32.totalorder %v425, 4
          %vm428 = vmand %vm426, %vm427
          %v429 = vld [vmem:[%s423] sm:$0xf]
          %v430 = vsel %vm428, %v429, 0.0
          %v431 = vmul.f32 %v430, %v430
          %vm434 = vcmp.eq.s32.totalorder %v422, %v419
          %v435 = vsel %vm434, 0.0, %v431
          %v436 = vadd.f32 %v415, %v435
          %v437 = vadd.f32 %v416, %v431
          %438 = vadd.xlane.f32.xlu0 %v437
          %v439 = vpop.xlane.xlu0 %438
          %v440 = vrot.slane %v439, 4
          %v441 = vadd.f32 %v439, %v440
          %v442 = vrot.slane %v441, 2
          %v443 = vadd.f32 %v441, %v442
          %v444 = vrot.slane %v443, 1
          %v445 = vadd.f32 %v443, %v444
          %446 = vadd.xlane.f32.xlu0 %v436
          %v447 = vpop.xlane.xlu0 %446
          %v448 = vrot.slane %v447, 4
          %v449 = vadd.f32 %v447, %v448
          %v450 = vrot.slane %v449, 2
          %v451 = vadd.f32 %v449, %v450
          %v452 = vrot.slane %v451, 1
          %v453 = vadd.f32 %v451, %v452
          %s454 = vtos %v453
          %s455 = vtos %v445
          %s456 = smul.f32 1e-10, %s455
          %p457 = scmp.le.f32.partialorder %s454, %s456
          %p458 = scmp.ge.s32.totalorder %s363, 15
          %p459 = por %p457, %p458
        $region143: #{custom-call.16} parent=139 // loop_header_branch
          %907 = sbr.rel (%p459) target = $region147
        $region144: #{custom-call.16} parent=139 // loop_body
          loop: start=0, step=1, limit=7
          $region148: #{custom-call.16} parent=144 // loop_pre_header
            _
          $region149: #{custom-call.16} parent=144 // loop_header
            %s461 = sphi 0, %s465
            %p462 = scmp.ge.s32.totalorder %s461, 7
          $region150: #{custom-call.16} parent=144 // loop_header_branch
            %464 = sbr.rel (%p462) target = $region154
          $region151: #{custom-call.16} parent=144 // loop_body
            #allocation24 [shape = 'f32[1024]{0}', space=vmem, size = 0x1000, scoped, tag = 'a_tl_diag vmem']
            #allocation25 [shape = 'f32[1024]{0}', space=vmem, size = 0x1000, scoped, tag = 'a_tr_diag vmem']
            #allocation26 [shape = 'f32[1024]{0}', space=vmem, size = 0x1000, scoped, tag = 'a_br_diag vmem']
            #allocation27 [shape = 'f32[1024]{0}', space=vmem, size = 0x1000, scoped, tag = 'rt1 vmem']
            #allocation28 [shape = 'f32[1024]{0}', space=vmem, size = 0x1000, scoped, tag = 'rt2 vmem']
            #allocation29 [shape = 'f32[1024]{0}', space=vmem, size = 0x1000, scoped, tag = 'c vmem']
            #allocation30 [shape = 'f32[1024]{0}', space=vmem, size = 0x1000, scoped, tag = 's vmem']
            #allocation31 [shape = 'f32[4096]{0}', space=vmem, size = 0x4000, scoped, tag = 'c broadcast']
            #allocation32 [shape = 'f32[4096]{0}', space=vmem, size = 0x4000, scoped, tag = 's broadcast']
            %s466 = smov [#allocation20]
            %s467 = smov [#allocation24]
            %v468 = vlaneseq
            %v469 = vand.u32 %v468, 127
            %v470 = vmov %v469
            %v471 = vlaneseq
            %v472 = vshrl.u32 %v471, 7
            %v473 = vmov %v472
            %v474 = vld [vmem:[%s466] sm:$0xf]
            %vm477 = vcmp.eq.s32.totalorder %v473, %v470
            %v478 = vsel %vm477, %v474, 0.0
            %v479 = vrot.slane %v478, 4
            %v480 = vadd.f32 %v478, %v479
            %v481 = vrot.slane %v480, 2
            %v482 = vadd.f32 %v480, %v481
            %v483 = vrot.slane %v482, 1
            %v484 = vadd.f32 %v482, %v483
            %485 = vst [vmem:[%s467] sm:$0x1] %v484
            %s486 = smov [#allocation21]
            %s487 = smov [#allocation25]
            %v488 = vlaneseq
            %v489 = vand.u32 %v488, 127
            %v490 = vmov %v489
            %v491 = vlaneseq
            %v492 = vshrl.u32 %v491, 7
            %v493 = vmov %v492
            %v494 = vld [vmem:[%s486] sm:$0xf]
            %vm497 = vcmp.eq.s32.totalorder %v493, %v490
            %v498 = vsel %vm497, %v494, 0.0
            %v499 = vrot.slane %v498, 4
            %v500 = vadd.f32 %v498, %v499
            %v501 = vrot.slane %v500, 2
            %v502 = vadd.f32 %v500, %v501
            %v503 = vrot.slane %v502, 1
            %v504 = vadd.f32 %v502, %v503
            %505 = vst [vmem:[%s487] sm:$0x1] %v504
            %s506 = smov [#allocation23]
            %s507 = smov [#allocation26]
            %v508 = vlaneseq
            %v509 = vand.u32 %v508, 127
            %v510 = vmov %v509
            %v511 = vlaneseq
            %v512 = vshrl.u32 %v511, 7
            %v513 = vmov %v512
            %v514 = vld [vmem:[%s506] sm:$0xf]
            %vm517 = vcmp.eq.s32.totalorder %v513, %v510
            %v518 = vsel %vm517, %v514, 0.0
            %v519 = vrot.slane %v518, 4
            %v520 = vadd.f32 %v518, %v519
            %v521 = vrot.slane %v520, 2
            %v522 = vadd.f32 %v520, %v521
            %v523 = vrot.slane %v522, 1
            %v524 = vadd.f32 %v522, %v523
            %525 = vst [vmem:[%s507] sm:$0x1] %v524
            %s526 = smov [#allocation29]
            %s527 = smov [#allocation30]
            %s528 = smov [#allocation24]
            %v529 = vld [vmem:[%s528] sm:$0xff]
            %s530 = smov [#allocation25]
            %v531 = vld [vmem:[%s530] sm:$0xff]
            %s532 = smov [#allocation26]
            %v533 = vld [vmem:[%s532] sm:$0xff]
            %v534 = vsub.f32 %v533, %v529
            %v535 = vmul.f32 2.0, %v531
            %v536 = vrcp.pop %v535
            %v537 = vmul.f32 %v534, %v536
            %vm538 = vcmp.ge.f32.partialorder %v537, 0.0
            %v539 = vmul.f32 %v537, %v537
            %v540 = vadd.f32 1.0, %v539
            %v541 = vrsqrt.pop %v540
            %v542 = vmul.f32 %v540, %v541
            %vm543 = vcmp.eq.f32.partialorder %v540, inf
            %v544 = vsel %vm543, %v540, %v542
            %vm545 = vcmp.eq.f32.partialorder %v540, 0.0
            %v546 = vand.u32 %v540, 2147483648
            %v547 = vsel %vm545, %v546, %v544
            %v548 = vxor.u32 %v547, 2147483648
            %v549 = vsel %vm538, %v547, %v548
            %v550 = vadd.f32 %v537, %v549
            %v551 = vrcp.pop %v550
            %v552 = vand.u32 2147483647, %v529
            %v553 = vand.u32 2147483647, %v531
            %v554 = vand.u32 2147483647, %v533
            %v555 = vmin.f32 %v552, %v554
            %v556 = vmul.f32 1.1920929e-08, %v555
            %vm557 = vcmp.le.f32.partialorder %v553, %v556
            %v558 = vsel %vm557, 0.0, %v551
            %v559 = vmul.f32 %v558, %v558
            %v560 = vadd.f32 1.0, %v559
            %v561 = vrsqrt.pop %v560
            %v562 = vmul.f32 %v558, %v561
            %v563 = vmul.f32 %v558, %v531
            %v564 = vsub.f32 %v529, %v563
            %v565 = vmul.f32 %v558, %v531
            %v566 = vadd.f32 %v533, %v565
            %s567 = smov [#allocation27]
            %568 = vst [vmem:[%s567] sm:$0xff] %v564
            %s569 = smov [#allocation28]
            %570 = vst [vmem:[%s569] sm:$0xff] %v566
            %s571 = smov %s526
            %572 = vst [vmem:[%s571] sm:$0xff] %v561
            %s573 = smov %s527
            %574 = vst [vmem:[%s573] sm:$0xff] %v562
            %s575 = smov [#allocation29]
            %v576 = vld [vmem:[%s575] ss:$0 sm:$0xff]
            %v577 = vlaneseq
            %v578 = vand.u32 %v577, 127
            %v579 = vmov %v578
            %v580 = vlaneseq
            %v581 = vshrl.u32 %v580, 7
            %v582 = vmov %v581
            %vm584 = vcmp.eq.s32.totalorder %v582, %v579
            %v585 = vsel %vm584, %v576, 0.0
            %586 = vadd.xlane.f32.xlu0 %v585
            %v587 = vpop.xlane.xlu0 %586
            %s588 = smov [#allocation31]
            %589 = vst [vmem:[%s588] sm:$0xff] %v587
            %s590 = smov [#allocation30]
            %v591 = vld [vmem:[%s590] ss:$0 sm:$0xff]
            %v592 = vlaneseq
            %v593 = vand.u32 %v592, 127
            %v594 = vmov %v593
            %v595 = vlaneseq
            %v596 = vshrl.u32 %v595, 7
            %v597 = vmov %v596
            %vm599 = vcmp.eq.s32.totalorder %v597, %v594
            %v600 = vsel %vm599, %v591, 0.0
            %601 = vadd.xlane.f32.xlu0 %v600
            %v602 = vpop.xlane.xlu0 %601
            %s603 = smov [#allocation32]
            %604 = vst [vmem:[%s603] sm:$0xff] %v602
            %s605 = smov [#allocation31]
            %v606 = vld [vmem:[%s605] sm:$0xff]
            %s607 = smov [#allocation32]
            %v608 = vld [vmem:[%s607] sm:$0xff]
            %s609 = smov [#allocation20]
            %s610 = smov [#allocation21]
            %s611 = smov [#allocation22]
            %s612 = smov [#allocation23]
            %v613 = vld [vmem:[%s609] sm:$0xf]
            %v614 = vld [vmem:[%s610] sm:$0xf]
            %v615 = vld [vmem:[%s611] sm:$0xf]
            %v616 = vld [vmem:[%s612] sm:$0xf]
            %v617 = vmul.f32 %v606, %v613
            %v618 = vmul.f32 %v608, %v615
            %v619 = vsub.f32 %v617, %v618
            %v620 = vmul.f32 %v606, %v614
            %v621 = vmul.f32 %v608, %v616
            %v622 = vsub.f32 %v620, %v621
            %v623 = vmul.f32 %v608, %v613
            %v624 = vmul.f32 %v606, %v615
            %v625 = vadd.f32 %v623, %v624
            %v626 = vmul.f32 %v608, %v614
            %v627 = vmul.f32 %v606, %v616
            %v628 = vadd.f32 %v626, %v627
            %629 = vst [vmem:[%s609] sm:$0xf] %v619
            %630 = vst [vmem:[%s610] sm:$0xf] %v622
            %631 = vst [vmem:[%s611] sm:$0xf] %v625
            %632 = vst [vmem:[%s612] sm:$0xf] %v628
            %s633 = smov [#allocation29]
            %v634 = vld [vmem:[%s633] ss:$0 sm:$0xff]
            %s635 = smov [#allocation30]
            %v636 = vld [vmem:[%s635] ss:$0 sm:$0xff]
            %s637 = smov [#allocation20]
            %s638 = smov [#allocation21]
            %s639 = smov [#allocation22]
            %s640 = smov [#allocation23]
            %v641 = vld [vmem:[%s637] sm:$0xf]
            %v642 = vld [vmem:[%s638] sm:$0xf]
            %v643 = vld [vmem:[%s639] sm:$0xf]
            %v644 = vld [vmem:[%s640] sm:$0xf]
            %v645 = vmul.f32 %v634, %v641
            %v646 = vmul.f32 %v636, %v642
            %v647 = vsub.f32 %v645, %v646
            %v648 = vmul.f32 %v636, %v641
            %v649 = vmul.f32 %v634, %v642
            %v650 = vadd.f32 %v648, %v649
            %v651 = vmul.f32 %v634, %v643
            %v652 = vmul.f32 %v636, %v644
            %v653 = vsub.f32 %v651, %v652
            %v654 = vmul.f32 %v636, %v643
            %v655 = vmul.f32 %v634, %v644
            %v656 = vadd.f32 %v654, %v655
            %657 = vst [vmem:[%s637] sm:$0xf] %v647
            %658 = vst [vmem:[%s638] sm:$0xf] %v650
            %659 = vst [vmem:[%s639] sm:$0xf] %v653
            %660 = vst [vmem:[%s640] sm:$0xf] %v656
            %s661 = smov [#allocation20]
            %s662 = smov [#allocation27]
            %v663 = vlaneseq
            %v664 = vand.u32 %v663, 127
            %v665 = vmov %v664
            %v666 = vlaneseq
            %v667 = vshrl.u32 %v666, 7
            %v668 = vmov %v667
            %v669 = vld [vmem:[%s662] ss:$0 sm:$0xff]
            %v670 = vld [vmem:[%s661] sm:$0xf]
            %vm673 = vcmp.eq.s32.totalorder %v668, %v665
            %v674 = vsel %vm673, %v669, %v670
            %675 = vst [vmem:[%s661] sm:$0xf] %v674
            %s676 = smov [#allocation21]
            %v677 = vlaneseq
            %v678 = vand.u32 %v677, 127
            %v679 = vmov %v678
            %v680 = vlaneseq
            %v681 = vshrl.u32 %v680, 7
            %v682 = vmov %v681
            %v683 = vld [vmem:[%s676] sm:$0xf]
            %vm686 = vcmp.eq.s32.totalorder %v682, %v679
            %v687 = vsel %vm686, 0.0, %v683
            %688 = vst [vmem:[%s676] sm:$0xf] %v687
            %s689 = smov [#allocation22]
            %v690 = vlaneseq
            %v691 = vand.u32 %v690, 127
            %v692 = vmov %v691
            %v693 = vlaneseq
            %v694 = vshrl.u32 %v693, 7
            %v695 = vmov %v694
            %v696 = vld [vmem:[%s689] sm:$0xf]
            %vm699 = vcmp.eq.s32.totalorder %v695, %v692
            %v700 = vsel %vm699, 0.0, %v696
            %701 = vst [vmem:[%s689] sm:$0xf] %v700
            %s702 = smov [#allocation23]
            %s703 = smov [#allocation28]
            %v704 = vlaneseq
            %v705 = vand.u32 %v704, 127
            %v706 = vmov %v705
            %v707 = vlaneseq
            %v708 = vshrl.u32 %v707, 7
            %v709 = vmov %v708
            %v710 = vld [vmem:[%s703] ss:$0 sm:$0xff]
            %v711 = vld [vmem:[%s702] sm:$0xf]
            %vm714 = vcmp.eq.s32.totalorder %v709, %v706
            %v715 = vsel %vm714, %v710, %v711
            %716 = vst [vmem:[%s702] sm:$0xf] %v715
            %s717 = smov [#allocation20]
            %s718 = smov [#allocation21]
            %v719 = vld [vmem:[%s718] sm:$0xf]
            %720 = vrot.lane.b32.xlu0 %v719, 1
            %v721 = vpop.permute.xlu0 %720
            %v722 = vld [vmem:[%s717] sm:$0xf]
            %v723 = vld [vmem:[%s717] sm:$0xf]
            %724 = vrot.lane.b32.xlu0 %v723, 1
            %v725 = vpop.permute.xlu0 %724
            %v726 = vlaneseq
            %v727 = vand.u32 %v726, 127
            %vm728 = vcmp.eq.s32.totalorder %v727, 0
            %v729 = vsel %vm728, %v723, %v725
            %v730 = vlaneseq
            %v731 = vand.u32 %v730, 127
            %vm732 = vcmp.eq.s32.totalorder %v731, 1
            %v733 = vsel %vm732, %v721, %v729
            %v734 = vlaneseq
            %v735 = vand.u32 %v734, 127
            %vm736 = vcmp.ge.s32.totalorder %v735, 0
            %vm737 = vcmp.lt.s32.totalorder %v735, 4
            %vm738 = vmand %vm736, %vm737
            %v739 = vsel %vm738, %v733, 0.0
            %v740 = vld [vmem:[%s718] sm:$0xf]
            %741 = vrot.lane.b32.xlu0 %v740, 127
            %v742 = vpop.permute.xlu0 %741
            %v743 = vlaneseq
            %v744 = vand.u32 %v743, 127
            %vm745 = vcmp.eq.s32.totalorder %v744, 3
            %v746 = vsel %vm745, %v722, %v742
            %747 = vst [vmem:[%s717] sm:$0xf] %v739
            %748 = vst [vmem:[%s718] sm:$0xf] %v746
            %s749 = smov [#allocation22]
            %s750 = smov [#allocation23]
            %v751 = vld [vmem:[%s750] sm:$0xf]
            %752 = vrot.lane.b32.xlu0 %v751, 1
            %v753 = vpop.permute.xlu0 %752
            %v754 = vld [vmem:[%s749] sm:$0xf]
            %v755 = vld [vmem:[%s749] sm:$0xf]
            %756 = vrot.lane.b32.xlu0 %v755, 1
            %v757 = vpop.permute.xlu0 %756
            %v758 = vlaneseq
            %v759 = vand.u32 %v758, 127
            %vm760 = vcmp.eq.s32.totalorder %v759, 0
            %v761 = vsel %vm760, %v755, %v757
            %v762 = vlaneseq
            %v763 = vand.u32 %v762, 127
            %vm764 = vcmp.eq.s32.totalorder %v763, 1
            %v765 = vsel %vm764, %v753, %v761
            %v766 = vlaneseq
            %v767 = vand.u32 %v766, 127
            %vm768 = vcmp.ge.s32.totalorder %v767, 0
            %vm769 = vcmp.lt.s32.totalorder %v767, 4
            %vm770 = vmand %vm768, %vm769
            %v771 = vsel %vm770, %v765, 0.0
            %v772 = vld [vmem:[%s750] sm:$0xf]
            %773 = vrot.lane.b32.xlu0 %v772, 127
            %v774 = vpop.permute.xlu0 %773
            %v775 = vlaneseq
            %v776 = vand.u32 %v775, 127
            %vm777 = vcmp.eq.s32.totalorder %v776, 3
            %v778 = vsel %vm777, %v754, %v774
            %779 = vst [vmem:[%s749] sm:$0xf] %v771
            %780 = vst [vmem:[%s750] sm:$0xf] %v778
            %s781 = smov [#allocation20]
            %s782 = smov [#allocation22]
            %v783 = vld [vmem:[%s781] ss:$0 sm:$0xff]
            %s785 = scalar_lea.vmem %s781, 4294967295
            %v786 = vld [vmem:[%s785] sm:$0xe]
            %v787 = vlaneseq
            %v788 = vshrl.u32 %v787, 7
            %vm789 = vcmp.eq.s32.totalorder %v788, 0
            %v790 = vsel %vm789, %v783, %v786
            %s791 = scalar_lea.vmem %s781, 3
            %v792 = vld [vmem:[%s791] ss:$0 sm:$0xff]
            %793 = vst [vmem:[%s781] sm:$0xf] %v790
            %v794 = vld [vmem:[%s782] ss:$0 sm:$0xff]
            %s795 = scalar_lea.vmem %s781, 1
            %796 = vst [vmem:[%s795] sm:$0x1] %v794
            %s797 = scalar_lea.vmem %s782, 1
            %v798 = vld [vmem:[%s797] sm:$0x7]
            %v799 = vlaneseq
            %v800 = vshrl.u32 %v799, 7
            %vm801 = vcmp.eq.s32.totalorder %v800, 3
            %v802 = vsel %vm801, %v792, %v798
            %v803 = vld [vmem:[%s782] ss:$0 sm:$0xff]
            %804 = vst [vmem:[%s782] sm:$0xf] %v802
            %s805 = smov [#allocation21]
            %s806 = smov [#allocation23]
            %v807 = vld [vmem:[%s805] ss:$0 sm:$0xff]
            %s809 = scalar_lea.vmem %s805, 4294967295
            %v810 = vld [vmem:[%s809] sm:$0xe]
            %v811 = vlaneseq
            %v812 = vshrl.u32 %v811, 7
            %vm813 = vcmp.eq.s32.totalorder %v812, 0
            %v814 = vsel %vm813, %v807, %v810
            %s815 = scalar_lea.vmem %s805, 3
            %v816 = vld [vmem:[%s815] ss:$0 sm:$0xff]
            %817 = vst [vmem:[%s805] sm:$0xf] %v814
            %v818 = vld [vmem:[%s806] ss:$0 sm:$0xff]
            %s819 = scalar_lea.vmem %s805, 1
            %820 = vst [vmem:[%s819] sm:$0x1] %v818
            %s821 = scalar_lea.vmem %s806, 1
            %v822 = vld [vmem:[%s821] sm:$0x7]
            %v823 = vlaneseq
            %v824 = vshrl.u32 %v823, 7
            %vm825 = vcmp.eq.s32.totalorder %v824, 3
            %v826 = vsel %vm825, %v816, %v822
            %v827 = vld [vmem:[%s806] ss:$0 sm:$0xff]
            %828 = vst [vmem:[%s806] sm:$0xf] %v826
            %s829 = smov [#allocation31]
            %v830 = vld [vmem:[%s829] sm:$0xff]
            %s831 = smov [#allocation32]
            %v832 = vld [vmem:[%s831] sm:$0xff]
            %s833 = smov [#allocation12]
            %s834 = smov [#allocation14]
            %s835 = smov [#allocation16]
            %s836 = smov [#allocation18]
            %v837 = vld [vmem:[%s833] sm:$0xf]
            %v838 = vld [vmem:[%s834] sm:$0xf]
            %v839 = vld [vmem:[%s835] sm:$0xf]
            %v840 = vld [vmem:[%s836] sm:$0xf]
            %v841 = vmul.f32 %v830, %v837
            %v842 = vmul.f32 %v832, %v839
            %v843 = vsub.f32 %v841, %v842
            %v844 = vmul.f32 %v830, %v838
            %v845 = vmul.f32 %v832, %v840
            %v846 = vsub.f32 %v844, %v845
            %v847 = vmul.f32 %v832, %v837
            %v848 = vmul.f32 %v830, %v839
            %v849 = vadd.f32 %v847, %v848
            %v850 = vmul.f32 %v832, %v838
            %v851 = vmul.f32 %v830, %v840
            %v852 = vadd.f32 %v850, %v851
            %853 = vst [vmem:[%s833] sm:$0xf] %v843
            %854 = vst [vmem:[%s834] sm:$0xf] %v846
            %855 = vst [vmem:[%s835] sm:$0xf] %v849
            %856 = vst [vmem:[%s836] sm:$0xf] %v852
            %s857 = smov [#allocation12]
            %s858 = smov [#allocation16]
            %v859 = vld [vmem:[%s857] ss:$0 sm:$0xff]
            %s861 = scalar_lea.vmem %s857, 4294967295
            %v862 = vld [vmem:[%s861] sm:$0xe]
            %v863 = vlaneseq
            %v864 = vshrl.u32 %v863, 7
            %vm865 = vcmp.eq.s32.totalorder %v864, 0
            %v866 = vsel %vm865, %v859, %v862
            %s867 = scalar_lea.vmem %s857, 3
            %v868 = vld [vmem:[%s867] ss:$0 sm:$0xff]
            %869 = vst [vmem:[%s857] sm:$0xf] %v866
            %v870 = vld [vmem:[%s858] ss:$0 sm:$0xff]
            %s871 = scalar_lea.vmem %s857, 1
            %872 = vst [vmem:[%s871] sm:$0x1] %v870
            %s873 = scalar_lea.vmem %s858, 1
            %v874 = vld [vmem:[%s873] sm:$0x7]
            %v875 = vlaneseq
            %v876 = vshrl.u32 %v875, 7
            %vm877 = vcmp.eq.s32.totalorder %v876, 3
            %v878 = vsel %vm877, %v868, %v874
            %v879 = vld [vmem:[%s858] ss:$0 sm:$0xff]
            %880 = vst [vmem:[%s858] sm:$0xf] %v878
            %s881 = smov [#allocation14]
            %s882 = smov [#allocation18]
            %v883 = vld [vmem:[%s881] ss:$0 sm:$0xff]
            %s885 = scalar_lea.vmem %s881, 4294967295
            %v886 = vld [vmem:[%s885] sm:$0xe]
            %v887 = vlaneseq
            %v888 = vshrl.u32 %v887, 7
            %vm889 = vcmp.eq.s32.totalorder %v888, 0
            %v890 = vsel %vm889, %v883, %v886
            %s891 = scalar_lea.vmem %s881, 3
            %v892 = vld [vmem:[%s891] ss:$0 sm:$0xff]
            %893 = vst [vmem:[%s881] sm:$0xf] %v890
            %v894 = vld [vmem:[%s882] ss:$0 sm:$0xff]
            %s895 = scalar_lea.vmem %s881, 1
            %896 = vst [vmem:[%s895] sm:$0x1] %v894
            %s897 = scalar_lea.vmem %s882, 1
            %v898 = vld [vmem:[%s897] sm:$0x7]
            %v899 = vlaneseq
            %v900 = vshrl.u32 %v899, 7
            %vm901 = vcmp.eq.s32.totalorder %v900, 3
            %v902 = vsel %vm901, %v892, %v898
            %v903 = vld [vmem:[%s882] ss:$0 sm:$0xff]
            %904 = vst [vmem:[%s882] sm:$0xf] %v902
          $region152: #{custom-call.16} parent=144 // loop_footer
            %s465 = sadd.s32 1, %s461
          $region153: #{custom-call.16} parent=144 // loop_footer_branch
            %460 = sbr.rel target = $region149
          $region154: #{custom-call.16} parent=144 // loop_exit
            _
          %s905 = sadd.s32 %s363, 1
        $region145: #{custom-call.16} parent=139 // loop_footer
          _
        $region146: #{custom-call.16} parent=139 // loop_footer_branch
          %362 = sbr.rel target = $region142
        $region147: #{custom-call.16} parent=139 // loop_exit
          _
        %s908 = sand.u32 %s17, 7
        %s909 = scalar_lea.vmem [#allocation8], %s908
        %s910 = sand.u32 %s17, 7
        %s911 = scalar_lea.vmem [#allocation10], %s910
        %s912 = smov [#allocation20]
        %s913 = smov %s909
        %v914 = vlaneseq
        %v915 = vand.u32 %v914, 127
        %v916 = vmov %v915
        %v917 = vlaneseq
        %v918 = vshrl.u32 %v917, 7
        %v919 = vmov %v918
        %v920 = vld [vmem:[%s912] sm:$0xf]
        %vm923 = vcmp.eq.s32.totalorder %v919, %v916
        %v924 = vsel %vm923, %v920, 0.0
        %v925 = vrot.slane %v924, 4
        %v926 = vadd.f32 %v924, %v925
        %v927 = vrot.slane %v926, 2
        %v928 = vadd.f32 %v926, %v927
        %v929 = vrot.slane %v928, 1
        %v930 = vadd.f32 %v928, %v929
        %931 = vst [vmem:[%s913] sm:$0x1] %v930
        %s932 = smov [#allocation23]
        %s933 = smov %s911
        %v934 = vlaneseq
        %v935 = vand.u32 %v934, 127
        %v936 = vmov %v935
        %v937 = vlaneseq
        %v938 = vshrl.u32 %v937, 7
        %v939 = vmov %v938
        %v940 = vld [vmem:[%s932] sm:$0xf]
        %vm943 = vcmp.eq.s32.totalorder %v939, %v936
        %v944 = vsel %vm943, %v940, 0.0
        %v945 = vrot.slane %v944, 4
        %v946 = vadd.f32 %v944, %v945
        %v947 = vrot.slane %v946, 2
        %v948 = vadd.f32 %v946, %v947
        %v949 = vrot.slane %v948, 1
        %v950 = vadd.f32 %v948, %v949
        %951 = vst [vmem:[%s933] sm:$0x1] %v950
        %s953 = sshllo.u32 0, 4
        %v955 = vld [vmem:[#allocation8] sm:%s953]
        %s956 = sshllo.u32 0, 4
        %957 = vst [vmem:[%s279] sm:%s956] %v955
        %s959 = sshllo.u32 0, 4
        %v961 = vld [vmem:[#allocation10] sm:%s959]
        %s962 = sshllo.u32 0, 4
        %963 = vst [vmem:[%s285] sm:%s962] %v961
        %s965 = sshllo.u32 0, 4
        %v967 = vld [vmem:[#allocation12] sm:%s965]
        %s968 = sshllo.u32 0, 4
        %969 = vst [vmem:[%s289] sm:%s968] %v967
        %s971 = sshllo.u32 0, 4
        %v973 = vld [vmem:[#allocation14] sm:%s971]
        %s974 = sshllo.u32 0, 4
        %975 = vst [vmem:[%s293] sm:%s974] %v973
        %s977 = sshllo.u32 0, 4
        %v979 = vld [vmem:[#allocation16] sm:%s977]
        %s980 = sshllo.u32 0, 4
        %981 = vst [vmem:[%s297] sm:%s980] %v979
        %s983 = sshllo.u32 0, 4
        %v985 = vld [vmem:[#allocation18] sm:%s983]
        %s986 = sshllo.u32 0, 4
        %987 = vst [vmem:[%s301] sm:%s986] %v985
        %s988 = sand.u32 %s27, 1
        %s989 = sand.u32 %s27, 1
        %s990 = smul.addr %s989, 4
        %s991 = scalar_lea.vmem [#allocation9], %s990
        %s992 = sand.u32 %s55, 1
        %s993 = sand.u32 %s55, 1
        %s994 = smul.addr %s993, 4
        %s995 = scalar_lea.vmem [#allocation11], %s994
        %s996 = sand.u32 %s17, 1
        %s997 = sand.u32 %s17, 1
        %s998 = smul.addr %s997, 4
        %s999 = scalar_lea.vmem [#allocation13], %s998
        %s1000 = sand.u32 %s17, 1
        %s1001 = sand.u32 %s17, 1
        %s1002 = smul.addr %s1001, 4
        %s1003 = scalar_lea.vmem [#allocation15], %s1002
        %s1004 = sand.u32 %s17, 1
        %s1005 = sand.u32 %s17, 1
        %s1006 = smul.addr %s1005, 4
        %s1007 = scalar_lea.vmem [#allocation17], %s1006
        %s1008 = sand.u32 %s17, 1
        %s1009 = sand.u32 %s17, 1
        %s1010 = smul.addr %s1009, 4
        %s1011 = scalar_lea.vmem [#allocation19], %s1010
        // Predicated region
        $region155: #{custom-call.16} parent=139 // pred_check
          %p1012 = pneg %p37
        $region156: #{custom-call.16} parent=139 // pred_check_branch
          %1014 = sbr.rel (%p1012) target = $region158
        $region157: #{custom-call.16} parent=139 // pred_region
          %s1015 = sshrl.u32 %s17, 3
          %s1016 = smul.addr %s1015, 4
          %s1017 = scalar_lea.vmem %s4, %s1016
          // Predicated region
          $region159: #{custom-call.16} parent=157 // pred_check
            _
          $region160: #{custom-call.16} parent=157 // pred_check_branch
            %1019 = sbr.rel (0) target = $region162
          $region161: #{custom-call.16} parent=157 // pred_region
            // Predicated region
            $region163: #{custom-call.16} parent=161 // pred_check
              _
            $region164: #{custom-call.16} parent=161 // pred_check_branch
              %1021 = sbr.rel target = $region166
            $region165: #{custom-call.16} parent=161 // pred_region
              // Predicated region
              $region178: #{custom-call.16} parent=165 // pred_check
                _
              $region179: #{custom-call.16} parent=165 // pred_check_branch
                %1036 = sbr.rel (0) target = $region181
              $region180: #{custom-call.16} parent=165 // pred_region
                loop: start=0, step=1, limit=1
                $region182: #{custom-call.16} parent=180 // loop_pre_header
                  _
                $region183: #{custom-call.16} parent=180 // loop_header
                  %s1039 = sphi 0, %s1043
                  %p1040 = scmp.ge.s32.totalorder %s1039, 1
                  %s1044 = sphi %s991, %s991
                  %s1045 = sphi %s1017, %s1017
                $region184: #{custom-call.16} parent=180 // loop_header_branch
                  %1042 = sbr.rel (%p1040) target = $region188
                $region185: #{custom-call.16} parent=180 // loop_body
                  %v1046 = vld [vmem:[%s1044] sm:$0xf]
                  %1047 = vst [vmem:[%s1045] sm:$0xf] %v1046
                $region186: #{custom-call.16} parent=180 // loop_footer
                  %s1043 = sadd.s32 1, %s1039
                $region187: #{custom-call.16} parent=180 // loop_footer_branch
                  %1038 = sbr.rel target = $region183
                $region188: #{custom-call.16} parent=180 // loop_exit
                  _
              $region181: #{custom-call.16} parent=165 // pred_fallthru
                _
            $region166: #{custom-call.16} parent=161 // pred_fallthru
              _
            // Predicated region
            $region167: #{custom-call.16} parent=161 // pred_check
              _
            $region168: #{custom-call.16} parent=161 // pred_check_branch
              %1023 = sbr.rel (0) target = $region170
            $region169: #{custom-call.16} parent=161 // pred_region
              loop: start=0, step=1, limit=1
              $region171: #{custom-call.16} parent=169 // loop_pre_header
                _
              $region172: #{custom-call.16} parent=169 // loop_header
                %s1026 = sphi 0, %s1030
                %p1027 = scmp.ge.s32.totalorder %s1026, 1
                %s1031 = sphi %s991, %s991
                %s1032 = sphi %s1017, %s1017
              $region173: #{custom-call.16} parent=169 // loop_header_branch
                %1029 = sbr.rel (%p1027) target = $region177
              $region174: #{custom-call.16} parent=169 // loop_body
                %v1033 = vld [vmem:[%s1031] sm:$0xf]
                %1034 = vst [vmem:[%s1032] sm:$0xf] %v1033
              $region175: #{custom-call.16} parent=169 // loop_footer
                %s1030 = sadd.s32 1, %s1026
              $region176: #{custom-call.16} parent=169 // loop_footer_branch
                %1025 = sbr.rel target = $region172
              $region177: #{custom-call.16} parent=169 // loop_exit
                _
            $region170: #{custom-call.16} parent=161 // pred_fallthru
              _
          $region162: #{custom-call.16} parent=157 // pred_fallthru
            _
          %1048 = vnop
        $region158: #{custom-call.16} parent=139 // pred_fallthru
          _
        // Predicated region
        $region189: #{custom-call.16} parent=139 // pred_check
          %p1049 = pneg %p65
        $region190: #{custom-call.16} parent=139 // pred_check_branch
          %1051 = sbr.rel (%p1049) target = $region192
        $region191: #{custom-call.16} parent=139 // pred_region
          %s1052 = sshrl.u32 %s17, 3
          %s1053 = smul.addr %s1052, 4
          %s1054 = scalar_lea.vmem %s5, %s1053
          // Predicated region
          $region193: #{custom-call.16} parent=191 // pred_check
            _
          $region194: #{custom-call.16} parent=191 // pred_check_branch
            %1056 = sbr.rel (0) target = $region196
          $region195: #{custom-call.16} parent=191 // pred_region
            // Predicated region
            $region197: #{custom-call.16} parent=195 // pred_check
              _
            $region198: #{custom-call.16} parent=195 // pred_check_branch
              %1058 = sbr.rel target = $region200
            $region199: #{custom-call.16} parent=195 // pred_region
              // Predicated region
              $region212: #{custom-call.16} parent=199 // pred_check
                _
              $region213: #{custom-call.16} parent=199 // pred_check_branch
                %1073 = sbr.rel (0) target = $region215
              $region214: #{custom-call.16} parent=199 // pred_region
                loop: start=0, step=1, limit=1
                $region216: #{custom-call.16} parent=214 // loop_pre_header
                  _
                $region217: #{custom-call.16} parent=214 // loop_header
                  %s1076 = sphi 0, %s1080
                  %p1077 = scmp.ge.s32.totalorder %s1076, 1
                  %s1081 = sphi %s995, %s995
                  %s1082 = sphi %s1054, %s1054
                $region218: #{custom-call.16} parent=214 // loop_header_branch
                  %1079 = sbr.rel (%p1077) target = $region222
                $region219: #{custom-call.16} parent=214 // loop_body
                  %v1083 = vld [vmem:[%s1081] sm:$0xf]
                  %1084 = vst [vmem:[%s1082] sm:$0xf] %v1083
                $region220: #{custom-call.16} parent=214 // loop_footer
                  %s1080 = sadd.s32 1, %s1076
                $region221: #{custom-call.16} parent=214 // loop_footer_branch
                  %1075 = sbr.rel target = $region217
                $region222: #{custom-call.16} parent=214 // loop_exit
                  _
              $region215: #{custom-call.16} parent=199 // pred_fallthru
                _
            $region200: #{custom-call.16} parent=195 // pred_fallthru
              _
            // Predicated region
            $region201: #{custom-call.16} parent=195 // pred_check
              _
            $region202: #{custom-call.16} parent=195 // pred_check_branch
              %1060 = sbr.rel (0) target = $region204
            $region203: #{custom-call.16} parent=195 // pred_region
              loop: start=0, step=1, limit=1
              $region205: #{custom-call.16} parent=203 // loop_pre_header
                _
              $region206: #{custom-call.16} parent=203 // loop_header
                %s1063 = sphi 0, %s1067
                %p1064 = scmp.ge.s32.totalorder %s1063, 1
                %s1068 = sphi %s995, %s995
                %s1069 = sphi %s1054, %s1054
              $region207: #{custom-call.16} parent=203 // loop_header_branch
                %1066 = sbr.rel (%p1064) target = $region211
              $region208: #{custom-call.16} parent=203 // loop_body
                %v1070 = vld [vmem:[%s1068] sm:$0xf]
                %1071 = vst [vmem:[%s1069] sm:$0xf] %v1070
              $region209: #{custom-call.16} parent=203 // loop_footer
                %s1067 = sadd.s32 1, %s1063
              $region210: #{custom-call.16} parent=203 // loop_footer_branch
                %1062 = sbr.rel target = $region206
              $region211: #{custom-call.16} parent=203 // loop_exit
                _
            $region204: #{custom-call.16} parent=195 // pred_fallthru
              _
          $region196: #{custom-call.16} parent=191 // pred_fallthru
            _
          %1085 = vnop
        $region192: #{custom-call.16} parent=139 // pred_fallthru
          _
        %s1086 = smul.addr %s17, 4
        %s1087 = scalar_lea.vmem %s6, %s1086
        // Predicated region
        $region223: #{custom-call.16} parent=139 // pred_check
          _
        $region224: #{custom-call.16} parent=139 // pred_check_branch
          %1089 = sbr.rel (0) target = $region226
        $region225: #{custom-call.16} parent=139 // pred_region
          // Predicated region
          $region227: #{custom-call.16} parent=225 // pred_check
            _
          $region228: #{custom-call.16} parent=225 // pred_check_branch
            %1091 = sbr.rel target = $region230
          $region229: #{custom-call.16} parent=225 // pred_region
            // Predicated region
            $region242: #{custom-call.16} parent=229 // pred_check
              _
            $region243: #{custom-call.16} parent=229 // pred_check_branch
              %1106 = sbr.rel (0) target = $region245
            $region244: #{custom-call.16} parent=229 // pred_region
              loop: start=0, step=1, limit=1
              $region246: #{custom-call.16} parent=244 // loop_pre_header
                _
              $region247: #{custom-call.16} parent=244 // loop_header
                %s1109 = sphi 0, %s1113
                %p1110 = scmp.ge.s32.totalorder %s1109, 1
                %s1114 = sphi %s999, %s999
                %s1115 = sphi %s1087, %s1087
              $region248: #{custom-call.16} parent=244 // loop_header_branch
                %1112 = sbr.rel (%p1110) target = $region252
              $region249: #{custom-call.16} parent=244 // loop_body
                %v1116 = vld [vmem:[%s1114] sm:$0xf]
                %1117 = vst [vmem:[%s1115] sm:$0xf] %v1116
              $region250: #{custom-call.16} parent=244 // loop_footer
                %s1113 = sadd.s32 1, %s1109
              $region251: #{custom-call.16} parent=244 // loop_footer_branch
                %1108 = sbr.rel target = $region247
              $region252: #{custom-call.16} parent=244 // loop_exit
                _
            $region245: #{custom-call.16} parent=229 // pred_fallthru
              _
          $region230: #{custom-call.16} parent=225 // pred_fallthru
            _
          // Predicated region
          $region231: #{custom-call.16} parent=225 // pred_check
            _
          $region232: #{custom-call.16} parent=225 // pred_check_branch
            %1093 = sbr.rel (0) target = $region234
          $region233: #{custom-call.16} parent=225 // pred_region
            loop: start=0, step=1, limit=1
            $region235: #{custom-call.16} parent=233 // loop_pre_header
              _
            $region236: #{custom-call.16} parent=233 // loop_header
              %s1096 = sphi 0, %s1100
              %p1097 = scmp.ge.s32.totalorder %s1096, 1
              %s1101 = sphi %s999, %s999
              %s1102 = sphi %s1087, %s1087
            $region237: #{custom-call.16} parent=233 // loop_header_branch
              %1099 = sbr.rel (%p1097) target = $region241
            $region238: #{custom-call.16} parent=233 // loop_body
              %v1103 = vld [vmem:[%s1101] sm:$0xf]
              %1104 = vst [vmem:[%s1102] sm:$0xf] %v1103
            $region239: #{custom-call.16} parent=233 // loop_footer
              %s1100 = sadd.s32 1, %s1096
            $region240: #{custom-call.16} parent=233 // loop_footer_branch
              %1095 = sbr.rel target = $region236
            $region241: #{custom-call.16} parent=233 // loop_exit
              _
          $region234: #{custom-call.16} parent=225 // pred_fallthru
            _
        $region226: #{custom-call.16} parent=139 // pred_fallthru
          _
        %1118 = vnop
        %s1119 = smul.addr %s17, 4
        %s1120 = scalar_lea.vmem %s7, %s1119
        // Predicated region
        $region253: #{custom-call.16} parent=139 // pred_check
          _
        $region254: #{custom-call.16} parent=139 // pred_check_branch
          %1122 = sbr.rel (0) target = $region256
        $region255: #{custom-call.16} parent=139 // pred_region
          // Predicated region
          $region257: #{custom-call.16} parent=255 // pred_check
            _
          $region258: #{custom-call.16} parent=255 // pred_check_branch
            %1124 = sbr.rel target = $region260
          $region259: #{custom-call.16} parent=255 // pred_region
            // Predicated region
            $region272: #{custom-call.16} parent=259 // pred_check
              _
            $region273: #{custom-call.16} parent=259 // pred_check_branch
              %1139 = sbr.rel (0) target = $region275
            $region274: #{custom-call.16} parent=259 // pred_region
              loop: start=0, step=1, limit=1
              $region276: #{custom-call.16} parent=274 // loop_pre_header
                _
              $region277: #{custom-call.16} parent=274 // loop_header
                %s1142 = sphi 0, %s1146
                %p1143 = scmp.ge.s32.totalorder %s1142, 1
                %s1147 = sphi %s1003, %s1003
                %s1148 = sphi %s1120, %s1120
              $region278: #{custom-call.16} parent=274 // loop_header_branch
                %1145 = sbr.rel (%p1143) target = $region282
              $region279: #{custom-call.16} parent=274 // loop_body
                %v1149 = vld [vmem:[%s1147] sm:$0xf]
                %1150 = vst [vmem:[%s1148] sm:$0xf] %v1149
              $region280: #{custom-call.16} parent=274 // loop_footer
                %s1146 = sadd.s32 1, %s1142
              $region281: #{custom-call.16} parent=274 // loop_footer_branch
                %1141 = sbr.rel target = $region277
              $region282: #{custom-call.16} parent=274 // loop_exit
                _
            $region275: #{custom-call.16} parent=259 // pred_fallthru
              _
          $region260: #{custom-call.16} parent=255 // pred_fallthru
            _
          // Predicated region
          $region261: #{custom-call.16} parent=255 // pred_check
            _
          $region262: #{custom-call.16} parent=255 // pred_check_branch
            %1126 = sbr.rel (0) target = $region264
          $region263: #{custom-call.16} parent=255 // pred_region
            loop: start=0, step=1, limit=1
            $region265: #{custom-call.16} parent=263 // loop_pre_header
              _
            $region266: #{custom-call.16} parent=263 // loop_header
              %s1129 = sphi 0, %s1133
              %p1130 = scmp.ge.s32.totalorder %s1129, 1
              %s1134 = sphi %s1003, %s1003
              %s1135 = sphi %s1120, %s1120
            $region267: #{custom-call.16} parent=263 // loop_header_branch
              %1132 = sbr.rel (%p1130) target = $region271
            $region268: #{custom-call.16} parent=263 // loop_body
              %v1136 = vld [vmem:[%s1134] sm:$0xf]
              %1137 = vst [vmem:[%s1135] sm:$0xf] %v1136
            $region269: #{custom-call.16} parent=263 // loop_footer
              %s1133 = sadd.s32 1, %s1129
            $region270: #{custom-call.16} parent=263 // loop_footer_branch
              %1128 = sbr.rel target = $region266
            $region271: #{custom-call.16} parent=263 // loop_exit
              _
          $region264: #{custom-call.16} parent=255 // pred_fallthru
            _
        $region256: #{custom-call.16} parent=139 // pred_fallthru
          _
        %1151 = vnop
        %s1152 = smul.addr %s17, 4
        %s1153 = scalar_lea.vmem %s8, %s1152
        // Predicated region
        $region283: #{custom-call.16} parent=139 // pred_check
          _
        $region284: #{custom-call.16} parent=139 // pred_check_branch
          %1155 = sbr.rel (0) target = $region286
        $region285: #{custom-call.16} parent=139 // pred_region
          // Predicated region
          $region287: #{custom-call.16} parent=285 // pred_check
            _
          $region288: #{custom-call.16} parent=285 // pred_check_branch
            %1157 = sbr.rel target = $region290
          $region289: #{custom-call.16} parent=285 // pred_region
            // Predicated region
            $region302: #{custom-call.16} parent=289 // pred_check
              _
            $region303: #{custom-call.16} parent=289 // pred_check_branch
              %1172 = sbr.rel (0) target = $region305
            $region304: #{custom-call.16} parent=289 // pred_region
              loop: start=0, step=1, limit=1
              $region306: #{custom-call.16} parent=304 // loop_pre_header
                _
              $region307: #{custom-call.16} parent=304 // loop_header
                %s1175 = sphi 0, %s1179
                %p1176 = scmp.ge.s32.totalorder %s1175, 1
                %s1180 = sphi %s1007, %s1007
                %s1181 = sphi %s1153, %s1153
              $region308: #{custom-call.16} parent=304 // loop_header_branch
                %1178 = sbr.rel (%p1176) target = $region312
              $region309: #{custom-call.16} parent=304 // loop_body
                %v1182 = vld [vmem:[%s1180] sm:$0xf]
                %1183 = vst [vmem:[%s1181] sm:$0xf] %v1182
              $region310: #{custom-call.16} parent=304 // loop_footer
                %s1179 = sadd.s32 1, %s1175
              $region311: #{custom-call.16} parent=304 // loop_footer_branch
                %1174 = sbr.rel target = $region307
              $region312: #{custom-call.16} parent=304 // loop_exit
                _
            $region305: #{custom-call.16} parent=289 // pred_fallthru
              _
          $region290: #{custom-call.16} parent=285 // pred_fallthru
            _
          // Predicated region
          $region291: #{custom-call.16} parent=285 // pred_check
            _
          $region292: #{custom-call.16} parent=285 // pred_check_branch
            %1159 = sbr.rel (0) target = $region294
          $region293: #{custom-call.16} parent=285 // pred_region
            loop: start=0, step=1, limit=1
            $region295: #{custom-call.16} parent=293 // loop_pre_header
              _
            $region296: #{custom-call.16} parent=293 // loop_header
              %s1162 = sphi 0, %s1166
              %p1163 = scmp.ge.s32.totalorder %s1162, 1
              %s1167 = sphi %s1007, %s1007
              %s1168 = sphi %s1153, %s1153
            $region297: #{custom-call.16} parent=293 // loop_header_branch
              %1165 = sbr.rel (%p1163) target = $region301
            $region298: #{custom-call.16} parent=293 // loop_body
              %v1169 = vld [vmem:[%s1167] sm:$0xf]
              %1170 = vst [vmem:[%s1168] sm:$0xf] %v1169
            $region299: #{custom-call.16} parent=293 // loop_footer
              %s1166 = sadd.s32 1, %s1162
            $region300: #{custom-call.16} parent=293 // loop_footer_branch
              %1161 = sbr.rel target = $region296
            $region301: #{custom-call.16} parent=293 // loop_exit
              _
          $region294: #{custom-call.16} parent=285 // pred_fallthru
            _
        $region286: #{custom-call.16} parent=139 // pred_fallthru
          _
        %1184 = vnop
        %s1185 = smul.addr %s17, 4
        %s1186 = scalar_lea.vmem %s9, %s1185
        // Predicated region
        $region313: #{custom-call.16} parent=139 // pred_check
          _
        $region314: #{custom-call.16} parent=139 // pred_check_branch
          %1188 = sbr.rel (0) target = $region316
        $region315: #{custom-call.16} parent=139 // pred_region
          // Predicated region
          $region317: #{custom-call.16} parent=315 // pred_check
            _
          $region318: #{custom-call.16} parent=315 // pred_check_branch
            %1190 = sbr.rel target = $region320
          $region319: #{custom-call.16} parent=315 // pred_region
            // Predicated region
            $region332: #{custom-call.16} parent=319 // pred_check
              _
            $region333: #{custom-call.16} parent=319 // pred_check_branch
              %1205 = sbr.rel (0) target = $region335
            $region334: #{custom-call.16} parent=319 // pred_region
              loop: start=0, step=1, limit=1
              $region336: #{custom-call.16} parent=334 // loop_pre_header
                _
              $region337: #{custom-call.16} parent=334 // loop_header
                %s1208 = sphi 0, %s1212
                %p1209 = scmp.ge.s32.totalorder %s1208, 1
                %s1213 = sphi %s1011, %s1011
                %s1214 = sphi %s1186, %s1186
              $region338: #{custom-call.16} parent=334 // loop_header_branch
                %1211 = sbr.rel (%p1209) target = $region342
              $region339: #{custom-call.16} parent=334 // loop_body
                %v1215 = vld [vmem:[%s1213] sm:$0xf]
                %1216 = vst [vmem:[%s1214] sm:$0xf] %v1215
              $region340: #{custom-call.16} parent=334 // loop_footer
                %s1212 = sadd.s32 1, %s1208
              $region341: #{custom-call.16} parent=334 // loop_footer_branch
                %1207 = sbr.rel target = $region337
              $region342: #{custom-call.16} parent=334 // loop_exit
                _
            $region335: #{custom-call.16} parent=319 // pred_fallthru
              _
          $region320: #{custom-call.16} parent=315 // pred_fallthru
            _
          // Predicated region
          $region321: #{custom-call.16} parent=315 // pred_check
            _
          $region322: #{custom-call.16} parent=315 // pred_check_branch
            %1192 = sbr.rel (0) target = $region324
          $region323: #{custom-call.16} parent=315 // pred_region
            loop: start=0, step=1, limit=1
            $region325: #{custom-call.16} parent=323 // loop_pre_header
              _
            $region326: #{custom-call.16} parent=323 // loop_header
              %s1195 = sphi 0, %s1199
              %p1196 = scmp.ge.s32.totalorder %s1195, 1
              %s1200 = sphi %s1011, %s1011
              %s1201 = sphi %s1186, %s1186
            $region327: #{custom-call.16} parent=323 // loop_header_branch
              %1198 = sbr.rel (%p1196) target = $region331
            $region328: #{custom-call.16} parent=323 // loop_body
              %v1202 = vld [vmem:[%s1200] sm:$0xf]
              %1203 = vst [vmem:[%s1201] sm:$0xf] %v1202
            $region329: #{custom-call.16} parent=323 // loop_footer
              %s1199 = sadd.s32 1, %s1195
            $region330: #{custom-call.16} parent=323 // loop_footer_branch
              %1194 = sbr.rel target = $region326
            $region331: #{custom-call.16} parent=323 // loop_exit
              _
          $region324: #{custom-call.16} parent=315 // pred_fallthru
            _
        $region316: #{custom-call.16} parent=139 // pred_fallthru
          _
        %1217 = vnop
      $region140: #{custom-call.16} parent=5 // pred_fallthru
        _
      %p1218 = scmp.le.s32.totalorder 2, %s12
      // Predicated region
      $region343: #{custom-call.16} parent=5 // pred_check
        %p1219 = pneg %p1218
      $region344: #{custom-call.16} parent=5 // pred_check_branch
        %1221 = sbr.rel (%p1219) target = $region346
      $region345: #{custom-call.16} parent=5 // pred_region
        %s1222 = ssub.s32 %s12, 2
        // Predicated region
        $region347: #{custom-call.16} parent=345 // pred_check
          %p1223 = pneg %p43
        $region348: #{custom-call.16} parent=345 // pred_check_branch
          %1225 = sbr.rel (%p1223) target = $region350
        $region349: #{custom-call.16} parent=345 // pred_region
          %s1226 = sand.u32 %s28, 1
          %s1227 = sand.u32 %s28, 1
          %s1228 = smul.addr %s1227, 4
          %s1229 = scalar_lea.vmem [#allocation9], %s1228
        $region350: #{custom-call.16} parent=345 // pred_fallthru
          _
        // Predicated region
        $region351: #{custom-call.16} parent=345 // pred_check
          %p1230 = pneg %p71
        $region352: #{custom-call.16} parent=345 // pred_check_branch
          %1232 = sbr.rel (%p1230) target = $region354
        $region353: #{custom-call.16} parent=345 // pred_region
          %s1233 = sand.u32 %s56, 1
          %s1234 = sand.u32 %s56, 1
          %s1235 = smul.addr %s1234, 4
          %s1236 = scalar_lea.vmem [#allocation11], %s1235
        $region354: #{custom-call.16} parent=345 // pred_fallthru
          _
        %s1237 = sand.u32 %s18, 1
        %s1238 = sand.u32 %s18, 1
        %s1239 = smul.addr %s1238, 4
        %s1240 = scalar_lea.vmem [#allocation13], %s1239
        %s1241 = sand.u32 %s18, 1
        %s1242 = sand.u32 %s18, 1
        %s1243 = smul.addr %s1242, 4
        %s1244 = scalar_lea.vmem [#allocation15], %s1243
        %s1245 = sand.u32 %s18, 1
        %s1246 = sand.u32 %s18, 1
        %s1247 = smul.addr %s1246, 4
        %s1248 = scalar_lea.vmem [#allocation17], %s1247
        %s1249 = sand.u32 %s18, 1
        %s1250 = sand.u32 %s18, 1
        %s1251 = smul.addr %s1250, 4
        %s1252 = scalar_lea.vmem [#allocation19], %s1251
      $region346: #{custom-call.16} parent=5 // pred_fallthru
        _
    $region6: #{custom-call.16} parent=1 // loop_footer
      %s16 = sadd.s32 1, %s12
    $region7: #{custom-call.16} parent=1 // loop_footer_branch
      %11 = sbr.rel target = $region3
    $region8: #{custom-call.16} parent=1 // loop_exit
      _

// kernel: reverse
$region0: #{reverse}
  %s0 = inlined_call_operand.vmem [shape: f32[4,8], index: 0, kind: input, shape index: {}]
  %s1 = inlined_call_operand.vmem [shape: f32[4,8], index: 1, kind: output, shape index: {}]
  %v2 = vlaneseq
  %v3 = vsub.s32 7, %v2
  %4 = vset.pattern.permute.xlu0 %v3
  $region1: #{reverse} parent=0
    #allocation0 [shape = 'u8[4096]{0}', space=vmem, size = 0x1000, scoped, tag = 'operand span for operand 0']
    #allocation1 [shape = 'u8[2048]{0}', space=vmem, size = 0x800, scoped, tag = 'packed  for operand 0']
    #allocation2 [shape = 'u8[4096]{0}', space=vmem, size = 0x1000, scoped, tag = 'operand span for operand 1']
    #allocation3 [shape = 'u8[2048]{0}', space=vmem, size = 0x800, scoped, tag = 'packed  for operand 1']
    // Predicated region
    $region2: #{reverse} parent=1 // pred_check
      _
    $region3: #{reverse} parent=1 // pred_check_branch
      %6 = sbr.rel (0) target = $region5
    $region4: #{reverse} parent=1 // pred_region
      // Predicated region
      $region6: #{reverse} parent=4 // pred_check
        _
      $region7: #{reverse} parent=4 // pred_check_branch
        %8 = sbr.rel target = $region9
      $region8: #{reverse} parent=4 // pred_region
        // Predicated region
        $region21: #{reverse} parent=8 // pred_check
          _
        $region22: #{reverse} parent=8 // pred_check_branch
          %23 = sbr.rel (0) target = $region24
        $region23: #{reverse} parent=8 // pred_region
          loop: start=0, step=1, limit=1
          $region25: #{reverse} parent=23 // loop_pre_header
            _
          $region26: #{reverse} parent=23 // loop_header
            %s26 = sphi 0, %s30
            %p27 = scmp.ge.s32.totalorder %s26, 1
            %s31 = sphi %s0, %s0
            %s32 = sphi [#allocation1], [#allocation1]
          $region27: #{reverse} parent=23 // loop_header_branch
            %29 = sbr.rel (%p27) target = $region31
          $region28: #{reverse} parent=23 // loop_body
            %v33 = vld [vmem:[%s31] sm:$0xf]
            %34 = vst [vmem:[%s32] sm:$0xf] %v33
          $region29: #{reverse} parent=23 // loop_footer
            %s30 = sadd.s32 1, %s26
          $region30: #{reverse} parent=23 // loop_footer_branch
            %25 = sbr.rel target = $region26
          $region31: #{reverse} parent=23 // loop_exit
            _
        $region24: #{reverse} parent=8 // pred_fallthru
          _
      $region9: #{reverse} parent=4 // pred_fallthru
        _
      // Predicated region
      $region10: #{reverse} parent=4 // pred_check
        _
      $region11: #{reverse} parent=4 // pred_check_branch
        %10 = sbr.rel (0) target = $region13
      $region12: #{reverse} parent=4 // pred_region
        loop: start=0, step=1, limit=1
        $region14: #{reverse} parent=12 // loop_pre_header
          _
        $region15: #{reverse} parent=12 // loop_header
          %s13 = sphi 0, %s17
          %p14 = scmp.ge.s32.totalorder %s13, 1
          %s18 = sphi %s0, %s0
          %s19 = sphi [#allocation1], [#allocation1]
        $region16: #{reverse} parent=12 // loop_header_branch
          %16 = sbr.rel (%p14) target = $region20
        $region17: #{reverse} parent=12 // loop_body
          %v20 = vld [vmem:[%s18] sm:$0xf]
          %21 = vst [vmem:[%s19] sm:$0xf] %v20
        $region18: #{reverse} parent=12 // loop_footer
          %s17 = sadd.s32 1, %s13
        $region19: #{reverse} parent=12 // loop_footer_branch
          %12 = sbr.rel target = $region15
        $region20: #{reverse} parent=12 // loop_exit
          _
      $region13: #{reverse} parent=4 // pred_fallthru
        _
    $region5: #{reverse} parent=1 // pred_fallthru
      _
    %35 = vnop
    %s37 = sshllo.u32 0, 4
    %v38 = vld [vmem:[#allocation1] sm:%s37]
    %39 = vst [vmem:[#allocation0] sm:%s37] %v38
    %v40 = vld [vmem:[#allocation0] sm:$0xff]
    %41 = vperm.xlu0 %4, %v40
    %v42 = vpop.permute.xlu0 %41
    %43 = vst [vmem:[#allocation2] sm:$0xff] %v42
    %s45 = sshllo.u32 0, 4
    %v47 = vld [vmem:[#allocation2] sm:%s45]
    %s48 = sshllo.u32 0, 4
    %49 = vst [vmem:[#allocation3] sm:%s48] %v47
    // Predicated region
    $region32: #{reverse} parent=1 // pred_check
      _
    $region33: #{reverse} parent=1 // pred_check_branch
      %51 = sbr.rel (0) target = $region35
    $region34: #{reverse} parent=1 // pred_region
      // Predicated region
      $region36: #{reverse} parent=34 // pred_check
        _
      $region37: #{reverse} parent=34 // pred_check_branch
        %53 = sbr.rel target = $region39
      $region38: #{reverse} parent=34 // pred_region
        // Predicated region
        $region51: #{reverse} parent=38 // pred_check
          _
        $region52: #{reverse} parent=38 // pred_check_branch
          %68 = sbr.rel (0) target = $region54
        $region53: #{reverse} parent=38 // pred_region
          loop: start=0, step=1, limit=1
          $region55: #{reverse} parent=53 // loop_pre_header
            _
          $region56: #{reverse} parent=53 // loop_header
            %s71 = sphi 0, %s75
            %p72 = scmp.ge.s32.totalorder %s71, 1
            %s76 = sphi [#allocation3], [#allocation3]
            %s77 = sphi %s1, %s1
          $region57: #{reverse} parent=53 // loop_header_branch
            %74 = sbr.rel (%p72) target = $region61
          $region58: #{reverse} parent=53 // loop_body
            %v78 = vld [vmem:[%s76] sm:$0xf]
            %79 = vst [vmem:[%s77] sm:$0xf] %v78
          $region59: #{reverse} parent=53 // loop_footer
            %s75 = sadd.s32 1, %s71
          $region60: #{reverse} parent=53 // loop_footer_branch
            %70 = sbr.rel target = $region56
          $region61: #{reverse} parent=53 // loop_exit
            _
        $region54: #{reverse} parent=38 // pred_fallthru
          _
      $region39: #{reverse} parent=34 // pred_fallthru
        _
      // Predicated region
      $region40: #{reverse} parent=34 // pred_check
        _
      $region41: #{reverse} parent=34 // pred_check_branch
        %55 = sbr.rel (0) target = $region43
      $region42: #{reverse} parent=34 // pred_region
        loop: start=0, step=1, limit=1
        $region44: #{reverse} parent=42 // loop_pre_header
          _
        $region45: #{reverse} parent=42 // loop_header
          %s58 = sphi 0, %s62
          %p59 = scmp.ge.s32.totalorder %s58, 1
          %s63 = sphi [#allocation3], [#allocation3]
          %s64 = sphi %s1, %s1
        $region46: #{reverse} parent=42 // loop_header_branch
          %61 = sbr.rel (%p59) target = $region50
        $region47: #{reverse} parent=42 // loop_body
          %v65 = vld [vmem:[%s63] sm:$0xf]
          %66 = vst [vmem:[%s64] sm:$0xf] %v65
        $region48: #{reverse} parent=42 // loop_footer
          %s62 = sadd.s32 1, %s58
        $region49: #{reverse} parent=42 // loop_footer_branch
          %57 = sbr.rel target = $region45
        $region50: #{reverse} parent=42 // loop_exit
          _
      $region43: #{reverse} parent=34 // pred_fallthru
        _
    $region35: #{reverse} parent=1 // pred_fallthru
      _
    %80 = vnop

// kernel: custom-call.10
$region0: #{custom-call.10}
  %s0 = inlined_call_operand.vmem [shape: f32[4,8,8], index: 0, kind: input, shape index: {}]
  %s1 = inlined_call_operand.vmem [shape: f32[4,8,8], index: 1, kind: output, shape index: {0}]
  %s2 = inlined_call_operand.vmem [shape: f32[4,8], index: 2, kind: output, shape index: {1}]
  %3 = xla_tuple %s1, %s2
  $region1: #{custom-call.10} parent=0
    #allocation0 [shape = 'u8[8192]{0}', space=vmem, size = 0x2000, scoped, tag = 'operand span for operand 0']
    #allocation1 [shape = 'u8[8192]{0}', space=vmem, size = 0x2000, scoped, tag = 'operand span for operand 1']
    #allocation2 [shape = 'u8[4096]{0}', space=vmem, size = 0x1000, scoped, tag = 'operand span for operand 2']
    #allocation3 [shape = 'u8[4096]{0}', space=vmem, size = 0x1000, scoped, tag = 'packed  for operand 2']
    loop: start=0, step=1, limit=6
    $region2: #{custom-call.10} parent=1 // loop_pre_header
      _
    $region3: #{custom-call.10} parent=1 // loop_header
      %s5 = sphi 0, %s9
      %p6 = scmp.ge.s32.totalorder %s5, 6
      %s12 = sphi 0, %s31
      %s13 = sphi 0, %s27
      %s14 = sphi 0, %s23
      %s15 = sphi 0, %s12
      %s16 = sphi 0, %s13
      %s17 = sphi 0, %s14
      %s18 = sphi 0, %s15
      %s19 = sphi 0, %s16
      %s20 = sphi 0, %s17
      %s46 = sphi 0, %s48
      %s49 = sphi 0, %s46
      %s50 = sphi 0, %s49
      %s66 = sphi 0, %s50
    $region4: #{custom-call.10} parent=1 // loop_header_branch
      %8 = sbr.rel (%p6) target = $region8
    $region5: #{custom-call.10} parent=1 // loop_body
      %s10 = ssub.s32 %s5, 1
      %s11 = ssub.s32 %s5, 2
      %s21 = sadd.s32 1, %s14
      %p22 = scmp.ge.s32.totalorder %s21, 1
      %s23 = scalar_select %p22, 0, %s21
      %s24 = sadd.s32 1, %s13
      %s25 = scalar_select %p22, %s24, %s13
      %p26 = scmp.ge.s32.totalorder %s25, 1
      %s27 = scalar_select %p26, 0, %s25
      %s28 = sadd.s32 1, %s12
      %s29 = scalar_select %p26, %s28, %s12
      %p30 = scmp.ge.s32.totalorder %s29, 4
      %s31 = scalar_select %p30, 0, %s29
      %p32 = scmp.lt.s32.totalorder %s12, 0
      %s33 = ssub.s32 0, %s12
      %s34 = scalar_select %p32, %s33, %s12
      %s35 = sshrl.u32 %s34, 3
      %s36 = ssub.s32 0, %s35
      %s37 = scalar_select %p32, %s36, %s35
      %p38 = scmp.lt.s32.totalorder %s31, 0
      %s39 = ssub.s32 0, %s31
      %s40 = scalar_select %p38, %s39, %s31
      %s41 = sshrl.u32 %s40, 3
      %s42 = ssub.s32 0, %s41
      %s43 = scalar_select %p38, %s42, %s41
      %s44 = ssub.s32 %s37, %s43
      %p45 = scmp.eq.s32.totalorder %s44, 0
      %s47 = sadd.s32 %s46, 1
      %s48 = scalar_select %p45, %s46, %s47
      %p51 = pneg %p45
      %p52 = scmp.eq.s32.totalorder %s5, 3
      %p53 = por %p51, %p52
      %p54 = scmp.ne.s32.totalorder %s46, %s49
      %p55 = scmp.eq.s32.totalorder %s5, 0
      %p56 = por %p54, %p55
      %p57 = scmp.ne.s32.totalorder %s46, %s49
      %p58 = scmp.eq.s32.totalorder %s10, 3
      %p59 = por %p57, %p58
      %p60 = scmp.ne.s32.totalorder %s49, %s50
      %p61 = scmp.eq.s32.totalorder %s10, 0
      %p62 = por %p60, %p61
      %p63 = scmp.ne.s32.totalorder %s49, %s50
      %p64 = scmp.eq.s32.totalorder %s11, 3
      %p65 = por %p63, %p64
      %p67 = scmp.ne.s32.totalorder %s50, %s66
      %p68 = scmp.eq.s32.totalorder %s11, 0
      %p69 = por %p67, %p68
      %p70 = scmp.le.s32.totalorder 1, %s5
      %p71 = scmp.lt.s32.totalorder %s5, 5
      %p72 = pnand %p70, %p71
      %p73 = pneg %p72
      // Predicated region
      $region9: #{custom-call.10} parent=5 // pred_check
        _
      $region10: #{custom-call.10} parent=5 // pred_check_branch
        %75 = sbr.rel (%p72) target = $region12
      $region11: #{custom-call.10} parent=5 // pred_region
        %s76 = ssub.s32 %s5, 1
      $region12: #{custom-call.10} parent=5 // pred_fallthru
        _
      %p77 = scmp.lt.s32.totalorder %s5, 4
      // Predicated region
      $region13: #{custom-call.10} parent=5 // pred_check
        %p78 = pneg %p77
      $region14: #{custom-call.10} parent=5 // pred_check_branch
        %80 = sbr.rel (%p78) target = $region16
      $region15: #{custom-call.10} parent=5 // pred_region
        %s81 = sand.u32 %s5, 1
        %s82 = sand.u32 %s5, 1
        %s83 = smul.addr %s82, 8
        %s84 = scalar_lea.vmem [#allocation0], %s83
        %s85 = sadd.s32 %s14, %s13
        %s86 = sadd.s32 %s85, %s12
        %s87 = smul.addr %s86, 8
        %s88 = scalar_lea.vmem %s0, %s87
        // Predicated region
        $region17: #{custom-call.10} parent=15 // pred_check
          _
        $region18: #{custom-call.10} parent=15 // pred_check_branch
          %90 = sbr.rel (0) target = $region20
        $region19: #{custom-call.10} parent=15 // pred_region
          // Predicated region
          $region21: #{custom-call.10} parent=19 // pred_check
            _
          $region22: #{custom-call.10} parent=19 // pred_check_branch
            %92 = sbr.rel (0) target = $region24
          $region23: #{custom-call.10} parent=19 // pred_region
            // Predicated region
            $region36: #{custom-call.10} parent=23 // pred_check
              _
            $region37: #{custom-call.10} parent=23 // pred_check_branch
              %107 = sbr.rel (0) target = $region39
            $region38: #{custom-call.10} parent=23 // pred_region
              loop: start=0, step=1, limit=1
              $region40: #{custom-call.10} parent=38 // loop_pre_header
                _
              $region41: #{custom-call.10} parent=38 // loop_header
                %s109 = sphi 0, %s113
                %p110 = scmp.ge.s32.totalorder %s109, 1
                %s114 = sphi %s88, %s88
                %s115 = sphi %s84, %s84
              $region42: #{custom-call.10} parent=38 // loop_header_branch
                %112 = sbr.rel (%p110) target = $region46
              $region43: #{custom-call.10} parent=38 // loop_body
                %v116 = vld [vmem:[%s114] sm:$0xff]
                %117 = vst [vmem:[%s115] sm:$0xff] %v116
              $region44: #{custom-call.10} parent=38 // loop_footer
                %s113 = sadd.s32 1, %s109
              $region45: #{custom-call.10} parent=38 // loop_footer_branch
                %108 = sbr.rel target = $region41
              $region46: #{custom-call.10} parent=38 // loop_exit
                _
            $region39: #{custom-call.10} parent=23 // pred_fallthru
              _
            // Predicated region
            $region47: #{custom-call.10} parent=23 // pred_check
              _
            $region48: #{custom-call.10} parent=23 // pred_check_branch
              %119 = sbr.rel target = $region50
            $region49: #{custom-call.10} parent=23 // pred_region
              _
            $region50: #{custom-call.10} parent=23 // pred_fallthru
              _
          $region24: #{custom-call.10} parent=19 // pred_fallthru
            _
          // Predicated region
          $region25: #{custom-call.10} parent=19 // pred_check
            _
          $region26: #{custom-call.10} parent=19 // pred_check_branch
            %94 = sbr.rel target = $region28
          $region27: #{custom-call.10} parent=19 // pred_region
            loop: start=0, step=1, limit=1
            $region29: #{custom-call.10} parent=27 // loop_pre_header
              _
            $region30: #{custom-call.10} parent=27 // loop_header
              %s97 = sphi 0, %s101
              %p98 = scmp.ge.s32.totalorder %s97, 1
              %s102 = sphi %s88, %s88
              %s103 = sphi %s84, %s84
            $region31: #{custom-call.10} parent=27 // loop_header_branch
              %100 = sbr.rel (%p98) target = $region35
            $region32: #{custom-call.10} parent=27 // loop_body
              %v104 = vld [vmem:[%s102] sm:$0xff]
              %105 = vst [vmem:[%s103] sm:$0xff] %v104
            $region33: #{custom-call.10} parent=27 // loop_footer
              %s101 = sadd.s32 1, %s97
            $region34: #{custom-call.10} parent=27 // loop_footer_branch
              %96 = sbr.rel target = $region30
            $region35: #{custom-call.10} parent=27 // loop_exit
              _
          $region28: #{custom-call.10} parent=19 // pred_fallthru
            _
        $region20: #{custom-call.10} parent=15 // pred_fallthru
          _
        %120 = vnop
      $region16: #{custom-call.10} parent=5 // pred_fallthru
        _
      %p121 = scmp.le.s32.totalorder 1, %s5
      %p122 = scmp.lt.s32.totalorder %s5, 5
      %p123 = pnand %p121, %p122
      %p124 = pneg %p123
      // Predicated region
      $region51: #{custom-call.10} parent=5 // pred_check
        _
      $region52: #{custom-call.10} parent=5 // pred_check_branch
        %126 = sbr.rel (%p123) target = $region54
      $region53: #{custom-call.10} parent=5 // pred_region
        #allocation4 [shape = 'f32[8,128]{1,0}', space=vmem, size = 0x1000, scoped, tag = 'scratch for Householder reflectors']
        %s127 = ssub.s32 %s5, 1
        %s128 = sand.u32 %s10, 1
        %s129 = sand.u32 %s10, 1
        %s130 = smul.addr %s129, 8
        %s131 = scalar_lea.vmem [#allocation0], %s130
        %s132 = sand.u32 %s10, 1
        %s133 = sand.u32 %s10, 1
        %s134 = smul.addr %s133, 8
        %s135 = scalar_lea.vmem [#allocation0], %s134
        %s136 = sand.u32 %s10, 1
        %s137 = sand.u32 %s10, 1
        %s138 = smul.addr %s137, 8
        %s139 = scalar_lea.vmem [#allocation1], %s138
        %p140 = pneg %p62
        %p141 = pneg %p59
        %s142 = sand.u32 %s49, 1
        %s143 = sand.u32 %s49, 1
        %s144 = smul.addr %s143, 4
        %s145 = scalar_lea.vmem [#allocation3], %s144
        %p146 = scmp.lt.s32.totalorder %s15, 0
        %s147 = ssub.s32 0, %s15
        %s148 = scalar_select %p146, %s147, %s15
        %s149 = sshrl.u32 %s148, 3
        %s150 = ssub.s32 0, %s149
        %s151 = scalar_select %p146, %s150, %s149
        %s152 = sand.u32 %s15, 7
        %s153 = scalar_lea.vmem [#allocation2], %s152
        %v154 = vld [vmem:[%s131] sm:$0xff]
        %155 = vst [vmem:[%s139] sm:$0xff] %v154
        %156 = vst [vmem:[%s153] sm:$0x1] 0.0
        loop: start=0, step=1, limit=8
        $region55: #{custom-call.10} parent=53 // loop_pre_header
          _
        $region56: #{custom-call.10} parent=53 // loop_header
          %s158 = sphi 0, %s162
          %p159 = scmp.ge.s32.totalorder %s158, 8
        $region57: #{custom-call.10} parent=53 // loop_header_branch
          %161 = sbr.rel (%p159) target = $region61
        $region58: #{custom-call.10} parent=53 // loop_body
          %v163 = vld [vmem:[%s139] sm:$0xff]
          %v164 = vlaneseq
          %v165 = vshrl.u32 %v164, 7
          %v167 = vstv %s158
          %vm168 = vcmp.gt.s32.totalorder %v165, %v167
          %vm169 = vcmp.lt.s32.totalorder %v165, 8
          %vm170 = vmand %vm168, %vm169
          %v171 = vsel %vm170, %v163, 0.0
          %v172 = vmul.f32 %v171, %v171
          %v173 = vrot.slane %v172, 4
          %v174 = vadd.f32 %v172, %v173
          %v175 = vrot.slane %v174, 2
          %v176 = vadd.f32 %v174, %v175
          %v177 = vrot.slane %v176, 1
          %v178 = vadd.f32 %v176, %v177
          %v179 = vrsqrt.pop %v178
          %v180 = vmul.f32 %v178, %v179
          %vm181 = vcmp.eq.f32.partialorder %v178, inf
          %v182 = vsel %vm181, %v178, %v180
          %vm183 = vcmp.eq.f32.partialorder %v178, 0.0
          %v184 = vand.u32 %v178, 2147483648
          %v185 = vsel %vm183, %v184, %v182
          %vm186 = vcmp.eq.f32.partialorder %v178, 0.0
          %s187 = sshrl.u32 %s158, 3
          %s188 = sand.u32 %s158, 7
          %s189 = smul.addr %s187, 8
          %s190 = sadd.s32 %s188, %s189
          %s191 = scalar_lea.vmem %s139, %s190 [#allocation1]
          %v192 = vld [vmem:[%s191] ss:$0 sm:$0xff]
          %v193 = vand.u32 2147483647, %v192
          %v194 = vmax.f32 %v193, 0.0
          %v195 = vand.u32 2147483647, %v185
          %v196 = vmax.f32 %v194, %v195
          %v197 = vrcp.pop %v196
          %v198 = vmul.f32 %v193, %v197
          %v199 = vmul.f32 %v198, %v198
          %v200 = vrcp.pop %v196
          %v201 = vmul.f32 0.0, %v200
          %v202 = vmul.f32 %v201, %v201
          %v203 = vadd.f32 %v199, %v202
          %v204 = vrcp.pop %v196
          %v205 = vmul.f32 %v195, %v204
          %v206 = vmul.f32 %v205, %v205
          %v207 = vadd.f32 %v203, %v206
          %vm208 = vcmp.eq.f32.partialorder %v196, 0.0
          %v209 = vrsqrt.pop %v207
          %v210 = vmul.f32 %v207, %v209
          %vm211 = vcmp.eq.f32.partialorder %v207, inf
          %v212 = vsel %vm211, %v207, %v210
          %vm213 = vcmp.eq.f32.partialorder %v207, 0.0
          %v214 = vand.u32 %v207, 2147483648
          %v215 = vsel %vm213, %v214, %v212
          %v216 = vmul.f32 %v196, %v215
          %v217 = vsel %vm208, 0.0, %v216
          %vm218 = vcmp.lt.f32.partialorder %v192, 0.0
          %v219 = vxor.u32 %v217, 2147483648
          %v220 = vsel %vm218, %v217, %v219
          %v221 = vsub.f32 %v220, %v192
          %v222 = vrcp.pop %v220
          %v223 = vmul.f32 %v221, %v222
          %v224 = vsel %vm186, %v192, %v220
          %v225 = vsel %vm186, 0.0, %v223
          %v226 = vsub.f32 %v192, %v224
          %s227 = smov %s139
          %v228 = vlaneseq
          %v229 = vshrl.u32 %v228, 7
          %v230 = vmov %v229
          %v231 = vld [vmem:[%s227] sm:$0xff]
          %v233 = vstv %s158
          %vm234 = vcmp.gt.s32.totalorder %v230, %v233
          %vm235 = vcmp.lt.s32.totalorder %v230, 8
          %vm236 = vmand %vm234, %vm235
          %v237 = vsel %vm236, %v231, 0.0
          %v238 = vrcp.pop %v226
          %v239 = vmul.f32 %v237, %v238
          %v240 = vsel %vm186, 0.0, %v239
          %v241 = vstv %s158
          %v242 = vlaneseq
          %v243 = vand.u32 %v242, 127
          %vm244 = vcmp.eq.s32.totalorder %v243, %v241
          %v245 = vsel %vm244, %v240, 0.0
          %246 = vadd.xlane.f32.xlu0 %v245
          %v247 = vpop.xlane.xlu0 %246
          %248 = vst [vmem:[#allocation4] sm:$0xff] %v247
          %s249 = scalar_lea.vmem [#allocation4], %s158
          %250 = vst [vmem:[%s249] sm:$0x1] 1.0
          %v251 = vstv %s158
          %v252 = vlaneseq
          %v253 = vand.u32 %v252, 127
          %vm254 = vcmp.eq.s32.totalorder %v253, %v251
          %v255 = vsel %vm254, %v225, 0.0
          %256 = vadd.xlane.f32.xlu0 %v255
          %v257 = vpop.xlane.xlu0 %256
          %v258 = vstv %s158
          %v259 = vlaneseq
          %v260 = vand.u32 %v259, 127
          %vm261 = vcmp.eq.s32.totalorder %v260, %v258
          %v262 = vld [vmem:[%s153] ss:$0 sm:$0xff]
          %v263 = vsel %vm261, %v257, %v262
          %264 = vst [vmem:[%s153] sm:$0x1] %v263
          %s265 = smov %s139
          %s266 = smov [#allocation4]
          %v267 = vlaneseq
          %v268 = vshrl.u32 %v267, 7
          %v269 = vmov %v268
          %v271 = vld [vmem:[%s266] sm:$0xff]
          %v272 = vld [vmem:[%s265] sm:$0xff]
          %v273 = vmul.f32 %v271, %v272
          %vm274 = vcmp.lt.s32.totalorder %v269, 8
          %v275 = vsel %vm274, %v273, 0.0
          %v276 = vrot.slane %v275, 4
          %v277 = vadd.f32 %v275, %v276
          %v278 = vrot.slane %v277, 2
          %v279 = vadd.f32 %v277, %v278
          %v280 = vrot.slane %v279, 1
          %v281 = vadd.f32 %v279, %v280
          %s282 = smov %s265
          %s283 = smov %s266
          %v284 = vlaneseq
          %v285 = vshrl.u32 %v284, 7
          %v286 = vmov %v285
          %v287 = vmul.f32 %v281, %v257
          %v289 = vlaneseq
          %v290 = vand.u32 %v289, 127
          %v291 = vld [vmem:[%s283] sm:$0xff]
          %v292 = vmul.f32 %v291, %v287
          %v293 = vld [vmem:[%s282] sm:$0xff]
          %v294 = vstv %s158
          %vm295 = vcmp.gt.s32.totalorder %v290, %v294
          %v296 = vsub.f32 %v293, %v292
          %v297 = vsel %vm295, %v296, %v293
          %v298 = vstv %s158
          %v299 = vlaneseq
          %v300 = vand.u32 %v299, 127
          %vm301 = vcmp.eq.s32.totalorder %v300, %v298
          %v302 = vstv %s158
          %vm303 = vcmp.ge.s32.totalorder %v286, %v302
          %vm304 = vmand %vm301, %vm303
          %v305 = vsel %vm304, %v291, %v297
          %306 = vst [vmem:[%s282] sm:$0xff] %v305
          %s307 = scalar_lea.vmem %s282, %s158
          %v308 = vld [vmem:[%s307] ss:$0 sm:$0xff]
          %v309 = vstv %s158
          %v310 = vlaneseq
          %v311 = vand.u32 %v310, 127
          %vm312 = vcmp.eq.s32.totalorder %v311, %v309
          %v313 = vsel %vm312, %v224, %v308
          %314 = vst [vmem:[%s307] sm:$0x1] %v313
        $region59: #{custom-call.10} parent=53 // loop_footer
          %s162 = sadd.s32 1, %s158
        $region60: #{custom-call.10} parent=53 // loop_footer_branch
          %157 = sbr.rel target = $region56
        $region61: #{custom-call.10} parent=53 // loop_exit
          _
        %s316 = sshllo.u32 0, 4
        %v318 = vld [vmem:[#allocation2] sm:%s316]
        %s319 = sshllo.u32 0, 4
        %320 = vst [vmem:[%s145] sm:%s319] %v318
        %s321 = sand.u32 %s10, 1
        %s322 = sand.u32 %s10, 1
        %s323 = smul.addr %s322, 8
        %s324 = scalar_lea.vmem [#allocation1], %s323
        %s325 = sand.u32 %s49, 1
        %s326 = sand.u32 %s49, 1
        %s327 = smul.addr %s326, 4
        %s328 = scalar_lea.vmem [#allocation3], %s327
        %s329 = sadd.s32 %s17, %s16
        %s330 = sadd.s32 %s329, %s15
        %s331 = smul.addr %s330, 8
        %s332 = scalar_lea.vmem %s1, %s331
        // Predicated region
        $region62: #{custom-call.10} parent=53 // pred_check
          _
        $region63: #{custom-call.10} parent=53 // pred_check_branch
          %334 = sbr.rel (0) target = $region65
        $region64: #{custom-call.10} parent=53 // pred_region
          // Predicated region
          $region66: #{custom-call.10} parent=64 // pred_check
            _
          $region67: #{custom-call.10} parent=64 // pred_check_branch
            %336 = sbr.rel (0) target = $region69
          $region68: #{custom-call.10} parent=64 // pred_region
            // Predicated region
            $region81: #{custom-call.10} parent=68 // pred_check
              _
            $region82: #{custom-call.10} parent=68 // pred_check_branch
              %351 = sbr.rel (0) target = $region84
            $region83: #{custom-call.10} parent=68 // pred_region
              loop: start=0, step=1, limit=1
              $region85: #{custom-call.10} parent=83 // loop_pre_header
                _
              $region86: #{custom-call.10} parent=83 // loop_header
                %s353 = sphi 0, %s357
                %p354 = scmp.ge.s32.totalorder %s353, 1
                %s358 = sphi %s324, %s324
                %s359 = sphi %s332, %s332
              $region87: #{custom-call.10} parent=83 // loop_header_branch
                %356 = sbr.rel (%p354) target = $region91
              $region88: #{custom-call.10} parent=83 // loop_body
                %v360 = vld [vmem:[%s358] sm:$0xff]
                %361 = vst [vmem:[%s359] sm:$0xff] %v360
              $region89: #{custom-call.10} parent=83 // loop_footer
                %s357 = sadd.s32 1, %s353
              $region90: #{custom-call.10} parent=83 // loop_footer_branch
                %352 = sbr.rel target = $region86
              $region91: #{custom-call.10} parent=83 // loop_exit
                _
            $region84: #{custom-call.10} parent=68 // pred_fallthru
              _
            // Predicated region
            $region92: #{custom-call.10} parent=68 // pred_check
              _
            $region93: #{custom-call.10} parent=68 // pred_check_branch
              %363 = sbr.rel target = $region95
            $region94: #{custom-call.10} parent=68 // pred_region
              _
            $region95: #{custom-call.10} parent=68 // pred_fallthru
              _
          $region69: #{custom-call.10} parent=64 // pred_fallthru
            _
          // Predicated region
          $region70: #{custom-call.10} parent=64 // pred_check
            _
          $region71: #{custom-call.10} parent=64 // pred_check_branch
            %338 = sbr.rel target = $region73
          $region72: #{custom-call.10} parent=64 // pred_region
            loop: start=0, step=1, limit=1
            $region74: #{custom-call.10} parent=72 // loop_pre_header
              _
            $region75: #{custom-call.10} parent=72 // loop_header
              %s341 = sphi 0, %s345
              %p342 = scmp.ge.s32.totalorder %s341, 1
              %s346 = sphi %s324, %s324
              %s347 = sphi %s332, %s332
            $region76: #{custom-call.10} parent=72 // loop_header_branch
              %344 = sbr.rel (%p342) target = $region80
            $region77: #{custom-call.10} parent=72 // loop_body
              %v348 = vld [vmem:[%s346] sm:$0xff]
              %349 = vst [vmem:[%s347] sm:$0xff] %v348
            $region78: #{custom-call.10} parent=72 // loop_footer
              %s345 = sadd.s32 1, %s341
            $region79: #{custom-call.10} parent=72 // loop_footer_branch
              %340 = sbr.rel target = $region75
            $region80: #{custom-call.10} parent=72 // loop_exit
              _
          $region73: #{custom-call.10} parent=64 // pred_fallthru
            _
        $region65: #{custom-call.10} parent=53 // pred_fallthru
          _
        %364 = vnop
        // Predicated region
        $region96: #{custom-call.10} parent=53 // pred_check
          %p365 = pneg %p59
        $region97: #{custom-call.10} parent=53 // pred_check_branch
          %367 = sbr.rel (%p365) target = $region99
        $region98: #{custom-call.10} parent=53 // pred_region
          %p368 = scmp.lt.s32.totalorder %s15, 0
          %s369 = ssub.s32 0, %s15
          %s370 = scalar_select %p368, %s369, %s15
          %s371 = sshrl.u32 %s370, 3
          %s372 = ssub.s32 0, %s371
          %s373 = scalar_select %p368, %s372, %s371
          %s374 = smul.addr %s373, 4
          %s375 = scalar_lea.vmem %s2, %s374
          // Predicated region
          $region100: #{custom-call.10} parent=98 // pred_check
            _
          $region101: #{custom-call.10} parent=98 // pred_check_branch
            %377 = sbr.rel (0) target = $region103
          $region102: #{custom-call.10} parent=98 // pred_region
            // Predicated region
            $region104: #{custom-call.10} parent=102 // pred_check
              _
            $region105: #{custom-call.10} parent=102 // pred_check_branch
              %379 = sbr.rel target = $region107
            $region106: #{custom-call.10} parent=102 // pred_region
              // Predicated region
              $region119: #{custom-call.10} parent=106 // pred_check
                _
              $region120: #{custom-call.10} parent=106 // pred_check_branch
                %394 = sbr.rel (0) target = $region122
              $region121: #{custom-call.10} parent=106 // pred_region
                loop: start=0, step=1, limit=1
                $region123: #{custom-call.10} parent=121 // loop_pre_header
                  _
                $region124: #{custom-call.10} parent=121 // loop_header
                  %s397 = sphi 0, %s401
                  %p398 = scmp.ge.s32.totalorder %s397, 1
                  %s402 = sphi %s328, %s328
                  %s403 = sphi %s375, %s375
                $region125: #{custom-call.10} parent=121 // loop_header_branch
                  %400 = sbr.rel (%p398) target = $region129
                $region126: #{custom-call.10} parent=121 // loop_body
                  %v404 = vld [vmem:[%s402] sm:$0xf]
                  %405 = vst [vmem:[%s403] sm:$0xf] %v404
                $region127: #{custom-call.10} parent=121 // loop_footer
                  %s401 = sadd.s32 1, %s397
                $region128: #{custom-call.10} parent=121 // loop_footer_branch
                  %396 = sbr.rel target = $region124
                $region129: #{custom-call.10} parent=121 // loop_exit
                  _
              $region122: #{custom-call.10} parent=106 // pred_fallthru
                _
            $region107: #{custom-call.10} parent=102 // pred_fallthru
              _
            // Predicated region
            $region108: #{custom-call.10} parent=102 // pred_check
              _
            $region109: #{custom-call.10} parent=102 // pred_check_branch
              %381 = sbr.rel (0) target = $region111
            $region110: #{custom-call.10} parent=102 // pred_region
              loop: start=0, step=1, limit=1
              $region112: #{custom-call.10} parent=110 // loop_pre_header
                _
              $region113: #{custom-call.10} parent=110 // loop_header
                %s384 = sphi 0, %s388
                %p385 = scmp.ge.s32.totalorder %s384, 1
                %s389 = sphi %s328, %s328
                %s390 = sphi %s375, %s375
              $region114: #{custom-call.10} parent=110 // loop_header_branch
                %387 = sbr.rel (%p385) target = $region118
              $region115: #{custom-call.10} parent=110 // loop_body
                %v391 = vld [vmem:[%s389] sm:$0xf]
                %392 = vst [vmem:[%s390] sm:$0xf] %v391
              $region116: #{custom-call.10} parent=110 // loop_footer
                %s388 = sadd.s32 1, %s384
              $region117: #{custom-call.10} parent=110 // loop_footer_branch
                %383 = sbr.rel target = $region113
              $region118: #{custom-call.10} parent=110 // loop_exit
                _
            $region111: #{custom-call.10} parent=102 // pred_fallthru
              _
          $region103: #{custom-call.10} parent=98 // pred_fallthru
            _
          %406 = vnop
        $region99: #{custom-call.10} parent=53 // pred_fallthru
          _
      $region54: #{custom-call.10} parent=5 // pred_fallthru
        _
      %p407 = scmp.le.s32.totalorder 2, %s5
      // Predicated region
      $region130: #{custom-call.10} parent=5 // pred_check
        %p408 = pneg %p407
      $region131: #{custom-call.10} parent=5 // pred_check_branch
        %410 = sbr.rel (%p408) target = $region133
      $region132: #{custom-call.10} parent=5 // pred_region
        %s411 = ssub.s32 %s5, 2
        %s412 = sand.u32 %s11, 1
        %s413 = sand.u32 %s11, 1
        %s414 = smul.addr %s413, 8
        %s415 = scalar_lea.vmem [#allocation1], %s414
        // Predicated region
        $region134: #{custom-call.10} parent=132 // pred_check
          %p416 = pneg %p65
        $region135: #{custom-call.10} parent=132 // pred_check_branch
          %418 = sbr.rel (%p416) target = $region137
        $region136: #{custom-call.10} parent=132 // pred_region
          %s419 = sand.u32 %s50, 1
          %s420 = sand.u32 %s50, 1
          %s421 = smul.addr %s420, 4
          %s422 = scalar_lea.vmem [#allocation3], %s421
        $region137: #{custom-call.10} parent=132 // pred_fallthru
          _
      $region133: #{custom-call.10} parent=5 // pred_fallthru
        _
    $region6: #{custom-call.10} parent=1 // loop_footer
      %s9 = sadd.s32 1, %s5
    $region7: #{custom-call.10} parent=1 // loop_footer_branch
      %4 = sbr.rel target = $region3
    $region8: #{custom-call.10} parent=1 // loop_exit
      _

// kernel: a_call__.1
$region0: #{a_call__.1}
  #allocation0 [shape = 'u32[]', space=smem, size = 0x4, offset = 0x4, fixed_abs, tag = 'smem constant byte address 0x4 - core index']
  #allocation1 [shape = 'u32[144,128]{1,0:T(1,128)}', space=vmem, size = 0x12000, scoped, tag = 'internal scratch']
  %s0 = inlined_call_operand.vmem [shape: f32[8,16,128], index: 0, kind: input, shape index: {}]
  %s1 = inlined_call_operand.vmem [shape: f32[8,8,128], index: 1, kind: input, shape index: {}]
  %s2 = inlined_call_operand.vmem [shape: f32[8,16,128], index: 2, kind: output, shape index: {}]
  %s3 = sld [smem:[#allocation0]]
  $region18: #{a_call__.1} parent=0
    _
  %s5 = ssub.s32 1, %s3
  %s6 = scalar_select 0, %s5, %s3
  // Predicated region
  $region2: #{a_call__.1} parent=0 // pred_check
    _
  $region3: #{a_call__.1} parent=0 // pred_check_branch
    %8 = sbr.rel (0) target = $region5
  $region4: #{a_call__.1} parent=0 // pred_region
    _
  $region5: #{a_call__.1} parent=0 // pred_fallthru
    _
  // Predicated region
  $region6: #{a_call__.1} parent=0 // pred_check
    _
  $region7: #{a_call__.1} parent=0 // pred_check_branch
    %10 = sbr.rel (0) target = $region9
  $region8: #{a_call__.1} parent=0 // pred_region
    _
  $region9: #{a_call__.1} parent=0 // pred_fallthru
    _
  %v11 = vld [vmem:[%s0] sm:$0xff]
  %v12 = vld [vmem:[%s0 + $0x8] sm:$0xff]
  %v13 = vld [vmem:[%s1] sm:$0x1]
  %v14 = vlaneseq
  %v15 = vshrl.u32 %v14, 7
  %v16 = vsub.s32 0, %v15
  %v17 = vrot.slane %v13, %v16
  %v18 = vmul.f32 %v11, %v17
  %v19 = vmul.f32 %v12, %v17
  %s20 = scalar_lea.vmem %s0, 16
  %v21 = vld [vmem:[%s20] sm:$0xff]
  %v22 = vld [vmem:[%s20 + $0x8] sm:$0xff]
  %s23 = scalar_lea.vmem %s1, 8
  %v24 = vld [vmem:[%s23] sm:$0x1]
  %v25 = vlaneseq
  %v26 = vshrl.u32 %v25, 7
  %v27 = vsub.s32 0, %v26
  %v28 = vrot.slane %v24, %v27
  %v29 = vmul.f32 %v21, %v28
  %v30 = vmul.f32 %v22, %v28
  %v31 = vadd.f32 %v18, %v29
  %v32 = vadd.f32 %v19, %v30
  %s33 = scalar_lea.vmem %s0, 32
  %v34 = vld [vmem:[%s33] sm:$0xff]
  %v35 = vld [vmem:[%s33 + $0x8] sm:$0xff]
  %s36 = scalar_lea.vmem %s1, 16
  %v37 = vld [vmem:[%s36] sm:$0x1]
  %v38 = vlaneseq
  %v39 = vshrl.u32 %v38, 7
  %v40 = vsub.s32 0, %v39
  %v41 = vrot.slane %v37, %v40
  %v42 = vmul.f32 %v34, %v41
  %v43 = vmul.f32 %v35, %v41
  %v44 = vadd.f32 %v31, %v42
  %v45 = vadd.f32 %v32, %v43
  %s46 = scalar_lea.vmem %s0, 48
  %v47 = vld [vmem:[%s46] sm:$0xff]
  %v48 = vld [vmem:[%s46 + $0x8] sm:$0xff]
  %s49 = scalar_lea.vmem %s1, 24
  %v50 = vld [vmem:[%s49] sm:$0x1]
  %v51 = vlaneseq
  %v52 = vshrl.u32 %v51, 7
  %v53 = vsub.s32 0, %v52
  %v54 = vrot.slane %v50, %v53
  %v55 = vmul.f32 %v47, %v54
  %v56 = vmul.f32 %v48, %v54
  %v57 = vadd.f32 %v44, %v55
  %v58 = vadd.f32 %v45, %v56
  %s59 = scalar_lea.vmem %s0, 64
  %v60 = vld [vmem:[%s59] sm:$0xff]
  %v61 = vld [vmem:[%s59 + $0x8] sm:$0xff]
  %s62 = scalar_lea.vmem %s1, 32
  %v63 = vld [vmem:[%s62] sm:$0x1]
  %v64 = vlaneseq
  %v65 = vshrl.u32 %v64, 7
  %v66 = vsub.s32 0, %v65
  %v67 = vrot.slane %v63, %v66
  %v68 = vmul.f32 %v60, %v67
  %v69 = vmul.f32 %v61, %v67
  %v70 = vadd.f32 %v57, %v68
  %v71 = vadd.f32 %v58, %v69
  %s72 = scalar_lea.vmem %s0, 80
  %v73 = vld [vmem:[%s72] sm:$0xff]
  %v74 = vld [vmem:[%s72 + $0x8] sm:$0xff]
  %s75 = scalar_lea.vmem %s1, 40
  %v76 = vld [vmem:[%s75] sm:$0x1]
  %v77 = vlaneseq
  %v78 = vshrl.u32 %v77, 7
  %v79 = vsub.s32 0, %v78
  %v80 = vrot.slane %v76, %v79
  %v81 = vmul.f32 %v73, %v80
  %v82 = vmul.f32 %v74, %v80
  %v83 = vadd.f32 %v70, %v81
  %v84 = vadd.f32 %v71, %v82
  %s85 = scalar_lea.vmem %s0, 96
  %v86 = vld [vmem:[%s85] sm:$0xff]
  %v87 = vld [vmem:[%s85 + $0x8] sm:$0xff]
  %s88 = scalar_lea.vmem %s1, 48
  %v89 = vld [vmem:[%s88] sm:$0x1]
  %v90 = vlaneseq
  %v91 = vshrl.u32 %v90, 7
  %v92 = vsub.s32 0, %v91
  %v93 = vrot.slane %v89, %v92
  %v94 = vmul.f32 %v86, %v93
  %v95 = vmul.f32 %v87, %v93
  %v96 = vadd.f32 %v83, %v94
  %v97 = vadd.f32 %v84, %v95
  %s98 = scalar_lea.vmem %s0, 112
  %v99 = vld [vmem:[%s98] sm:$0xff]
  %v100 = vld [vmem:[%s98 + $0x8] sm:$0xff]
  %s101 = scalar_lea.vmem %s1, 56
  %v102 = vld [vmem:[%s101] sm:$0x1]
  %v103 = vlaneseq
  %v104 = vshrl.u32 %v103, 7
  %v105 = vsub.s32 0, %v104
  %v106 = vrot.slane %v102, %v105
  %v107 = vmul.f32 %v99, %v106
  %v108 = vmul.f32 %v100, %v106
  %v109 = vadd.f32 %v96, %v107
  %v110 = vadd.f32 %v97, %v108
  %111 = vst [vmem:[%s2] sm:$0xff] %v109
  %112 = vst [vmem:[%s2 + $0x8] sm:$0xff] %v110
  %v113 = vld [vmem:[%s0] sm:$0xff]
  %v114 = vld [vmem:[%s0 + $0x8] sm:$0xff]
  %v115 = vld [vmem:[%s1 + $0x1] sm:$0x1]
  %v116 = vlaneseq
  %v117 = vshrl.u32 %v116, 7
  %v118 = vsub.s32 0, %v117
  %v119 = vrot.slane %v115, %v118
  %v120 = vmul.f32 %v113, %v119
  %v121 = vmul.f32 %v114, %v119
  %v122 = vld [vmem:[%s20] sm:$0xff]
  %v123 = vld [vmem:[%s20 + $0x8] sm:$0xff]
  %v124 = vld [vmem:[%s23 + $0x1] sm:$0x1]
  %v125 = vlaneseq
  %v126 = vshrl.u32 %v125, 7
  %v127 = vsub.s32 0, %v126
  %v128 = vrot.slane %v124, %v127
  %v129 = vmul.f32 %v122, %v128
  %v130 = vmul.f32 %v123, %v128
  %v131 = vadd.f32 %v120, %v129
  %v132 = vadd.f32 %v121, %v130
  %v133 = vld [vmem:[%s33] sm:$0xff]
  %v134 = vld [vmem:[%s33 + $0x8] sm:$0xff]
  %v135 = vld [vmem:[%s36 + $0x1] sm:$0x1]
  %v136 = vlaneseq
  %v137 = vshrl.u32 %v136, 7
  %v138 = vsub.s32 0, %v137
  %v139 = vrot.slane %v135, %v138
  %v140 = vmul.f32 %v133, %v139
  %v141 = vmul.f32 %v134, %v139
  %v142 = vadd.f32 %v131, %v140
  %v143 = vadd.f32 %v132, %v141
  %v144 = vld [vmem:[%s46] sm:$0xff]
  %v145 = vld [vmem:[%s46 + $0x8] sm:$0xff]
  %v146 = vld [vmem:[%s49 + $0x1] sm:$0x1]
  %v147 = vlaneseq
  %v148 = vshrl.u32 %v147, 7
  %v149 = vsub.s32 0, %v148
  %v150 = vrot.slane %v146, %v149
  %v151 = vmul.f32 %v144, %v150
  %v152 = vmul.f32 %v145, %v150
  %v153 = vadd.f32 %v142, %v151
  %v154 = vadd.f32 %v143, %v152
  %v155 = vld [vmem:[%s59] sm:$0xff]
  %v156 = vld [vmem:[%s59 + $0x8] sm:$0xff]
  %v157 = vld [vmem:[%s62 + $0x1] sm:$0x1]
  %v158 = vlaneseq
  %v159 = vshrl.u32 %v158, 7
  %v160 = vsub.s32 0, %v159
  %v161 = vrot.slane %v157, %v160
  %v162 = vmul.f32 %v155, %v161
  %v163 = vmul.f32 %v156, %v161
  %v164 = vadd.f32 %v153, %v162
  %v165 = vadd.f32 %v154, %v163
  %v166 = vld [vmem:[%s72] sm:$0xff]
  %v167 = vld [vmem:[%s72 + $0x8] sm:$0xff]
  %v168 = vld [vmem:[%s75 + $0x1] sm:$0x1]
  %v169 = vlaneseq
  %v170 = vshrl.u32 %v169, 7
  %v171 = vsub.s32 0, %v170
  %v172 = vrot.slane %v168, %v171
  %v173 = vmul.f32 %v166, %v172
  %v174 = vmul.f32 %v167, %v172
  %v175 = vadd.f32 %v164, %v173
  %v176 = vadd.f32 %v165, %v174
  %v177 = vld [vmem:[%s85] sm:$0xff]
  %v178 = vld [vmem:[%s85 + $0x8] sm:$0xff]
  %v179 = vld [vmem:[%s88 + $0x1] sm:$0x1]
  %v180 = vlaneseq
  %v181 = vshrl.u32 %v180, 7
  %v182 = vsub.s32 0, %v181
  %v183 = vrot.slane %v179, %v182
  %v184 = vmul.f32 %v177, %v183
  %v185 = vmul.f32 %v178, %v183
  %v186 = vadd.f32 %v175, %v184
  %v187 = vadd.f32 %v176, %v185
  %v188 = vld [vmem:[%s98] sm:$0xff]
  %v189 = vld [vmem:[%s98 + $0x8] sm:$0xff]
  %v190 = vld [vmem:[%s101 + $0x1] sm:$0x1]
  %v191 = vlaneseq
  %v192 = vshrl.u32 %v191, 7
  %v193 = vsub.s32 0, %v192
  %v194 = vrot.slane %v190, %v193
  %v195 = vmul.f32 %v188, %v194
  %v196 = vmul.f32 %v189, %v194
  %v197 = vadd.f32 %v186, %v195
  %v198 = vadd.f32 %v187, %v196
  %s199 = scalar_lea.vmem %s2, 16
  %200 = vst [vmem:[%s199] sm:$0xff] %v197
  %201 = vst [vmem:[%s199 + $0x8] sm:$0xff] %v198
  %v202 = vld [vmem:[%s0] sm:$0xff]
  %v203 = vld [vmem:[%s0 + $0x8] sm:$0xff]
  %v204 = vld [vmem:[%s1 + $0x2] sm:$0x1]
  %v205 = vlaneseq
  %v206 = vshrl.u32 %v205, 7
  %v207 = vsub.s32 0, %v206
  %v208 = vrot.slane %v204, %v207
  %v209 = vmul.f32 %v202, %v208
  %v210 = vmul.f32 %v203, %v208
  %v211 = vld [vmem:[%s20] sm:$0xff]
  %v212 = vld [vmem:[%s20 + $0x8] sm:$0xff]
  %v213 = vld [vmem:[%s23 + $0x2] sm:$0x1]
  %v214 = vlaneseq
  %v215 = vshrl.u32 %v214, 7
  %v216 = vsub.s32 0, %v215
  %v217 = vrot.slane %v213, %v216
  %v218 = vmul.f32 %v211, %v217
  %v219 = vmul.f32 %v212, %v217
  %v220 = vadd.f32 %v209, %v218
  %v221 = vadd.f32 %v210, %v219
  %v222 = vld [vmem:[%s33] sm:$0xff]
  %v223 = vld [vmem:[%s33 + $0x8] sm:$0xff]
  %v224 = vld [vmem:[%s36 + $0x2] sm:$0x1]
  %v225 = vlaneseq
  %v226 = vshrl.u32 %v225, 7
  %v227 = vsub.s32 0, %v226
  %v228 = vrot.slane %v224, %v227
  %v229 = vmul.f32 %v222, %v228
  %v230 = vmul.f32 %v223, %v228
  %v231 = vadd.f32 %v220, %v229
  %v232 = vadd.f32 %v221, %v230
  %v233 = vld [vmem:[%s46] sm:$0xff]
  %v234 = vld [vmem:[%s46 + $0x8] sm:$0xff]
  %v235 = vld [vmem:[%s49 + $0x2] sm:$0x1]
  %v236 = vlaneseq
  %v237 = vshrl.u32 %v236, 7
  %v238 = vsub.s32 0, %v237
  %v239 = vrot.slane %v235, %v238
  %v240 = vmul.f32 %v233, %v239
  %v241 = vmul.f32 %v234, %v239
  %v242 = vadd.f32 %v231, %v240
  %v243 = vadd.f32 %v232, %v241
  %v244 = vld [vmem:[%s59] sm:$0xff]
  %v245 = vld [vmem:[%s59 + $0x8] sm:$0xff]
  %v246 = vld [vmem:[%s62 + $0x2] sm:$0x1]
  %v247 = vlaneseq
  %v248 = vshrl.u32 %v247, 7
  %v249 = vsub.s32 0, %v248
  %v250 = vrot.slane %v246, %v249
  %v251 = vmul.f32 %v244, %v250
  %v252 = vmul.f32 %v245, %v250
  %v253 = vadd.f32 %v242, %v251
  %v254 = vadd.f32 %v243, %v252
  %v255 = vld [vmem:[%s72] sm:$0xff]
  %v256 = vld [vmem:[%s72 + $0x8] sm:$0xff]
  %v257 = vld [vmem:[%s75 + $0x2] sm:$0x1]
  %v258 = vlaneseq
  %v259 = vshrl.u32 %v258, 7
  %v260 = vsub.s32 0, %v259
  %v261 = vrot.slane %v257, %v260
  %v262 = vmul.f32 %v255, %v261
  %v263 = vmul.f32 %v256, %v261
  %v264 = vadd.f32 %v253, %v262
  %v265 = vadd.f32 %v254, %v263
  %v266 = vld [vmem:[%s85] sm:$0xff]
  %v267 = vld [vmem:[%s85 + $0x8] sm:$0xff]
  %v268 = vld [vmem:[%s88 + $0x2] sm:$0x1]
  %v269 = vlaneseq
  %v270 = vshrl.u32 %v269, 7
  %v271 = vsub.s32 0, %v270
  %v272 = vrot.slane %v268, %v271
  %v273 = vmul.f32 %v266, %v272
  %v274 = vmul.f32 %v267, %v272
  %v275 = vadd.f32 %v264, %v273
  %v276 = vadd.f32 %v265, %v274
  %v277 = vld [vmem:[%s98] sm:$0xff]
  %v278 = vld [vmem:[%s98 + $0x8] sm:$0xff]
  %v279 = vld [vmem:[%s101 + $0x2] sm:$0x1]
  %v280 = vlaneseq
  %v281 = vshrl.u32 %v280, 7
  %v282 = vsub.s32 0, %v281
  %v283 = vrot.slane %v279, %v282
  %v284 = vmul.f32 %v277, %v283
  %v285 = vmul.f32 %v278, %v283
  %v286 = vadd.f32 %v275, %v284
  %v287 = vadd.f32 %v276, %v285
  %s288 = scalar_lea.vmem %s2, 32
  %289 = vst [vmem:[%s288] sm:$0xff] %v286
  %290 = vst [vmem:[%s288 + $0x8] sm:$0xff] %v287
  %v291 = vld [vmem:[%s0] sm:$0xff]
  %v292 = vld [vmem:[%s0 + $0x8] sm:$0xff]
  %v293 = vld [vmem:[%s1 + $0x3] sm:$0x1]
  %v294 = vlaneseq
  %v295 = vshrl.u32 %v294, 7
  %v296 = vsub.s32 0, %v295
  %v297 = vrot.slane %v293, %v296
  %v298 = vmul.f32 %v291, %v297
  %v299 = vmul.f32 %v292, %v297
  %v300 = vld [vmem:[%s20] sm:$0xff]
  %v301 = vld [vmem:[%s20 + $0x8] sm:$0xff]
  %v302 = vld [vmem:[%s23 + $0x3] sm:$0x1]
  %v303 = vlaneseq
  %v304 = vshrl.u32 %v303, 7
  %v305 = vsub.s32 0, %v304
  %v306 = vrot.slane %v302, %v305
  %v307 = vmul.f32 %v300, %v306
  %v308 = vmul.f32 %v301, %v306
  %v309 = vadd.f32 %v298, %v307
  %v310 = vadd.f32 %v299, %v308
  %v311 = vld [vmem:[%s33] sm:$0xff]
  %v312 = vld [vmem:[%s33 + $0x8] sm:$0xff]
  %v313 = vld [vmem:[%s36 + $0x3] sm:$0x1]
  %v314 = vlaneseq
  %v315 = vshrl.u32 %v314, 7
  %v316 = vsub.s32 0, %v315
  %v317 = vrot.slane %v313, %v316
  %v318 = vmul.f32 %v311, %v317
  %v319 = vmul.f32 %v312, %v317
  %v320 = vadd.f32 %v309, %v318
  %v321 = vadd.f32 %v310, %v319
  %v322 = vld [vmem:[%s46] sm:$0xff]
  %v323 = vld [vmem:[%s46 + $0x8] sm:$0xff]
  %v324 = vld [vmem:[%s49 + $0x3] sm:$0x1]
  %v325 = vlaneseq
  %v326 = vshrl.u32 %v325, 7
  %v327 = vsub.s32 0, %v326
  %v328 = vrot.slane %v324, %v327
  %v329 = vmul.f32 %v322, %v328
  %v330 = vmul.f32 %v323, %v328
  %v331 = vadd.f32 %v320, %v329
  %v332 = vadd.f32 %v321, %v330
  %v333 = vld [vmem:[%s59] sm:$0xff]
  %v334 = vld [vmem:[%s59 + $0x8] sm:$0xff]
  %v335 = vld [vmem:[%s62 + $0x3] sm:$0x1]
  %v336 = vlaneseq
  %v337 = vshrl.u32 %v336, 7
  %v338 = vsub.s32 0, %v337
  %v339 = vrot.slane %v335, %v338
  %v340 = vmul.f32 %v333, %v339
  %v341 = vmul.f32 %v334, %v339
  %v342 = vadd.f32 %v331, %v340
  %v343 = vadd.f32 %v332, %v341
  %v344 = vld [vmem:[%s72] sm:$0xff]
  %v345 = vld [vmem:[%s72 + $0x8] sm:$0xff]
  %v346 = vld [vmem:[%s75 + $0x3] sm:$0x1]
  %v347 = vlaneseq
  %v348 = vshrl.u32 %v347, 7
  %v349 = vsub.s32 0, %v348
  %v350 = vrot.slane %v346, %v349
  %v351 = vmul.f32 %v344, %v350
  %v352 = vmul.f32 %v345, %v350
  %v353 = vadd.f32 %v342, %v351
  %v354 = vadd.f32 %v343, %v352
  %v355 = vld [vmem:[%s85] sm:$0xff]
  %v356 = vld [vmem:[%s85 + $0x8] sm:$0xff]
  %v357 = vld [vmem:[%s88 + $0x3] sm:$0x1]
  %v358 = vlaneseq
  %v359 = vshrl.u32 %v358, 7
  %v360 = vsub.s32 0, %v359
  %v361 = vrot.slane %v357, %v360
  %v362 = vmul.f32 %v355, %v361
  %v363 = vmul.f32 %v356, %v361
  %v364 = vadd.f32 %v353, %v362
  %v365 = vadd.f32 %v354, %v363
  %v366 = vld [vmem:[%s98] sm:$0xff]
  %v367 = vld [vmem:[%s98 + $0x8] sm:$0xff]
  %v368 = vld [vmem:[%s101 + $0x3] sm:$0x1]
  %v369 = vlaneseq
  %v370 = vshrl.u32 %v369, 7
  %v371 = vsub.s32 0, %v370
  %v372 = vrot.slane %v368, %v371
  %v373 = vmul.f32 %v366, %v372
  %v374 = vmul.f32 %v367, %v372
  %v375 = vadd.f32 %v364, %v373
  %v376 = vadd.f32 %v365, %v374
  %s377 = scalar_lea.vmem %s2, 48
  %378 = vst [vmem:[%s377] sm:$0xff] %v375
  %379 = vst [vmem:[%s377 + $0x8] sm:$0xff] %v376
  %v380 = vld [vmem:[%s0] sm:$0xff]
  %v381 = vld [vmem:[%s0 + $0x8] sm:$0xff]
  %v382 = vld [vmem:[%s1 + $0x4] sm:$0x1]
  %v383 = vlaneseq
  %v384 = vshrl.u32 %v383, 7
  %v385 = vsub.s32 0, %v384
  %v386 = vrot.slane %v382, %v385
  %v387 = vmul.f32 %v380, %v386
  %v388 = vmul.f32 %v381, %v386
  %v389 = vld [vmem:[%s20] sm:$0xff]
  %v390 = vld [vmem:[%s20 + $0x8] sm:$0xff]
  %v391 = vld [vmem:[%s23 + $0x4] sm:$0x1]
  %v392 = vlaneseq
  %v393 = vshrl.u32 %v392, 7
  %v394 = vsub.s32 0, %v393
  %v395 = vrot.slane %v391, %v394
  %v396 = vmul.f32 %v389, %v395
  %v397 = vmul.f32 %v390, %v395
  %v398 = vadd.f32 %v387, %v396
  %v399 = vadd.f32 %v388, %v397
  %v400 = vld [vmem:[%s33] sm:$0xff]
  %v401 = vld [vmem:[%s33 + $0x8] sm:$0xff]
  %v402 = vld [vmem:[%s36 + $0x4] sm:$0x1]
  %v403 = vlaneseq
  %v404 = vshrl.u32 %v403, 7
  %v405 = vsub.s32 0, %v404
  %v406 = vrot.slane %v402, %v405
  %v407 = vmul.f32 %v400, %v406
  %v408 = vmul.f32 %v401, %v406
  %v409 = vadd.f32 %v398, %v407
  %v410 = vadd.f32 %v399, %v408
  %v411 = vld [vmem:[%s46] sm:$0xff]
  %v412 = vld [vmem:[%s46 + $0x8] sm:$0xff]
  %v413 = vld [vmem:[%s49 + $0x4] sm:$0x1]
  %v414 = vlaneseq
  %v415 = vshrl.u32 %v414, 7
  %v416 = vsub.s32 0, %v415
  %v417 = vrot.slane %v413, %v416
  %v418 = vmul.f32 %v411, %v417
  %v419 = vmul.f32 %v412, %v417
  %v420 = vadd.f32 %v409, %v418
  %v421 = vadd.f32 %v410, %v419
  %v422 = vld [vmem:[%s59] sm:$0xff]
  %v423 = vld [vmem:[%s59 + $0x8] sm:$0xff]
  %v424 = vld [vmem:[%s62 + $0x4] sm:$0x1]
  %v425 = vlaneseq
  %v426 = vshrl.u32 %v425, 7
  %v427 = vsub.s32 0, %v426
  %v428 = vrot.slane %v424, %v427
  %v429 = vmul.f32 %v422, %v428
  %v430 = vmul.f32 %v423, %v428
  %v431 = vadd.f32 %v420, %v429
  %v432 = vadd.f32 %v421, %v430
  %v433 = vld [vmem:[%s72] sm:$0xff]
  %v434 = vld [vmem:[%s72 + $0x8] sm:$0xff]
  %v435 = vld [vmem:[%s75 + $0x4] sm:$0x1]
  %v436 = vlaneseq
  %v437 = vshrl.u32 %v436, 7
  %v438 = vsub.s32 0, %v437
  %v439 = vrot.slane %v435, %v438
  %v440 = vmul.f32 %v433, %v439
  %v441 = vmul.f32 %v434, %v439
  %v442 = vadd.f32 %v431, %v440
  %v443 = vadd.f32 %v432, %v441
  %v444 = vld [vmem:[%s85] sm:$0xff]
  %v445 = vld [vmem:[%s85 + $0x8] sm:$0xff]
  %v446 = vld [vmem:[%s88 + $0x4] sm:$0x1]
  %v447 = vlaneseq
  %v448 = vshrl.u32 %v447, 7
  %v449 = vsub.s32 0, %v448
  %v450 = vrot.slane %v446, %v449
  %v451 = vmul.f32 %v444, %v450
  %v452 = vmul.f32 %v445, %v450
  %v453 = vadd.f32 %v442, %v451
  %v454 = vadd.f32 %v443, %v452
  %v455 = vld [vmem:[%s98] sm:$0xff]
  %v456 = vld [vmem:[%s98 + $0x8] sm:$0xff]
  %v457 = vld [vmem:[%s101 + $0x4] sm:$0x1]
  %v458 = vlaneseq
  %v459 = vshrl.u32 %v458, 7
  %v460 = vsub.s32 0, %v459
  %v461 = vrot.slane %v457, %v460
  %v462 = vmul.f32 %v455, %v461
  %v463 = vmul.f32 %v456, %v461
  %v464 = vadd.f32 %v453, %v462
  %v465 = vadd.f32 %v454, %v463
  %s466 = scalar_lea.vmem %s2, 64
  %467 = vst [vmem:[%s466] sm:$0xff] %v464
  %468 = vst [vmem:[%s466 + $0x8] sm:$0xff] %v465
  %v469 = vld [vmem:[%s0] sm:$0xff]
  %v470 = vld [vmem:[%s0 + $0x8] sm:$0xff]
  %v471 = vld [vmem:[%s1 + $0x5] sm:$0x1]
  %v472 = vlaneseq
  %v473 = vshrl.u32 %v472, 7
  %v474 = vsub.s32 0, %v473
  %v475 = vrot.slane %v471, %v474
  %v476 = vmul.f32 %v469, %v475
  %v477 = vmul.f32 %v470, %v475
  %v478 = vld [vmem:[%s20] sm:$0xff]
  %v479 = vld [vmem:[%s20 + $0x8] sm:$0xff]
  %v480 = vld [vmem:[%s23 + $0x5] sm:$0x1]
  %v481 = vlaneseq
  %v482 = vshrl.u32 %v481, 7
  %v483 = vsub.s32 0, %v482
  %v484 = vrot.slane %v480, %v483
  %v485 = vmul.f32 %v478, %v484
  %v486 = vmul.f32 %v479, %v484
  %v487 = vadd.f32 %v476, %v485
  %v488 = vadd.f32 %v477, %v486
  %v489 = vld [vmem:[%s33] sm:$0xff]
  %v490 = vld [vmem:[%s33 + $0x8] sm:$0xff]
  %v491 = vld [vmem:[%s36 + $0x5] sm:$0x1]
  %v492 = vlaneseq
  %v493 = vshrl.u32 %v492, 7
  %v494 = vsub.s32 0, %v493
  %v495 = vrot.slane %v491, %v494
  %v496 = vmul.f32 %v489, %v495
  %v497 = vmul.f32 %v490, %v495
  %v498 = vadd.f32 %v487, %v496
  %v499 = vadd.f32 %v488, %v497
  %v500 = vld [vmem:[%s46] sm:$0xff]
  %v501 = vld [vmem:[%s46 + $0x8] sm:$0xff]
  %v502 = vld [vmem:[%s49 + $0x5] sm:$0x1]
  %v503 = vlaneseq
  %v504 = vshrl.u32 %v503, 7
  %v505 = vsub.s32 0, %v504
  %v506 = vrot.slane %v502, %v505
  %v507 = vmul.f32 %v500, %v506
  %v508 = vmul.f32 %v501, %v506
  %v509 = vadd.f32 %v498, %v507
  %v510 = vadd.f32 %v499, %v508
  %v511 = vld [vmem:[%s59] sm:$0xff]
  %v512 = vld [vmem:[%s59 + $0x8] sm:$0xff]
  %v513 = vld [vmem:[%s62 + $0x5] sm:$0x1]
  %v514 = vlaneseq
  %v515 = vshrl.u32 %v514, 7
  %v516 = vsub.s32 0, %v515
  %v517 = vrot.slane %v513, %v516
  %v518 = vmul.f32 %v511, %v517
  %v519 = vmul.f32 %v512, %v517
  %v520 = vadd.f32 %v509, %v518
  %v521 = vadd.f32 %v510, %v519
  %v522 = vld [vmem:[%s72] sm:$0xff]
  %v523 = vld [vmem:[%s72 + $0x8] sm:$0xff]
  %v524 = vld [vmem:[%s75 + $0x5] sm:$0x1]
  %v525 = vlaneseq
  %v526 = vshrl.u32 %v525, 7
  %v527 = vsub.s32 0, %v526
  %v528 = vrot.slane %v524, %v527
  %v529 = vmul.f32 %v522, %v528
  %v530 = vmul.f32 %v523, %v528
  %v531 = vadd.f32 %v520, %v529
  %v532 = vadd.f32 %v521, %v530
  %v533 = vld [vmem:[%s85] sm:$0xff]
  %v534 = vld [vmem:[%s85 + $0x8] sm:$0xff]
  %v535 = vld [vmem:[%s88 + $0x5] sm:$0x1]
  %v536 = vlaneseq
  %v537 = vshrl.u32 %v536, 7
  %v538 = vsub.s32 0, %v537
  %v539 = vrot.slane %v535, %v538
  %v540 = vmul.f32 %v533, %v539
  %v541 = vmul.f32 %v534, %v539
  %v542 = vadd.f32 %v531, %v540
  %v543 = vadd.f32 %v532, %v541
  %v544 = vld [vmem:[%s98] sm:$0xff]
  %v545 = vld [vmem:[%s98 + $0x8] sm:$0xff]
  %v546 = vld [vmem:[%s101 + $0x5] sm:$0x1]
  %v547 = vlaneseq
  %v548 = vshrl.u32 %v547, 7
  %v549 = vsub.s32 0, %v548
  %v550 = vrot.slane %v546, %v549
  %v551 = vmul.f32 %v544, %v550
  %v552 = vmul.f32 %v545, %v550
  %v553 = vadd.f32 %v542, %v551
  %v554 = vadd.f32 %v543, %v552
  %s555 = scalar_lea.vmem %s2, 80
  %556 = vst [vmem:[%s555] sm:$0xff] %v553
  %557 = vst [vmem:[%s555 + $0x8] sm:$0xff] %v554
  %v558 = vld [vmem:[%s0] sm:$0xff]
  %v559 = vld [vmem:[%s0 + $0x8] sm:$0xff]
  %v560 = vld [vmem:[%s1 + $0x6] sm:$0x1]
  %v561 = vlaneseq
  %v562 = vshrl.u32 %v561, 7
  %v563 = vsub.s32 0, %v562
  %v564 = vrot.slane %v560, %v563
  %v565 = vmul.f32 %v558, %v564
  %v566 = vmul.f32 %v559, %v564
  %v567 = vld [vmem:[%s20] sm:$0xff]
  %v568 = vld [vmem:[%s20 + $0x8] sm:$0xff]
  %v569 = vld [vmem:[%s23 + $0x6] sm:$0x1]
  %v570 = vlaneseq
  %v571 = vshrl.u32 %v570, 7
  %v572 = vsub.s32 0, %v571
  %v573 = vrot.slane %v569, %v572
  %v574 = vmul.f32 %v567, %v573
  %v575 = vmul.f32 %v568, %v573
  %v576 = vadd.f32 %v565, %v574
  %v577 = vadd.f32 %v566, %v575
  %v578 = vld [vmem:[%s33] sm:$0xff]
  %v579 = vld [vmem:[%s33 + $0x8] sm:$0xff]
  %v580 = vld [vmem:[%s36 + $0x6] sm:$0x1]
  %v581 = vlaneseq
  %v582 = vshrl.u32 %v581, 7
  %v583 = vsub.s32 0, %v582
  %v584 = vrot.slane %v580, %v583
  %v585 = vmul.f32 %v578, %v584
  %v586 = vmul.f32 %v579, %v584
  %v587 = vadd.f32 %v576, %v585
  %v588 = vadd.f32 %v577, %v586
  %v589 = vld [vmem:[%s46] sm:$0xff]
  %v590 = vld [vmem:[%s46 + $0x8] sm:$0xff]
  %v591 = vld [vmem:[%s49 + $0x6] sm:$0x1]
  %v592 = vlaneseq
  %v593 = vshrl.u32 %v592, 7
  %v594 = vsub.s32 0, %v593
  %v595 = vrot.slane %v591, %v594
  %v596 = vmul.f32 %v589, %v595
  %v597 = vmul.f32 %v590, %v595
  %v598 = vadd.f32 %v587, %v596
  %v599 = vadd.f32 %v588, %v597
  %v600 = vld [vmem:[%s59] sm:$0xff]
  %v601 = vld [vmem:[%s59 + $0x8] sm:$0xff]
  %v602 = vld [vmem:[%s62 + $0x6] sm:$0x1]
  %v603 = vlaneseq
  %v604 = vshrl.u32 %v603, 7
  %v605 = vsub.s32 0, %v604
  %v606 = vrot.slane %v602, %v605
  %v607 = vmul.f32 %v600, %v606
  %v608 = vmul.f32 %v601, %v606
  %v609 = vadd.f32 %v598, %v607
  %v610 = vadd.f32 %v599, %v608
  %v611 = vld [vmem:[%s72] sm:$0xff]
  %v612 = vld [vmem:[%s72 + $0x8] sm:$0xff]
  %v613 = vld [vmem:[%s75 + $0x6] sm:$0x1]
  %v614 = vlaneseq
  %v615 = vshrl.u32 %v614, 7
  %v616 = vsub.s32 0, %v615
  %v617 = vrot.slane %v613, %v616
  %v618 = vmul.f32 %v611, %v617
  %v619 = vmul.f32 %v612, %v617
  %v620 = vadd.f32 %v609, %v618
  %v621 = vadd.f32 %v610, %v619
  %v622 = vld [vmem:[%s85] sm:$0xff]
  %v623 = vld [vmem:[%s85 + $0x8] sm:$0xff]
  %v624 = vld [vmem:[%s88 + $0x6] sm:$0x1]
  %v625 = vlaneseq
  %v626 = vshrl.u32 %v625, 7
  %v627 = vsub.s32 0, %v626
  %v628 = vrot.slane %v624, %v627
  %v629 = vmul.f32 %v622, %v628
  %v630 = vmul.f32 %v623, %v628
  %v631 = vadd.f32 %v620, %v629
  %v632 = vadd.f32 %v621, %v630
  %v633 = vld [vmem:[%s98] sm:$0xff]
  %v634 = vld [vmem:[%s98 + $0x8] sm:$0xff]
  %v635 = vld [vmem:[%s101 + $0x6] sm:$0x1]
  %v636 = vlaneseq
  %v637 = vshrl.u32 %v636, 7
  %v638 = vsub.s32 0, %v637
  %v639 = vrot.slane %v635, %v638
  %v640 = vmul.f32 %v633, %v639
  %v641 = vmul.f32 %v634, %v639
  %v642 = vadd.f32 %v631, %v640
  %v643 = vadd.f32 %v632, %v641
  %s644 = scalar_lea.vmem %s2, 96
  %645 = vst [vmem:[%s644] sm:$0xff] %v642
  %646 = vst [vmem:[%s644 + $0x8] sm:$0xff] %v643
  %v647 = vld [vmem:[%s0] sm:$0xff]
  %v648 = vld [vmem:[%s0 + $0x8] sm:$0xff]
  %v649 = vld [vmem:[%s1 + $0x7] sm:$0x1]
  %v650 = vlaneseq
  %v651 = vshrl.u32 %v650, 7
  %v652 = vsub.s32 0, %v651
  %v653 = vrot.slane %v649, %v652
  %v654 = vmul.f32 %v647, %v653
  %v655 = vmul.f32 %v648, %v653
  %v656 = vld [vmem:[%s20] sm:$0xff]
  %v657 = vld [vmem:[%s20 + $0x8] sm:$0xff]
  %v658 = vld [vmem:[%s23 + $0x7] sm:$0x1]
  %v659 = vlaneseq
  %v660 = vshrl.u32 %v659, 7
  %v661 = vsub.s32 0, %v660
  %v662 = vrot.slane %v658, %v661
  %v663 = vmul.f32 %v656, %v662
  %v664 = vmul.f32 %v657, %v662
  %v665 = vadd.f32 %v654, %v663
  %v666 = vadd.f32 %v655, %v664
  %v667 = vld [vmem:[%s33] sm:$0xff]
  %v668 = vld [vmem:[%s33 + $0x8] sm:$0xff]
  %v669 = vld [vmem:[%s36 + $0x7] sm:$0x1]
  %v670 = vlaneseq
  %v671 = vshrl.u32 %v670, 7
  %v672 = vsub.s32 0, %v671
  %v673 = vrot.slane %v669, %v672
  %v674 = vmul.f32 %v667, %v673
  %v675 = vmul.f32 %v668, %v673
  %v676 = vadd.f32 %v665, %v674
  %v677 = vadd.f32 %v666, %v675
  %v678 = vld [vmem:[%s46] sm:$0xff]
  %v679 = vld [vmem:[%s46 + $0x8] sm:$0xff]
  %v680 = vld [vmem:[%s49 + $0x7] sm:$0x1]
  %v681 = vlaneseq
  %v682 = vshrl.u32 %v681, 7
  %v683 = vsub.s32 0, %v682
  %v684 = vrot.slane %v680, %v683
  %v685 = vmul.f32 %v678, %v684
  %v686 = vmul.f32 %v679, %v684
  %v687 = vadd.f32 %v676, %v685
  %v688 = vadd.f32 %v677, %v686
  %v689 = vld [vmem:[%s59] sm:$0xff]
  %v690 = vld [vmem:[%s59 + $0x8] sm:$0xff]
  %v691 = vld [vmem:[%s62 + $0x7] sm:$0x1]
  %v692 = vlaneseq
  %v693 = vshrl.u32 %v692, 7
  %v694 = vsub.s32 0, %v693
  %v695 = vrot.slane %v691, %v694
  %v696 = vmul.f32 %v689, %v695
  %v697 = vmul.f32 %v690, %v695
  %v698 = vadd.f32 %v687, %v696
  %v699 = vadd.f32 %v688, %v697
  %v700 = vld [vmem:[%s72] sm:$0xff]
  %v701 = vld [vmem:[%s72 + $0x8] sm:$0xff]
  %v702 = vld [vmem:[%s75 + $0x7] sm:$0x1]
  %v703 = vlaneseq
  %v704 = vshrl.u32 %v703, 7
  %v705 = vsub.s32 0, %v704
  %v706 = vrot.slane %v702, %v705
  %v707 = vmul.f32 %v700, %v706
  %v708 = vmul.f32 %v701, %v706
  %v709 = vadd.f32 %v698, %v707
  %v710 = vadd.f32 %v699, %v708
  %v711 = vld [vmem:[%s85] sm:$0xff]
  %v712 = vld [vmem:[%s85 + $0x8] sm:$0xff]
  %v713 = vld [vmem:[%s88 + $0x7] sm:$0x1]
  %v714 = vlaneseq
  %v715 = vshrl.u32 %v714, 7
  %v716 = vsub.s32 0, %v715
  %v717 = vrot.slane %v713, %v716
  %v718 = vmul.f32 %v711, %v717
  %v719 = vmul.f32 %v712, %v717
  %v720 = vadd.f32 %v709, %v718
  %v721 = vadd.f32 %v710, %v719
  %v722 = vld [vmem:[%s98] sm:$0xff]
  %v723 = vld [vmem:[%s98 + $0x8] sm:$0xff]
  %v724 = vld [vmem:[%s101 + $0x7] sm:$0x1]
  %v725 = vlaneseq
  %v726 = vshrl.u32 %v725, 7
  %v727 = vsub.s32 0, %v726
  %v728 = vrot.slane %v724, %v727
  %v729 = vmul.f32 %v722, %v728
  %v730 = vmul.f32 %v723, %v728
  %v731 = vadd.f32 %v720, %v729
  %v732 = vadd.f32 %v721, %v730
  %s733 = scalar_lea.vmem %s2, 112
  %734 = vst [vmem:[%s733] sm:$0xff] %v731
  %735 = vst [vmem:[%s733 + $0x8] sm:$0xff] %v732
  // Predicated region
  $region10: #{a_call__.1} parent=0 // pred_check
    _
  $region11: #{a_call__.1} parent=0 // pred_check_branch
    %737 = sbr.rel (0) target = $region13
  $region12: #{a_call__.1} parent=0 // pred_region
    _
  $region13: #{a_call__.1} parent=0 // pred_fallthru
    _
  // Predicated region
  $region14: #{a_call__.1} parent=0 // pred_check
    _
  $region15: #{a_call__.1} parent=0 // pred_check_branch
    %739 = sbr.rel (0) target = $region17
  $region16: #{a_call__.1} parent=0 // pred_region
    _
  $region17: #{a_call__.1} parent=0 // pred_fallthru
    _

</llo_original>
